<compile_context>
chip_gen: v7x
topology: tpu7x:2x2x1
jax: 0.10.0
libtpu: 0.0.40
codegen_flags: <defaults>
</compile_context>

<pallas_src>
import numpy as np
import jax
import jax.numpy as jnp
from jax import lax
from jax.experimental import pallas as pl
from jax.experimental.pallas import tpu as pltpu

PAD = 0          # Constants.PAD
LN_EPS = 1e-3    # LayerNormalization eps in the reference repo

# ---- small, synthetic hyper-parameters (structure identical to the module) ----
N_LAYERS = 2
N_HEAD = 2
D_K = 32
D_V = 32
D_MODEL = 128         # == d_word_vec ; chosen lane-dense (multiple of 128)
D_INNER = 256
N_VOCAB = 50
N_MAX_SEQ = 16

HD = N_HEAD * D_K     # fused Q/K head width  (64)
HDV = N_HEAD * D_V    # fused V head width    (64)


# ----------------------------------------------------------------------------
# Parameter / table initialisation (deterministic, in-script)
# ----------------------------------------------------------------------------
def position_encoding_init(n_position, d_pos_vec):
    """Sinusoid position-encoding table (row 0 == PAD row of zeros)."""
    position_enc = np.array(
        [[pos / np.power(10000, 2 * (j // 2) / d_pos_vec) for j in range(d_pos_vec)]
         if pos != 0 else np.zeros(d_pos_vec)
         for pos in range(n_position)])
    position_enc[1:, 0::2] = np.sin(position_enc[1:, 0::2])
    position_enc[1:, 1::2] = np.cos(position_enc[1:, 1::2])
    return jnp.asarray(position_enc, dtype=jnp.float32)


def init_mha_params(key, d_model, n_head, d_k, d_v):
    ks = jax.random.split(key, 5)
    s = 1.0 / np.sqrt(d_model)
    return dict(
        wq=jax.random.normal(ks[0], (n_head, d_model, d_k), jnp.float32) * s,
        wk=jax.random.normal(ks[1], (n_head, d_model, d_k), jnp.float32) * s,
        wv=jax.random.normal(ks[2], (n_head, d_model, d_v), jnp.float32) * s,
        pw=jax.random.normal(ks[3], (n_head * d_v, d_model), jnp.float32) * s,
        pb=jax.random.normal(ks[4], (1, d_model), jnp.float32) * 0.01,
        ga=jnp.ones((1, d_model), jnp.float32),
        gb=jnp.zeros((1, d_model), jnp.float32),
    )


def init_ffn_params(key, d_model, d_inner):
    ks = jax.random.split(key, 4)
    s1 = 1.0 / np.sqrt(d_model)
    s2 = 1.0 / np.sqrt(d_inner)
    return dict(
        w1=jax.random.normal(ks[0], (d_model, d_inner), jnp.float32) * s1,
        b1=jax.random.normal(ks[1], (1, d_inner), jnp.float32) * 0.01,
        w2=jax.random.normal(ks[2], (d_inner, d_model), jnp.float32) * s2,
        b2=jax.random.normal(ks[3], (1, d_model), jnp.float32) * 0.01,
        ga=jnp.ones((1, d_model), jnp.float32),
        gb=jnp.zeros((1, d_model), jnp.float32),
    )


def init_decoder_params(key):
    kw, kl = jax.random.split(key)
    word_emb = jax.random.uniform(kw, (N_VOCAB, D_MODEL), jnp.float32,
                                  minval=-1.0, maxval=1.0)
    pos_enc = position_encoding_init(N_MAX_SEQ + 1, D_MODEL)
    layers = []
    for lk in jax.random.split(kl, N_LAYERS):
        k1, k2, k3 = jax.random.split(lk, 3)
        layers.append(dict(
            slf=init_mha_params(k1, D_MODEL, N_HEAD, D_K, D_V),
            enc=init_mha_params(k2, D_MODEL, N_HEAD, D_K, D_V),
            ffn=init_ffn_params(k3, D_MODEL, D_INNER),
        ))
    return dict(word_emb=word_emb, pos_enc=pos_enc, layers=layers)


def pack_decoder_params(params):
    """Fuse heads into single projection matrices, concatenate Q|K|V (self-attn) and the
    per-layer enc-attn K|V columns, fold the 1/sqrt(d_model) score scale into Wq, keep the
    output projection pw UN-split (H*dv, D), and cast matmul weights to bf16."""
    bf16 = jnp.bfloat16
    scale = jnp.float32(1.0 / np.sqrt(D_MODEL))     # temper = sqrt(d_model) in the repo

    def fuse_heads(w):                  # (H, D, dh) -> (D, H*dh), head-major columns
        return jnp.transpose(w, (1, 0, 2)).reshape(D_MODEL, -1)

    wqkv, wq_enc, kv_enc_cols = [], [], []
    pw, pb, aga, agb = [], [], [], []
    for layer in params['layers']:
        slf, enc = layer['slf'], layer['enc']
        wqkv.append(jnp.concatenate(
            [fuse_heads(slf['wq']) * scale, fuse_heads(slf['wk']), fuse_heads(slf['wv'])],
            axis=1))                                           # (D, 3*H*dk)
        wq_enc.append(fuse_heads(enc['wq']) * scale)           # (D, H*dk)
        kv_enc_cols.append(jnp.concatenate(
            [fuse_heads(enc['wk']), fuse_heads(enc['wv'])], axis=1))   # (D, 2*H*dk)
        pw.append(jnp.stack([slf['pw'], enc['pw']]))           # (2, H*dv, D) -- un-split
        pb.append(jnp.stack([slf['pb'], enc['pb']]))
        aga.append(jnp.stack([slf['ga'], enc['ga']]))
        agb.append(jnp.stack([slf['gb'], enc['gb']]))

    layers = params['layers']
    return dict(
        wqkv=jnp.stack(wqkv).astype(bf16),                         # (L, D, 3*H*dk)
        wq_enc=jnp.stack(wq_enc).astype(bf16),                     # (L, D, H*dk)
        wkv_enc=jnp.concatenate(kv_enc_cols, axis=1).astype(bf16),  # (D, L*2*H*dk)
        pw=jnp.stack(pw).astype(bf16),                             # (L, 2, H*dv, D)
        pb=jnp.stack(pb),                                          # (L, 2, 1, D)
        aga=jnp.stack(aga), agb=jnp.stack(agb),                    # (L, 2, 1, D)
        fw1=jnp.stack([l['ffn']['w1'] for l in layers]).astype(bf16),
        fb1=jnp.stack([l['ffn']['b1'] for l in layers]),
        fw2=jnp.stack([l['ffn']['w2'] for l in layers]).astype(bf16),
        fb2=jnp.stack([l['ffn']['b2'] for l in layers]),
        fga=jnp.stack([l['ffn']['ga'] for l in layers]),
        fgb=jnp.stack([l['ffn']['gb'] for l in layers]),
    )


_WEIGHT_NAMES = ('wqkv', 'wq_enc', 'wkv_enc', 'pw', 'pb', 'aga', 'agb',
                 'fw1', 'fb1', 'fw2', 'fb2', 'fga', 'fgb')


# ----------------------------------------------------------------------------
# Fused decoder Pallas kernel: whole batch, all layers, in one invocation
# ----------------------------------------------------------------------------
def decoder_pallas(packed, dec_input, enc_output, tgt_pad, src_pad):
    Bsz, Lt, D = dec_input.shape
    Ls = enc_output.shape[1]

    # Batch folded into the matmul M dim (no per-batch grid loop); enc memory pre-cast to bf16.
    x_flat = dec_input.reshape(Bsz * Lt, D)
    enc_flat = enc_output.reshape(Bsz * Ls, D).astype(jnp.bfloat16)
    weights = [packed[n] for n in _WEIGHT_NAMES]

    def kernel(x_ref, enc_ref, tpad_ref, spad_ref,
               wqkv_ref, wqe_ref, wkve_ref, pw_ref, pb_ref, aga_ref, agb_ref,
               fw1_ref, fb1_ref, fw2_ref, fb2_ref, fga_ref, fgb_ref,
               out_ref):
        bf16 = jnp.bfloat16
        f32 = jnp.float32
        NEG = jnp.float32(-1e9)

        def layer_norm(z, ga, gb):
            # (z - mu) / (std_unbiased + eps) * a + b ; divide moved to EUP reciprocal.
            mu = jnp.mean(z, axis=-1, keepdims=True)
            var = jnp.sum((z - mu) ** 2, axis=-1, keepdims=True) * jnp.float32(1.0 / (D - 1))
            inv = pl.reciprocal(jnp.sqrt(var) + LN_EPS, approx=True)
            return (z - mu) * inv * ga + gb

        def softmax(s):
            e = jnp.exp(s - jnp.max(s, axis=-1, keepdims=True))
            return e * pl.reciprocal(jnp.sum(e, axis=-1, keepdims=True), approx=True)

        x = x_ref[...]                       # (B*Lt, D) f32
        enc_bf = enc_ref[...]                # (B*Ls, D) bf16

        # ---- additive attention biases built in-kernel from O(L) pad flags ----
        rows = lax.broadcasted_iota(jnp.int32, (Lt, Lt), 0)
        cols = lax.broadcasted_iota(jnp.int32, (Lt, Lt), 1)
        causal = cols > rows                               # subsequent mask
        tpad = tpad_ref[...]                               # (B, Lt) f32 (1.0 == PAD)
        spad = spad_ref[...]                               # (B, Ls)
        slf_bias, enc_bias = [], []
        for b in range(Bsz):
            tpad_b = tpad[b:b + 1, :] > 0.5                # (1, Lt) bool
            spad_b = spad[b:b + 1, :] > 0.5                # (1, Ls) bool
            slf_bias.append(jnp.where(jnp.logical_or(causal, tpad_b), NEG, 0.0))  # (Lt, Lt)
            enc_bias.append(jnp.where(spad_b, NEG, 0.0))                          # (1, Ls)

        # ---- encoder K/V for ALL layers in one wide matmul (enc memory is layer-invariant) --
        enc_kv_all = jnp.dot(enc_bf, wkve_ref[...],
                             preferred_element_type=f32).astype(bf16)   # (B*Ls, L*2*HD)

        def attention(x_in, q_all, k_all, v_all, bias, Lk, pw, pb, ga, gb):
            # q_all: (B*Lt, HD) bf16 ; k_all/v_all: (B*Lk, HD) bf16 ; bias[b] additive.
            outs = []
            for b in range(Bsz):
                qb = q_all[b * Lt:(b + 1) * Lt, :]
                kb = k_all[b * Lk:(b + 1) * Lk, :]
                vb = v_all[b * Lk:(b + 1) * Lk, :]
                head_outs = []
                for h in range(N_HEAD):
                    qh = qb[:, h * D_K:(h + 1) * D_K]
                    kh = kb[:, h * D_K:(h + 1) * D_K]
                    vh = vb[:, h * D_V:(h + 1) * D_V]
                    # q @ k^T contracting the last dims (no explicit transpose).
                    s = lax.dot_general(qh, kh, (((1,), (1,)), ((), ())),
                                        preferred_element_type=f32) + bias[b]
                    p = softmax(s)
                    head_outs.append(jnp.dot(p.astype(bf16), vh,
                                             preferred_element_type=f32))   # (Lt, dv) f32
                outs.append(jnp.concatenate(head_outs, axis=-1))             # (Lt, H*dv)
            # Single output projection over the whole batch against the UN-split pw.
            o = jnp.concatenate(outs, axis=0).astype(bf16)                    # (B*Lt, H*dv)
            z = jnp.dot(o, pw, preferred_element_type=f32) + pb + x_in        # residual
            return layer_norm(z, ga, gb)

        def ffn(x_in, l):
            h1 = jnp.maximum(
                jnp.dot(x_in.astype(bf16), fw1_ref[l], preferred_element_type=f32)
                + fb1_ref[l], 0.0)                                           # (B*Lt, D_inner)
            y = jnp.dot(h1.astype(bf16), fw2_ref[l], preferred_element_type=f32) + fb2_ref[l]
            return layer_norm(y + x_in, fga_ref[l], fgb_ref[l])              # residual + LN

        for l in range(N_LAYERS):            # static unroll; activations stay in VMEM
            # --- masked self-attention: ONE fused (B*Lt, D) @ (D, 3*HD) QKV projection ---
            qkv = jnp.dot(x.astype(bf16), wqkv_ref[l],
                          preferred_element_type=f32).astype(bf16)           # (B*Lt, 3*HD)
            x = attention(x, qkv[:, :HD], qkv[:, HD:2 * HD], qkv[:, 2 * HD:],
                          slf_bias, Lt,
                          pw_ref[l, 0], pb_ref[l, 0], aga_ref[l, 0], agb_ref[l, 0])
            # --- encoder-decoder attention: Q projection + precomputed per-layer K/V slice ---
            q_e = jnp.dot(x.astype(bf16), wqe_ref[l],
                          preferred_element_type=f32).astype(bf16)           # (B*Lt, HD)
            k_e = enc_kv_all[:, l * 2 * HD: l * 2 * HD + HD]
            v_e = enc_kv_all[:, l * 2 * HD + HD: (l + 1) * 2 * HD]
            x = attention(x, q_e, k_e, v_e, enc_bias, Ls,
                          pw_ref[l, 1], pb_ref[l, 1], aga_ref[l, 1], agb_ref[l, 1])
            # --- position-wise FFN ---
            x = ffn(x, l)

        out_ref[...] = x                      # (B*Lt, D): D=128 -> unmasked lane-dense store

    def _full_spec(a):
        n = a.ndim
        return pl.BlockSpec(a.shape, lambda i, _n=n: (0,) * _n)

    # Rough cost hint for the XLA scheduler around the fused call.
    flops = 2 * (Bsz * Ls) * D_MODEL * (N_LAYERS * 2 * HD)
    flops += N_LAYERS * (
        2 * (Bsz * Lt) * D_MODEL * (3 * HD)
        + 2 * (Bsz * Lt) * D_MODEL * HD
        + 2 * 2 * (Bsz * Lt) * HDV * D_MODEL
        + 2 * Bsz * N_HEAD * Lt * (Lt + Ls) * (D_K + D_V)
        + 2 * 2 * (Bsz * Lt) * D_MODEL * D_INNER)
    trans = N_LAYERS * (Bsz * N_HEAD * Lt * (Lt + Ls) + 6 * Bsz * Lt)
    inputs = [x_flat, enc_flat, tgt_pad, src_pad] + weights
    bytes_accessed = int(sum(a.size * a.dtype.itemsize for a in inputs)
                         + Bsz * Lt * D * 4)

    out_flat = pl.pallas_call(
        kernel,
        out_shape=jax.ShapeDtypeStruct((Bsz * Lt, D), jnp.float32),
        grid=(1,),
        in_specs=[_full_spec(a) for a in inputs],
        out_specs=pl.BlockSpec((Bsz * Lt, D), lambda i: (0, 0)),
        compiler_params=pltpu.CompilerParams(dimension_semantics=("arbitrary",)),
        cost_estimate=pl.CostEstimate(flops=int(flops), transcendentals=int(trans),
                                      bytes_accessed=bytes_accessed),
    )(*inputs)
    return out_flat.reshape(Bsz, Lt, D)


# ----------------------------------------------------------------------------
# Pure-JAX reference (same packed bf16 params; exact softmax / LayerNorm division)
# ----------------------------------------------------------------------------
def decoder_reference(packed, dec_input, enc_output, tgt_pad, src_pad):
    bf16 = jnp.bfloat16
    f32 = jnp.float32
    Bsz, Lt, D = dec_input.shape
    Ls = enc_output.shape[1]

    causal = jnp.triu(jnp.ones((Lt, Lt), bool), k=1)
    slf_bias = jnp.where(causal[None] | (tgt_pad[:, None, :] > 0.5), -1e9, 0.0).astype(f32)
    enc_bias = jnp.where(src_pad[:, None, :] > 0.5, -1e9, 0.0).astype(f32)

    def layer_norm(z, ga, gb):
        mu = jnp.mean(z, axis=-1, keepdims=True)
        var = jnp.sum((z - mu) ** 2, axis=-1, keepdims=True) / (D - 1)
        return (z - mu) / (jnp.sqrt(var) + LN_EPS) * ga + gb

    def attention(x_in, q, k, v, bias, pw, pb, ga, gb):
        heads = []
        for h in range(N_HEAD):
            qh = q[..., h * D_K:(h + 1) * D_K]
            kh = k[..., h * D_K:(h + 1) * D_K]
            vh = v[..., h * D_V:(h + 1) * D_V]
            s = jnp.einsum('bqd,bkd->bqk', qh, kh, preferred_element_type=f32) + bias
            e = jnp.exp(s - jnp.max(s, axis=-1, keepdims=True))
            p = e / jnp.sum(e, axis=-1, keepdims=True)
            heads.append(jnp.einsum('bqk,bkd->bqd', p.astype(bf16), vh,
                                    preferred_element_type=f32))
        o = jnp.concatenate(heads, axis=-1).astype(bf16)
        z = jnp.einsum('bqv,vd->bqd', o, pw, preferred_element_type=f32) + pb + x_in
        return layer_norm(z, ga, gb)

    def ffn(x_in, l):
        h1 = jnp.maximum(jnp.einsum('bld,di->bli', x_in.astype(bf16), packed['fw1'][l],
                                    preferred_element_type=f32) + packed['fb1'][l], 0.0)
        y = jnp.einsum('bli,id->bld', h1.astype(bf16), packed['fw2'][l],
                       preferred_element_type=f32) + packed['fb2'][l]
        return layer_norm(y + x_in, packed['fga'][l], packed['fgb'][l])

    x = dec_input
    enc_bf = enc_output.astype(bf16)
    enc_kv_all = jnp.einsum('bsd,de->bse', enc_bf, packed['wkv_enc'],
                            preferred_element_type=f32).astype(bf16)
    for l in range(N_LAYERS):
        qkv = jnp.einsum('bld,de->ble', x.astype(bf16), packed['wqkv'][l],
                         preferred_element_type=f32).astype(bf16)
        x = attention(x, qkv[..., :HD], qkv[..., HD:2 * HD], qkv[..., 2 * HD:],
                      slf_bias, packed['pw'][l, 0], packed['pb'][l, 0],
                      packed['aga'][l, 0], packed['agb'][l, 0])
        q_e = jnp.einsum('bld,de->ble', x.astype(bf16), packed['wq_enc'][l],
                         preferred_element_type=f32).astype(bf16)
        k_e = enc_kv_all[..., l * 2 * HD: l * 2 * HD + HD]
        v_e = enc_kv_all[..., l * 2 * HD + HD: (l + 1) * 2 * HD]
        x = attention(x, q_e, k_e, v_e, enc_bias, packed['pw'][l, 1], packed['pb'][l, 1],
                      packed['aga'][l, 1], packed['agb'][l, 1])
        x = ffn(x, l)
    return x


# ----------------------------------------------------------------------------
# Decoder forward (plain-JAX glue: embedding gather + pad flags; fused Pallas hot path)
# ----------------------------------------------------------------------------
def decoder_forward(params, packed, tgt_seq, tgt_pos, src_seq, enc_output):
    dec_input = params['word_emb'][tgt_seq] + params['pos_enc'][tgt_pos]
    tgt_pad = (tgt_seq == PAD).astype(jnp.float32)
    src_pad = (src_seq == PAD).astype(jnp.float32)
    return (decoder_pallas(packed, dec_input, enc_output, tgt_pad, src_pad),)


def decoder_forward_reference(params, packed, tgt_seq, tgt_pos, src_seq, enc_output):
    dec_input = params['word_emb'][tgt_seq] + params['pos_enc'][tgt_pos]
    tgt_pad = (tgt_seq == PAD).astype(jnp.float32)
    src_pad = (src_seq == PAD).astype(jnp.float32)
    return decoder_reference(packed, dec_input, enc_output, tgt_pad, src_pad)


# ----------------------------------------------------------------------------
if __name__ == "__main__":
    key = jax.random.PRNGKey(0)
    kp, k1, k2, k3 = jax.random.split(key, 4)

    B, LT, LS = 2, 8, 8
    params = init_decoder_params(kp)
    packed = pack_decoder_params(params)

    tgt_seq = jax.random.randint(k1, (B, LT), 1, N_VOCAB).astype(jnp.int32)
    tgt_seq = tgt_seq.at[1, -2:].set(PAD)                      # some padding in batch 1
    src_seq = jax.random.randint(k2, (B, LS), 1, N_VOCAB).astype(jnp.int32)
    src_seq = src_seq.at[0, -3:].set(PAD)

    pos = jnp.arange(1, LT + 1, dtype=jnp.int32)[None].repeat(B, axis=0)
    tgt_pos = jnp.where(tgt_seq == PAD, 0, pos)

    enc_output = jax.random.normal(k3, (B, LS, D_MODEL), jnp.float32)

    (dec_out,) = decoder_forward(params, packed, tgt_seq, tgt_pos, src_seq, enc_output)
    dec_out = jax.block_until_ready(dec_out)

    ref_out = jax.block_until_ready(
        decoder_forward_reference(params, packed, tgt_seq, tgt_pos, src_seq, enc_output))

    assert dec_out.shape == (B, LT, D_MODEL)
    assert bool(jnp.all(jnp.isfinite(dec_out)))
    np.testing.assert_allclose(np.asarray(dec_out), np.asarray(ref_out),
                               rtol=5e-2, atol=5e-2)
    print("KERNEL_OK")
</pallas_src>

<mosaic_0001>
module attributes {stable_mosaic.version = 11 : i64} {
  func.func @kernel(%arg0: i32, %arg1: memref<16x128xf32, #tpu.memory_space<vmem>>, %arg2: memref<16x128xbf16, #tpu.memory_space<vmem>>, %arg3: memref<2x8xf32, #tpu.memory_space<vmem>>, %arg4: memref<2x8xf32, #tpu.memory_space<vmem>>, %arg5: memref<2x128x192xbf16, #tpu.memory_space<vmem>>, %arg6: memref<2x128x64xbf16, #tpu.memory_space<vmem>>, %arg7: memref<128x256xbf16, #tpu.memory_space<vmem>>, %arg8: memref<2x2x64x128xbf16, #tpu.memory_space<vmem>>, %arg9: memref<2x2x1x128xf32, #tpu.memory_space<vmem>>, %arg10: memref<2x2x1x128xf32, #tpu.memory_space<vmem>>, %arg11: memref<2x2x1x128xf32, #tpu.memory_space<vmem>>, %arg12: memref<2x128x256xbf16, #tpu.memory_space<vmem>>, %arg13: memref<2x1x256xf32, #tpu.memory_space<vmem>>, %arg14: memref<2x256x128xbf16, #tpu.memory_space<vmem>>, %arg15: memref<2x1x128xf32, #tpu.memory_space<vmem>>, %arg16: memref<2x1x128xf32, #tpu.memory_space<vmem>>, %arg17: memref<2x1x128xf32, #tpu.memory_space<vmem>>, %arg18: memref<16x128xf32, #tpu.memory_space<vmem>>) attributes {dimension_semantics = [#tpu.dimension_semantics<arbitrary>], iteration_bounds = array<i64: 1>, scalar_prefetch = 0 : i64, scratch_operands = 0 : i64, tpu.core_type = #tpu.core_type<tc>, window_params = [{pipeline_mode = #tpu.pipeline_mode<synchronous>, transform_indices = @transform_0, window_bounds = array<i64: 16, 128>}, {pipeline_mode = #tpu.pipeline_mode<synchronous>, transform_indices = @transform_1, window_bounds = array<i64: 16, 128>}, {pipeline_mode = #tpu.pipeline_mode<synchronous>, transform_indices = @transform_2, window_bounds = array<i64: 2, 8>}, {pipeline_mode = #tpu.pipeline_mode<synchronous>, transform_indices = @transform_3, window_bounds = array<i64: 2, 8>}, {pipeline_mode = #tpu.pipeline_mode<synchronous>, transform_indices = @transform_4, window_bounds = array<i64: 2, 128, 192>}, {pipeline_mode = #tpu.pipeline_mode<synchronous>, transform_indices = @transform_5, window_bounds = array<i64: 2, 128, 64>}, {pipeline_mode = #tpu.pipeline_mode<synchronous>, transform_indices = @transform_6, window_bounds = array<i64: 128, 256>}, {pipeline_mode = #tpu.pipeline_mode<synchronous>, transform_indices = @transform_7, window_bounds = array<i64: 2, 2, 64, 128>}, {pipeline_mode = #tpu.pipeline_mode<synchronous>, transform_indices = @transform_8, window_bounds = array<i64: 2, 2, 1, 128>}, {pipeline_mode = #tpu.pipeline_mode<synchronous>, transform_indices = @transform_9, window_bounds = array<i64: 2, 2, 1, 128>}, {pipeline_mode = #tpu.pipeline_mode<synchronous>, transform_indices = @transform_10, window_bounds = array<i64: 2, 2, 1, 128>}, {pipeline_mode = #tpu.pipeline_mode<synchronous>, transform_indices = @transform_11, window_bounds = array<i64: 2, 128, 256>}, {pipeline_mode = #tpu.pipeline_mode<synchronous>, transform_indices = @transform_12, window_bounds = array<i64: 2, 1, 256>}, {pipeline_mode = #tpu.pipeline_mode<synchronous>, transform_indices = @transform_13, window_bounds = array<i64: 2, 256, 128>}, {pipeline_mode = #tpu.pipeline_mode<synchronous>, transform_indices = @transform_14, window_bounds = array<i64: 2, 1, 128>}, {pipeline_mode = #tpu.pipeline_mode<synchronous>, transform_indices = @transform_15, window_bounds = array<i64: 2, 1, 128>}, {pipeline_mode = #tpu.pipeline_mode<synchronous>, transform_indices = @transform_16, window_bounds = array<i64: 2, 1, 128>}, {pipeline_mode = #tpu.pipeline_mode<synchronous>, transform_indices = @transform_17, window_bounds = array<i64: 16, 128>}]} {
    %c0 = arith.constant 0 : index
    %c0_0 = arith.constant 0 : index
    %0 = vector.load %arg1[%c0, %c0_0] : memref<16x128xf32, #tpu.memory_space<vmem>>, vector<16x128xf32>
    %c0_1 = arith.constant 0 : index
    %c0_2 = arith.constant 0 : index
    %1 = vector.load %arg2[%c0_1, %c0_2] : memref<16x128xbf16, #tpu.memory_space<vmem>>, vector<16x128xbf16>
    %2 = tpu.iota {dimensions = array<i32: 0>} : vector<8x8xi32>
    %3 = tpu.iota {dimensions = array<i32: 1>} : vector<8x8xi32>
    %4 = arith.cmpi sgt, %3, %2 : vector<8x8xi32>
    %c0_3 = arith.constant 0 : index
    %c0_4 = arith.constant 0 : index
    %5 = vector.load %arg3[%c0_3, %c0_4] : memref<2x8xf32, #tpu.memory_space<vmem>>, vector<2x8xf32>
    %c0_5 = arith.constant 0 : index
    %c0_6 = arith.constant 0 : index
    %6 = vector.load %arg4[%c0_5, %c0_6] : memref<2x8xf32, #tpu.memory_space<vmem>>, vector<2x8xf32>
    %7 = vector.extract_strided_slice %5 {offsets = [0, 0], sizes = [1, 8], strides = [1, 1]} : vector<2x8xf32> to vector<1x8xf32>
    %cst = arith.constant 5.000000e-01 : f32
    %8 = vector.broadcast %cst : f32 to vector<1x8xf32>
    %9 = arith.cmpf ogt, %7, %8 : vector<1x8xf32>
    %10 = vector.extract_strided_slice %6 {offsets = [0, 0], sizes = [1, 8], strides = [1, 1]} : vector<2x8xf32> to vector<1x8xf32>
    %cst_7 = arith.constant 5.000000e-01 : f32
    %11 = vector.broadcast %cst_7 : f32 to vector<1x8xf32>
    %12 = arith.cmpf ogt, %10, %11 : vector<1x8xf32>
    %13 = vector.broadcast %9 : vector<1x8xi1> to vector<8x8xi1>
    %14 = arith.ori %4, %13 : vector<8x8xi1>
    %cst_8 = arith.constant -1.000000e+09 : f32
    %cst_9 = arith.constant 0.000000e+00 : f32
    %15 = vector.broadcast %cst_8 : f32 to vector<8x8xf32>
    %16 = vector.broadcast %cst_9 : f32 to vector<8x8xf32>
    %17 = arith.select %14, %15, %16 : vector<8x8xi1>, vector<8x8xf32>
    %cst_10 = arith.constant -1.000000e+09 : f32
    %cst_11 = arith.constant 0.000000e+00 : f32
    %18 = vector.broadcast %cst_10 : f32 to vector<1x8xf32>
    %19 = vector.broadcast %cst_11 : f32 to vector<1x8xf32>
    %20 = arith.select %12, %18, %19 : vector<1x8xi1>, vector<1x8xf32>
    %21 = vector.extract_strided_slice %5 {offsets = [1, 0], sizes = [1, 8], strides = [1, 1]} : vector<2x8xf32> to vector<1x8xf32>
    %cst_12 = arith.constant 5.000000e-01 : f32
    %22 = vector.broadcast %cst_12 : f32 to vector<1x8xf32>
    %23 = arith.cmpf ogt, %21, %22 : vector<1x8xf32>
    %24 = vector.extract_strided_slice %6 {offsets = [1, 0], sizes = [1, 8], strides = [1, 1]} : vector<2x8xf32> to vector<1x8xf32>
    %cst_13 = arith.constant 5.000000e-01 : f32
    %25 = vector.broadcast %cst_13 : f32 to vector<1x8xf32>
    %26 = arith.cmpf ogt, %24, %25 : vector<1x8xf32>
    %27 = vector.broadcast %23 : vector<1x8xi1> to vector<8x8xi1>
    %28 = arith.ori %4, %27 : vector<8x8xi1>
    %cst_14 = arith.constant -1.000000e+09 : f32
    %cst_15 = arith.constant 0.000000e+00 : f32
    %29 = vector.broadcast %cst_14 : f32 to vector<8x8xf32>
    %30 = vector.broadcast %cst_15 : f32 to vector<8x8xf32>
    %31 = arith.select %28, %29, %30 : vector<8x8xi1>, vector<8x8xf32>
    %cst_16 = arith.constant -1.000000e+09 : f32
    %cst_17 = arith.constant 0.000000e+00 : f32
    %32 = vector.broadcast %cst_16 : f32 to vector<1x8xf32>
    %33 = vector.broadcast %cst_17 : f32 to vector<1x8xf32>
    %34 = arith.select %26, %32, %33 : vector<1x8xi1>, vector<1x8xf32>
    %c0_18 = arith.constant 0 : index
    %c0_19 = arith.constant 0 : index
    %35 = vector.load %arg7[%c0_18, %c0_19] : memref<128x256xbf16, #tpu.memory_space<vmem>>, vector<128x256xbf16>
    %cst_20 = arith.constant dense<0.000000e+00> : vector<16x256xf32>
    %36 = tpu.matmul %1, %35, %cst_20 {dimension_numbers = #tpu.dot_dimension_numbers<[1], [0], [0], [1], [0, 0, 1, 1], [], []>} : vector<16x128xbf16>, vector<128x256xbf16>, vector<16x256xf32> -> vector<16x256xf32>
    %37 = arith.truncf %36 : vector<16x256xf32> to vector<16x256xbf16>
    %38 = arith.truncf %0 : vector<16x128xf32> to vector<16x128xbf16>
    %c0_21 = arith.constant 0 : index
    %c0_22 = arith.constant 0 : index
    %c0_23 = arith.constant 0 : index
    %39 = vector.load %arg5[%c0_21, %c0_22, %c0_23] : memref<2x128x192xbf16, #tpu.memory_space<vmem>>, vector<1x128x192xbf16>
    %40 = vector.shape_cast %39 : vector<1x128x192xbf16> to vector<128x192xbf16>
    %cst_24 = arith.constant dense<0.000000e+00> : vector<16x192xf32>
    %41 = tpu.matmul %38, %40, %cst_24 {dimension_numbers = #tpu.dot_dimension_numbers<[1], [0], [0], [1], [0, 0, 1, 1], [], []>} : vector<16x128xbf16>, vector<128x192xbf16>, vector<16x192xf32> -> vector<16x192xf32>
    %42 = arith.truncf %41 : vector<16x192xf32> to vector<16x192xbf16>
    %43 = vector.extract_strided_slice %42 {offsets = [0, 0], sizes = [16, 64], strides = [1, 1]} : vector<16x192xbf16> to vector<16x64xbf16>
    %44 = vector.extract_strided_slice %42 {offsets = [0, 64], sizes = [16, 64], strides = [1, 1]} : vector<16x192xbf16> to vector<16x64xbf16>
    %45 = vector.extract_strided_slice %42 {offsets = [0, 128], sizes = [16, 64], strides = [1, 1]} : vector<16x192xbf16> to vector<16x64xbf16>
    %c0_25 = arith.constant 0 : index
    %c0_26 = arith.constant 0 : index
    %c0_27 = arith.constant 0 : index
    %c0_28 = arith.constant 0 : index
    %46 = vector.load %arg8[%c0_25, %c0_26, %c0_27, %c0_28] : memref<2x2x64x128xbf16, #tpu.memory_space<vmem>>, vector<1x1x64x128xbf16>
    %47 = vector.shape_cast %46 : vector<1x1x64x128xbf16> to vector<64x128xbf16>
    %c0_29 = arith.constant 0 : index
    %c0_30 = arith.constant 0 : index
    %c0_31 = arith.constant 0 : index
    %c0_32 = arith.constant 0 : index
    %48 = vector.load %arg9[%c0_29, %c0_30, %c0_31, %c0_32] : memref<2x2x1x128xf32, #tpu.memory_space<vmem>>, vector<1x1x1x128xf32>
    %49 = vector.shape_cast %48 : vector<1x1x1x128xf32> to vector<1x128xf32>
    %c0_33 = arith.constant 0 : index
    %c0_34 = arith.constant 0 : index
    %c0_35 = arith.constant 0 : index
    %c0_36 = arith.constant 0 : index
    %50 = vector.load %arg10[%c0_33, %c0_34, %c0_35, %c0_36] : memref<2x2x1x128xf32, #tpu.memory_space<vmem>>, vector<1x1x1x128xf32>
    %51 = vector.shape_cast %50 : vector<1x1x1x128xf32> to vector<1x128xf32>
    %c0_37 = arith.constant 0 : index
    %c0_38 = arith.constant 0 : index
    %c0_39 = arith.constant 0 : index
    %c0_40 = arith.constant 0 : index
    %52 = vector.load %arg11[%c0_37, %c0_38, %c0_39, %c0_40] : memref<2x2x1x128xf32, #tpu.memory_space<vmem>>, vector<1x1x1x128xf32>
    %53 = vector.shape_cast %52 : vector<1x1x1x128xf32> to vector<1x128xf32>
    %54 = vector.extract_strided_slice %43 {offsets = [0, 0], sizes = [8, 64], strides = [1, 1]} : vector<16x64xbf16> to vector<8x64xbf16>
    %55 = vector.extract_strided_slice %44 {offsets = [0, 0], sizes = [8, 64], strides = [1, 1]} : vector<16x64xbf16> to vector<8x64xbf16>
    %56 = vector.extract_strided_slice %45 {offsets = [0, 0], sizes = [8, 64], strides = [1, 1]} : vector<16x64xbf16> to vector<8x64xbf16>
    %57 = vector.extract_strided_slice %54 {offsets = [0, 0], sizes = [8, 32], strides = [1, 1]} : vector<8x64xbf16> to vector<8x32xbf16>
    %58 = vector.extract_strided_slice %55 {offsets = [0, 0], sizes = [8, 32], strides = [1, 1]} : vector<8x64xbf16> to vector<8x32xbf16>
    %59 = vector.extract_strided_slice %56 {offsets = [0, 0], sizes = [8, 32], strides = [1, 1]} : vector<8x64xbf16> to vector<8x32xbf16>
    %cst_41 = arith.constant dense<0.000000e+00> : vector<8x8xf32>
    %60 = tpu.matmul %57, %58, %cst_41 {dimension_numbers = #tpu.dot_dimension_numbers<[1], [1], [0], [0], [0, 0, 1, 0], [], []>} : vector<8x32xbf16>, vector<8x32xbf16>, vector<8x8xf32> -> vector<8x8xf32>
    %61 = arith.addf %60, %17 : vector<8x8xf32>
    %cst_42 = arith.constant dense<0xFF800000> : vector<8xf32>
    %62 = vector.multi_reduction <maximumf>, %61, %cst_42 [1] : vector<8x8xf32> to vector<8xf32>
    %63 = vector.shape_cast %62 : vector<8xf32> to vector<8x1xf32>
    %64 = vector.broadcast %63 : vector<8x1xf32> to vector<8x8xf32>
    %65 = arith.subf %61, %64 : vector<8x8xf32>
    %66 = math.exp %65 : vector<8x8xf32>
    %cst_43 = arith.constant dense<0.000000e+00> : vector<8xf32>
    %67 = vector.multi_reduction <add>, %66, %cst_43 [1] : vector<8x8xf32> to vector<8xf32>
    %68 = vector.shape_cast %67 : vector<8xf32> to vector<8x1xf32>
    %69 = tpu.reciprocal %68 {approx = true} : vector<8x1xf32> -> vector<8x1xf32>
    %70 = vector.broadcast %69 : vector<8x1xf32> to vector<8x8xf32>
    %71 = arith.mulf %66, %70 : vector<8x8xf32>
    %72 = arith.truncf %71 : vector<8x8xf32> to vector<8x8xbf16>
    %cst_44 = arith.constant dense<0.000000e+00> : vector<8x32xf32>
    %73 = tpu.matmul %72, %59, %cst_44 {dimension_numbers = #tpu.dot_dimension_numbers<[1], [0], [0], [1], [0, 0, 1, 1], [], []>} : vector<8x8xbf16>, vector<8x32xbf16>, vector<8x32xf32> -> vector<8x32xf32>
    %74 = vector.extract_strided_slice %54 {offsets = [0, 32], sizes = [8, 32], strides = [1, 1]} : vector<8x64xbf16> to vector<8x32xbf16>
    %75 = vector.extract_strided_slice %55 {offsets = [0, 32], sizes = [8, 32], strides = [1, 1]} : vector<8x64xbf16> to vector<8x32xbf16>
    %76 = vector.extract_strided_slice %56 {offsets = [0, 32], sizes = [8, 32], strides = [1, 1]} : vector<8x64xbf16> to vector<8x32xbf16>
    %cst_45 = arith.constant dense<0.000000e+00> : vector<8x8xf32>
    %77 = tpu.matmul %74, %75, %cst_45 {dimension_numbers = #tpu.dot_dimension_numbers<[1], [1], [0], [0], [0, 0, 1, 0], [], []>} : vector<8x32xbf16>, vector<8x32xbf16>, vector<8x8xf32> -> vector<8x8xf32>
    %78 = arith.addf %77, %17 : vector<8x8xf32>
    %cst_46 = arith.constant dense<0xFF800000> : vector<8xf32>
    %79 = vector.multi_reduction <maximumf>, %78, %cst_46 [1] : vector<8x8xf32> to vector<8xf32>
    %80 = vector.shape_cast %79 : vector<8xf32> to vector<8x1xf32>
    %81 = vector.broadcast %80 : vector<8x1xf32> to vector<8x8xf32>
    %82 = arith.subf %78, %81 : vector<8x8xf32>
    %83 = math.exp %82 : vector<8x8xf32>
    %cst_47 = arith.constant dense<0.000000e+00> : vector<8xf32>
    %84 = vector.multi_reduction <add>, %83, %cst_47 [1] : vector<8x8xf32> to vector<8xf32>
    %85 = vector.shape_cast %84 : vector<8xf32> to vector<8x1xf32>
    %86 = tpu.reciprocal %85 {approx = true} : vector<8x1xf32> -> vector<8x1xf32>
    %87 = vector.broadcast %86 : vector<8x1xf32> to vector<8x8xf32>
    %88 = arith.mulf %83, %87 : vector<8x8xf32>
    %89 = arith.truncf %88 : vector<8x8xf32> to vector<8x8xbf16>
    %cst_48 = arith.constant dense<0.000000e+00> : vector<8x32xf32>
    %90 = tpu.matmul %89, %76, %cst_48 {dimension_numbers = #tpu.dot_dimension_numbers<[1], [0], [0], [1], [0, 0, 1, 1], [], []>} : vector<8x8xbf16>, vector<8x32xbf16>, vector<8x32xf32> -> vector<8x32xf32>
    %91 = tpu.concatenate %73, %90 in 1 : vector<8x32xf32>, vector<8x32xf32> -> vector<8x64xf32>
    %92 = vector.extract_strided_slice %43 {offsets = [8, 0], sizes = [8, 64], strides = [1, 1]} : vector<16x64xbf16> to vector<8x64xbf16>
    %93 = vector.extract_strided_slice %44 {offsets = [8, 0], sizes = [8, 64], strides = [1, 1]} : vector<16x64xbf16> to vector<8x64xbf16>
    %94 = vector.extract_strided_slice %45 {offsets = [8, 0], sizes = [8, 64], strides = [1, 1]} : vector<16x64xbf16> to vector<8x64xbf16>
    %95 = vector.extract_strided_slice %92 {offsets = [0, 0], sizes = [8, 32], strides = [1, 1]} : vector<8x64xbf16> to vector<8x32xbf16>
    %96 = vector.extract_strided_slice %93 {offsets = [0, 0], sizes = [8, 32], strides = [1, 1]} : vector<8x64xbf16> to vector<8x32xbf16>
    %97 = vector.extract_strided_slice %94 {offsets = [0, 0], sizes = [8, 32], strides = [1, 1]} : vector<8x64xbf16> to vector<8x32xbf16>
    %cst_49 = arith.constant dense<0.000000e+00> : vector<8x8xf32>
    %98 = tpu.matmul %95, %96, %cst_49 {dimension_numbers = #tpu.dot_dimension_numbers<[1], [1], [0], [0], [0, 0, 1, 0], [], []>} : vector<8x32xbf16>, vector<8x32xbf16>, vector<8x8xf32> -> vector<8x8xf32>
    %99 = arith.addf %98, %31 : vector<8x8xf32>
    %cst_50 = arith.constant dense<0xFF800000> : vector<8xf32>
    %100 = vector.multi_reduction <maximumf>, %99, %cst_50 [1] : vector<8x8xf32> to vector<8xf32>
    %101 = vector.shape_cast %100 : vector<8xf32> to vector<8x1xf32>
    %102 = vector.broadcast %101 : vector<8x1xf32> to vector<8x8xf32>
    %103 = arith.subf %99, %102 : vector<8x8xf32>
    %104 = math.exp %103 : vector<8x8xf32>
    %cst_51 = arith.constant dense<0.000000e+00> : vector<8xf32>
    %105 = vector.multi_reduction <add>, %104, %cst_51 [1] : vector<8x8xf32> to vector<8xf32>
    %106 = vector.shape_cast %105 : vector<8xf32> to vector<8x1xf32>
    %107 = tpu.reciprocal %106 {approx = true} : vector<8x1xf32> -> vector<8x1xf32>
    %108 = vector.broadcast %107 : vector<8x1xf32> to vector<8x8xf32>
    %109 = arith.mulf %104, %108 : vector<8x8xf32>
    %110 = arith.truncf %109 : vector<8x8xf32> to vector<8x8xbf16>
    %cst_52 = arith.constant dense<0.000000e+00> : vector<8x32xf32>
    %111 = tpu.matmul %110, %97, %cst_52 {dimension_numbers = #tpu.dot_dimension_numbers<[1], [0], [0], [1], [0, 0, 1, 1], [], []>} : vector<8x8xbf16>, vector<8x32xbf16>, vector<8x32xf32> -> vector<8x32xf32>
    %112 = vector.extract_strided_slice %92 {offsets = [0, 32], sizes = [8, 32], strides = [1, 1]} : vector<8x64xbf16> to vector<8x32xbf16>
    %113 = vector.extract_strided_slice %93 {offsets = [0, 32], sizes = [8, 32], strides = [1, 1]} : vector<8x64xbf16> to vector<8x32xbf16>
    %114 = vector.extract_strided_slice %94 {offsets = [0, 32], sizes = [8, 32], strides = [1, 1]} : vector<8x64xbf16> to vector<8x32xbf16>
    %cst_53 = arith.constant dense<0.000000e+00> : vector<8x8xf32>
    %115 = tpu.matmul %112, %113, %cst_53 {dimension_numbers = #tpu.dot_dimension_numbers<[1], [1], [0], [0], [0, 0, 1, 0], [], []>} : vector<8x32xbf16>, vector<8x32xbf16>, vector<8x8xf32> -> vector<8x8xf32>
    %116 = arith.addf %115, %31 : vector<8x8xf32>
    %cst_54 = arith.constant dense<0xFF800000> : vector<8xf32>
    %117 = vector.multi_reduction <maximumf>, %116, %cst_54 [1] : vector<8x8xf32> to vector<8xf32>
    %118 = vector.shape_cast %117 : vector<8xf32> to vector<8x1xf32>
    %119 = vector.broadcast %118 : vector<8x1xf32> to vector<8x8xf32>
    %120 = arith.subf %116, %119 : vector<8x8xf32>
    %121 = math.exp %120 : vector<8x8xf32>
    %cst_55 = arith.constant dense<0.000000e+00> : vector<8xf32>
    %122 = vector.multi_reduction <add>, %121, %cst_55 [1] : vector<8x8xf32> to vector<8xf32>
    %123 = vector.shape_cast %122 : vector<8xf32> to vector<8x1xf32>
    %124 = tpu.reciprocal %123 {approx = true} : vector<8x1xf32> -> vector<8x1xf32>
    %125 = vector.broadcast %124 : vector<8x1xf32> to vector<8x8xf32>
    %126 = arith.mulf %121, %125 : vector<8x8xf32>
    %127 = arith.truncf %126 : vector<8x8xf32> to vector<8x8xbf16>
    %cst_56 = arith.constant dense<0.000000e+00> : vector<8x32xf32>
    %128 = tpu.matmul %127, %114, %cst_56 {dimension_numbers = #tpu.dot_dimension_numbers<[1], [0], [0], [1], [0, 0, 1, 1], [], []>} : vector<8x8xbf16>, vector<8x32xbf16>, vector<8x32xf32> -> vector<8x32xf32>
    %129 = tpu.concatenate %111, %128 in 1 : vector<8x32xf32>, vector<8x32xf32> -> vector<8x64xf32>
    %130 = tpu.concatenate %91, %129 in 0 : vector<8x64xf32>, vector<8x64xf32> -> vector<16x64xf32>
    %131 = arith.truncf %130 : vector<16x64xf32> to vector<16x64xbf16>
    %cst_57 = arith.constant dense<0.000000e+00> : vector<16x128xf32>
    %132 = tpu.matmul %131, %47, %cst_57 {dimension_numbers = #tpu.dot_dimension_numbers<[1], [0], [0], [1], [0, 0, 1, 1], [], []>} : vector<16x64xbf16>, vector<64x128xbf16>, vector<16x128xf32> -> vector<16x128xf32>
    %133 = vector.broadcast %49 : vector<1x128xf32> to vector<16x128xf32>
    %134 = arith.addf %132, %133 : vector<16x128xf32>
    %135 = arith.addf %134, %0 : vector<16x128xf32>
    %cst_58 = arith.constant dense<0.000000e+00> : vector<16xf32>
    %136 = vector.multi_reduction <add>, %135, %cst_58 [1] : vector<16x128xf32> to vector<16xf32>
    %137 = vector.shape_cast %136 : vector<16xf32> to vector<16x1xf32>
    %cst_59 = arith.constant 1.280000e+02 : f32
    %138 = vector.broadcast %cst_59 : f32 to vector<16x1xf32>
    %139 = arith.divf %137, %138 : vector<16x1xf32>
    %140 = vector.broadcast %139 : vector<16x1xf32> to vector<16x128xf32>
    %141 = arith.subf %135, %140 : vector<16x128xf32>
    %142 = arith.mulf %141, %141 : vector<16x128xf32>
    %cst_60 = arith.constant dense<0.000000e+00> : vector<16xf32>
    %143 = vector.multi_reduction <add>, %142, %cst_60 [1] : vector<16x128xf32> to vector<16xf32>
    %144 = vector.shape_cast %143 : vector<16xf32> to vector<16x1xf32>
    %cst_61 = arith.constant 0.00787401571 : f32
    %145 = vector.broadcast %cst_61 : f32 to vector<16x1xf32>
    %146 = arith.mulf %144, %145 : vector<16x1xf32>
    %147 = math.sqrt %146 : vector<16x1xf32>
    %cst_62 = arith.constant 1.000000e-03 : f32
    %148 = vector.broadcast %cst_62 : f32 to vector<16x1xf32>
    %149 = arith.addf %147, %148 : vector<16x1xf32>
    %150 = tpu.reciprocal %149 {approx = true} : vector<16x1xf32> -> vector<16x1xf32>
    %151 = vector.broadcast %139 : vector<16x1xf32> to vector<16x128xf32>
    %152 = arith.subf %135, %151 : vector<16x128xf32>
    %153 = vector.broadcast %150 : vector<16x1xf32> to vector<16x128xf32>
    %154 = arith.mulf %152, %153 : vector<16x128xf32>
    %155 = vector.broadcast %51 : vector<1x128xf32> to vector<16x128xf32>
    %156 = arith.mulf %154, %155 : vector<16x128xf32>
    %157 = vector.broadcast %53 : vector<1x128xf32> to vector<16x128xf32>
    %158 = arith.addf %156, %157 : vector<16x128xf32>
    %159 = arith.truncf %158 : vector<16x128xf32> to vector<16x128xbf16>
    %c0_63 = arith.constant 0 : index
    %c0_64 = arith.constant 0 : index
    %c0_65 = arith.constant 0 : index
    %160 = vector.load %arg6[%c0_63, %c0_64, %c0_65] : memref<2x128x64xbf16, #tpu.memory_space<vmem>>, vector<1x128x64xbf16>
    %161 = vector.shape_cast %160 : vector<1x128x64xbf16> to vector<128x64xbf16>
    %cst_66 = arith.constant dense<0.000000e+00> : vector<16x64xf32>
    %162 = tpu.matmul %159, %161, %cst_66 {dimension_numbers = #tpu.dot_dimension_numbers<[1], [0], [0], [1], [0, 0, 1, 1], [], []>} : vector<16x128xbf16>, vector<128x64xbf16>, vector<16x64xf32> -> vector<16x64xf32>
    %163 = arith.truncf %162 : vector<16x64xf32> to vector<16x64xbf16>
    %164 = vector.extract_strided_slice %37 {offsets = [0, 0], sizes = [16, 64], strides = [1, 1]} : vector<16x256xbf16> to vector<16x64xbf16>
    %165 = vector.extract_strided_slice %37 {offsets = [0, 64], sizes = [16, 64], strides = [1, 1]} : vector<16x256xbf16> to vector<16x64xbf16>
    %c0_67 = arith.constant 0 : index
    %c1 = arith.constant 1 : index
    %c0_68 = arith.constant 0 : index
    %c0_69 = arith.constant 0 : index
    %166 = vector.load %arg8[%c0_67, %c1, %c0_68, %c0_69] : memref<2x2x64x128xbf16, #tpu.memory_space<vmem>>, vector<1x1x64x128xbf16>
    %167 = vector.shape_cast %166 : vector<1x1x64x128xbf16> to vector<64x128xbf16>
    %c0_70 = arith.constant 0 : index
    %c1_71 = arith.constant 1 : index
    %c0_72 = arith.constant 0 : index
    %c0_73 = arith.constant 0 : index
    %168 = vector.load %arg9[%c0_70, %c1_71, %c0_72, %c0_73] : memref<2x2x1x128xf32, #tpu.memory_space<vmem>>, vector<1x1x1x128xf32>
    %169 = vector.shape_cast %168 : vector<1x1x1x128xf32> to vector<1x128xf32>
    %c0_74 = arith.constant 0 : index
    %c1_75 = arith.constant 1 : index
    %c0_76 = arith.constant 0 : index
    %c0_77 = arith.constant 0 : index
    %170 = vector.load %arg10[%c0_74, %c1_75, %c0_76, %c0_77] : memref<2x2x1x128xf32, #tpu.memory_space<vmem>>, vector<1x1x1x128xf32>
    %171 = vector.shape_cast %170 : vector<1x1x1x128xf32> to vector<1x128xf32>
    %c0_78 = arith.constant 0 : index
    %c1_79 = arith.constant 1 : index
    %c0_80 = arith.constant 0 : index
    %c0_81 = arith.constant 0 : index
    %172 = vector.load %arg11[%c0_78, %c1_79, %c0_80, %c0_81] : memref<2x2x1x128xf32, #tpu.memory_space<vmem>>, vector<1x1x1x128xf32>
    %173 = vector.shape_cast %172 : vector<1x1x1x128xf32> to vector<1x128xf32>
    %174 = vector.extract_strided_slice %163 {offsets = [0, 0], sizes = [8, 64], strides = [1, 1]} : vector<16x64xbf16> to vector<8x64xbf16>
    %175 = vector.extract_strided_slice %164 {offsets = [0, 0], sizes = [8, 64], strides = [1, 1]} : vector<16x64xbf16> to vector<8x64xbf16>
    %176 = vector.extract_strided_slice %165 {offsets = [0, 0], sizes = [8, 64], strides = [1, 1]} : vector<16x64xbf16> to vector<8x64xbf16>
    %177 = vector.extract_strided_slice %174 {offsets = [0, 0], sizes = [8, 32], strides = [1, 1]} : vector<8x64xbf16> to vector<8x32xbf16>
    %178 = vector.extract_strided_slice %175 {offsets = [0, 0], sizes = [8, 32], strides = [1, 1]} : vector<8x64xbf16> to vector<8x32xbf16>
    %179 = vector.extract_strided_slice %176 {offsets = [0, 0], sizes = [8, 32], strides = [1, 1]} : vector<8x64xbf16> to vector<8x32xbf16>
    %cst_82 = arith.constant dense<0.000000e+00> : vector<8x8xf32>
    %180 = tpu.matmul %177, %178, %cst_82 {dimension_numbers = #tpu.dot_dimension_numbers<[1], [1], [0], [0], [0, 0, 1, 0], [], []>} : vector<8x32xbf16>, vector<8x32xbf16>, vector<8x8xf32> -> vector<8x8xf32>
    %181 = vector.broadcast %20 : vector<1x8xf32> to vector<8x8xf32>
    %182 = arith.addf %180, %181 : vector<8x8xf32>
    %cst_83 = arith.constant dense<0xFF800000> : vector<8xf32>
    %183 = vector.multi_reduction <maximumf>, %182, %cst_83 [1] : vector<8x8xf32> to vector<8xf32>
    %184 = vector.shape_cast %183 : vector<8xf32> to vector<8x1xf32>
    %185 = vector.broadcast %184 : vector<8x1xf32> to vector<8x8xf32>
    %186 = arith.subf %182, %185 : vector<8x8xf32>
    %187 = math.exp %186 : vector<8x8xf32>
    %cst_84 = arith.constant dense<0.000000e+00> : vector<8xf32>
    %188 = vector.multi_reduction <add>, %187, %cst_84 [1] : vector<8x8xf32> to vector<8xf32>
    %189 = vector.shape_cast %188 : vector<8xf32> to vector<8x1xf32>
    %190 = tpu.reciprocal %189 {approx = true} : vector<8x1xf32> -> vector<8x1xf32>
    %191 = vector.broadcast %190 : vector<8x1xf32> to vector<8x8xf32>
    %192 = arith.mulf %187, %191 : vector<8x8xf32>
    %193 = arith.truncf %192 : vector<8x8xf32> to vector<8x8xbf16>
    %cst_85 = arith.constant dense<0.000000e+00> : vector<8x32xf32>
    %194 = tpu.matmul %193, %179, %cst_85 {dimension_numbers = #tpu.dot_dimension_numbers<[1], [0], [0], [1], [0, 0, 1, 1], [], []>} : vector<8x8xbf16>, vector<8x32xbf16>, vector<8x32xf32> -> vector<8x32xf32>
    %195 = vector.extract_strided_slice %174 {offsets = [0, 32], sizes = [8, 32], strides = [1, 1]} : vector<8x64xbf16> to vector<8x32xbf16>
    %196 = vector.extract_strided_slice %175 {offsets = [0, 32], sizes = [8, 32], strides = [1, 1]} : vector<8x64xbf16> to vector<8x32xbf16>
    %197 = vector.extract_strided_slice %176 {offsets = [0, 32], sizes = [8, 32], strides = [1, 1]} : vector<8x64xbf16> to vector<8x32xbf16>
    %cst_86 = arith.constant dense<0.000000e+00> : vector<8x8xf32>
    %198 = tpu.matmul %195, %196, %cst_86 {dimension_numbers = #tpu.dot_dimension_numbers<[1], [1], [0], [0], [0, 0, 1, 0], [], []>} : vector<8x32xbf16>, vector<8x32xbf16>, vector<8x8xf32> -> vector<8x8xf32>
    %199 = vector.broadcast %20 : vector<1x8xf32> to vector<8x8xf32>
    %200 = arith.addf %198, %199 : vector<8x8xf32>
    %cst_87 = arith.constant dense<0xFF800000> : vector<8xf32>
    %201 = vector.multi_reduction <maximumf>, %200, %cst_87 [1] : vector<8x8xf32> to vector<8xf32>
    %202 = vector.shape_cast %201 : vector<8xf32> to vector<8x1xf32>
    %203 = vector.broadcast %202 : vector<8x1xf32> to vector<8x8xf32>
    %204 = arith.subf %200, %203 : vector<8x8xf32>
    %205 = math.exp %204 : vector<8x8xf32>
    %cst_88 = arith.constant dense<0.000000e+00> : vector<8xf32>
    %206 = vector.multi_reduction <add>, %205, %cst_88 [1] : vector<8x8xf32> to vector<8xf32>
    %207 = vector.shape_cast %206 : vector<8xf32> to vector<8x1xf32>
    %208 = tpu.reciprocal %207 {approx = true} : vector<8x1xf32> -> vector<8x1xf32>
    %209 = vector.broadcast %208 : vector<8x1xf32> to vector<8x8xf32>
    %210 = arith.mulf %205, %209 : vector<8x8xf32>
    %211 = arith.truncf %210 : vector<8x8xf32> to vector<8x8xbf16>
    %cst_89 = arith.constant dense<0.000000e+00> : vector<8x32xf32>
    %212 = tpu.matmul %211, %197, %cst_89 {dimension_numbers = #tpu.dot_dimension_numbers<[1], [0], [0], [1], [0, 0, 1, 1], [], []>} : vector<8x8xbf16>, vector<8x32xbf16>, vector<8x32xf32> -> vector<8x32xf32>
    %213 = tpu.concatenate %194, %212 in 1 : vector<8x32xf32>, vector<8x32xf32> -> vector<8x64xf32>
    %214 = vector.extract_strided_slice %163 {offsets = [8, 0], sizes = [8, 64], strides = [1, 1]} : vector<16x64xbf16> to vector<8x64xbf16>
    %215 = vector.extract_strided_slice %164 {offsets = [8, 0], sizes = [8, 64], strides = [1, 1]} : vector<16x64xbf16> to vector<8x64xbf16>
    %216 = vector.extract_strided_slice %165 {offsets = [8, 0], sizes = [8, 64], strides = [1, 1]} : vector<16x64xbf16> to vector<8x64xbf16>
    %217 = vector.extract_strided_slice %214 {offsets = [0, 0], sizes = [8, 32], strides = [1, 1]} : vector<8x64xbf16> to vector<8x32xbf16>
    %218 = vector.extract_strided_slice %215 {offsets = [0, 0], sizes = [8, 32], strides = [1, 1]} : vector<8x64xbf16> to vector<8x32xbf16>
    %219 = vector.extract_strided_slice %216 {offsets = [0, 0], sizes = [8, 32], strides = [1, 1]} : vector<8x64xbf16> to vector<8x32xbf16>
    %cst_90 = arith.constant dense<0.000000e+00> : vector<8x8xf32>
    %220 = tpu.matmul %217, %218, %cst_90 {dimension_numbers = #tpu.dot_dimension_numbers<[1], [1], [0], [0], [0, 0, 1, 0], [], []>} : vector<8x32xbf16>, vector<8x32xbf16>, vector<8x8xf32> -> vector<8x8xf32>
    %221 = vector.broadcast %34 : vector<1x8xf32> to vector<8x8xf32>
    %222 = arith.addf %220, %221 : vector<8x8xf32>
    %cst_91 = arith.constant dense<0xFF800000> : vector<8xf32>
    %223 = vector.multi_reduction <maximumf>, %222, %cst_91 [1] : vector<8x8xf32> to vector<8xf32>
    %224 = vector.shape_cast %223 : vector<8xf32> to vector<8x1xf32>
    %225 = vector.broadcast %224 : vector<8x1xf32> to vector<8x8xf32>
    %226 = arith.subf %222, %225 : vector<8x8xf32>
    %227 = math.exp %226 : vector<8x8xf32>
    %cst_92 = arith.constant dense<0.000000e+00> : vector<8xf32>
    %228 = vector.multi_reduction <add>, %227, %cst_92 [1] : vector<8x8xf32> to vector<8xf32>
    %229 = vector.shape_cast %228 : vector<8xf32> to vector<8x1xf32>
    %230 = tpu.reciprocal %229 {approx = true} : vector<8x1xf32> -> vector<8x1xf32>
    %231 = vector.broadcast %230 : vector<8x1xf32> to vector<8x8xf32>
    %232 = arith.mulf %227, %231 : vector<8x8xf32>
    %233 = arith.truncf %232 : vector<8x8xf32> to vector<8x8xbf16>
    %cst_93 = arith.constant dense<0.000000e+00> : vector<8x32xf32>
    %234 = tpu.matmul %233, %219, %cst_93 {dimension_numbers = #tpu.dot_dimension_numbers<[1], [0], [0], [1], [0, 0, 1, 1], [], []>} : vector<8x8xbf16>, vector<8x32xbf16>, vector<8x32xf32> -> vector<8x32xf32>
    %235 = vector.extract_strided_slice %214 {offsets = [0, 32], sizes = [8, 32], strides = [1, 1]} : vector<8x64xbf16> to vector<8x32xbf16>
    %236 = vector.extract_strided_slice %215 {offsets = [0, 32], sizes = [8, 32], strides = [1, 1]} : vector<8x64xbf16> to vector<8x32xbf16>
    %237 = vector.extract_strided_slice %216 {offsets = [0, 32], sizes = [8, 32], strides = [1, 1]} : vector<8x64xbf16> to vector<8x32xbf16>
    %cst_94 = arith.constant dense<0.000000e+00> : vector<8x8xf32>
    %238 = tpu.matmul %235, %236, %cst_94 {dimension_numbers = #tpu.dot_dimension_numbers<[1], [1], [0], [0], [0, 0, 1, 0], [], []>} : vector<8x32xbf16>, vector<8x32xbf16>, vector<8x8xf32> -> vector<8x8xf32>
    %239 = vector.broadcast %34 : vector<1x8xf32> to vector<8x8xf32>
    %240 = arith.addf %238, %239 : vector<8x8xf32>
    %cst_95 = arith.constant dense<0xFF800000> : vector<8xf32>
    %241 = vector.multi_reduction <maximumf>, %240, %cst_95 [1] : vector<8x8xf32> to vector<8xf32>
    %242 = vector.shape_cast %241 : vector<8xf32> to vector<8x1xf32>
    %243 = vector.broadcast %242 : vector<8x1xf32> to vector<8x8xf32>
    %244 = arith.subf %240, %243 : vector<8x8xf32>
    %245 = math.exp %244 : vector<8x8xf32>
    %cst_96 = arith.constant dense<0.000000e+00> : vector<8xf32>
    %246 = vector.multi_reduction <add>, %245, %cst_96 [1] : vector<8x8xf32> to vector<8xf32>
    %247 = vector.shape_cast %246 : vector<8xf32> to vector<8x1xf32>
    %248 = tpu.reciprocal %247 {approx = true} : vector<8x1xf32> -> vector<8x1xf32>
    %249 = vector.broadcast %248 : vector<8x1xf32> to vector<8x8xf32>
    %250 = arith.mulf %245, %249 : vector<8x8xf32>
    %251 = arith.truncf %250 : vector<8x8xf32> to vector<8x8xbf16>
    %cst_97 = arith.constant dense<0.000000e+00> : vector<8x32xf32>
    %252 = tpu.matmul %251, %237, %cst_97 {dimension_numbers = #tpu.dot_dimension_numbers<[1], [0], [0], [1], [0, 0, 1, 1], [], []>} : vector<8x8xbf16>, vector<8x32xbf16>, vector<8x32xf32> -> vector<8x32xf32>
    %253 = tpu.concatenate %234, %252 in 1 : vector<8x32xf32>, vector<8x32xf32> -> vector<8x64xf32>
    %254 = tpu.concatenate %213, %253 in 0 : vector<8x64xf32>, vector<8x64xf32> -> vector<16x64xf32>
    %255 = arith.truncf %254 : vector<16x64xf32> to vector<16x64xbf16>
    %cst_98 = arith.constant dense<0.000000e+00> : vector<16x128xf32>
    %256 = tpu.matmul %255, %167, %cst_98 {dimension_numbers = #tpu.dot_dimension_numbers<[1], [0], [0], [1], [0, 0, 1, 1], [], []>} : vector<16x64xbf16>, vector<64x128xbf16>, vector<16x128xf32> -> vector<16x128xf32>
    %257 = vector.broadcast %169 : vector<1x128xf32> to vector<16x128xf32>
    %258 = arith.addf %256, %257 : vector<16x128xf32>
    %259 = arith.addf %258, %158 : vector<16x128xf32>
    %cst_99 = arith.constant dense<0.000000e+00> : vector<16xf32>
    %260 = vector.multi_reduction <add>, %259, %cst_99 [1] : vector<16x128xf32> to vector<16xf32>
    %261 = vector.shape_cast %260 : vector<16xf32> to vector<16x1xf32>
    %cst_100 = arith.constant 1.280000e+02 : f32
    %262 = vector.broadcast %cst_100 : f32 to vector<16x1xf32>
    %263 = arith.divf %261, %262 : vector<16x1xf32>
    %264 = vector.broadcast %263 : vector<16x1xf32> to vector<16x128xf32>
    %265 = arith.subf %259, %264 : vector<16x128xf32>
    %266 = arith.mulf %265, %265 : vector<16x128xf32>
    %cst_101 = arith.constant dense<0.000000e+00> : vector<16xf32>
    %267 = vector.multi_reduction <add>, %266, %cst_101 [1] : vector<16x128xf32> to vector<16xf32>
    %268 = vector.shape_cast %267 : vector<16xf32> to vector<16x1xf32>
    %cst_102 = arith.constant 0.00787401571 : f32
    %269 = vector.broadcast %cst_102 : f32 to vector<16x1xf32>
    %270 = arith.mulf %268, %269 : vector<16x1xf32>
    %271 = math.sqrt %270 : vector<16x1xf32>
    %cst_103 = arith.constant 1.000000e-03 : f32
    %272 = vector.broadcast %cst_103 : f32 to vector<16x1xf32>
    %273 = arith.addf %271, %272 : vector<16x1xf32>
    %274 = tpu.reciprocal %273 {approx = true} : vector<16x1xf32> -> vector<16x1xf32>
    %275 = vector.broadcast %263 : vector<16x1xf32> to vector<16x128xf32>
    %276 = arith.subf %259, %275 : vector<16x128xf32>
    %277 = vector.broadcast %274 : vector<16x1xf32> to vector<16x128xf32>
    %278 = arith.mulf %276, %277 : vector<16x128xf32>
    %279 = vector.broadcast %171 : vector<1x128xf32> to vector<16x128xf32>
    %280 = arith.mulf %278, %279 : vector<16x128xf32>
    %281 = vector.broadcast %173 : vector<1x128xf32> to vector<16x128xf32>
    %282 = arith.addf %280, %281 : vector<16x128xf32>
    %283 = arith.truncf %282 : vector<16x128xf32> to vector<16x128xbf16>
    %c0_104 = arith.constant 0 : index
    %c0_105 = arith.constant 0 : index
    %c0_106 = arith.constant 0 : index
    %284 = vector.load %arg12[%c0_104, %c0_105, %c0_106] : memref<2x128x256xbf16, #tpu.memory_space<vmem>>, vector<1x128x256xbf16>
    %285 = vector.shape_cast %284 : vector<1x128x256xbf16> to vector<128x256xbf16>
    %cst_107 = arith.constant dense<0.000000e+00> : vector<16x256xf32>
    %286 = tpu.matmul %283, %285, %cst_107 {dimension_numbers = #tpu.dot_dimension_numbers<[1], [0], [0], [1], [0, 0, 1, 1], [], []>} : vector<16x128xbf16>, vector<128x256xbf16>, vector<16x256xf32> -> vector<16x256xf32>
    %c0_108 = arith.constant 0 : index
    %c0_109 = arith.constant 0 : index
    %c0_110 = arith.constant 0 : index
    %287 = vector.load %arg13[%c0_108, %c0_109, %c0_110] : memref<2x1x256xf32, #tpu.memory_space<vmem>>, vector<1x1x256xf32>
    %288 = vector.shape_cast %287 : vector<1x1x256xf32> to vector<1x256xf32>
    %289 = vector.broadcast %288 : vector<1x256xf32> to vector<16x256xf32>
    %290 = arith.addf %286, %289 : vector<16x256xf32>
    %cst_111 = arith.constant 0.000000e+00 : f32
    %291 = vector.broadcast %cst_111 : f32 to vector<16x256xf32>
    %292 = arith.maximumf %290, %291 : vector<16x256xf32>
    %293 = arith.truncf %292 : vector<16x256xf32> to vector<16x256xbf16>
    %c0_112 = arith.constant 0 : index
    %c0_113 = arith.constant 0 : index
    %c0_114 = arith.constant 0 : index
    %294 = vector.load %arg14[%c0_112, %c0_113, %c0_114] : memref<2x256x128xbf16, #tpu.memory_space<vmem>>, vector<1x256x128xbf16>
    %295 = vector.shape_cast %294 : vector<1x256x128xbf16> to vector<256x128xbf16>
    %cst_115 = arith.constant dense<0.000000e+00> : vector<16x128xf32>
    %296 = tpu.matmul %293, %295, %cst_115 {dimension_numbers = #tpu.dot_dimension_numbers<[1], [0], [0], [1], [0, 0, 1, 1], [], []>} : vector<16x256xbf16>, vector<256x128xbf16>, vector<16x128xf32> -> vector<16x128xf32>
    %c0_116 = arith.constant 0 : index
    %c0_117 = arith.constant 0 : index
    %c0_118 = arith.constant 0 : index
    %297 = vector.load %arg15[%c0_116, %c0_117, %c0_118] : memref<2x1x128xf32, #tpu.memory_space<vmem>>, vector<1x1x128xf32>
    %298 = vector.shape_cast %297 : vector<1x1x128xf32> to vector<1x128xf32>
    %299 = vector.broadcast %298 : vector<1x128xf32> to vector<16x128xf32>
    %300 = arith.addf %296, %299 : vector<16x128xf32>
    %301 = arith.addf %300, %282 : vector<16x128xf32>
    %c0_119 = arith.constant 0 : index
    %c0_120 = arith.constant 0 : index
    %c0_121 = arith.constant 0 : index
    %302 = vector.load %arg16[%c0_119, %c0_120, %c0_121] : memref<2x1x128xf32, #tpu.memory_space<vmem>>, vector<1x1x128xf32>
    %303 = vector.shape_cast %302 : vector<1x1x128xf32> to vector<1x128xf32>
    %c0_122 = arith.constant 0 : index
    %c0_123 = arith.constant 0 : index
    %c0_124 = arith.constant 0 : index
    %304 = vector.load %arg17[%c0_122, %c0_123, %c0_124] : memref<2x1x128xf32, #tpu.memory_space<vmem>>, vector<1x1x128xf32>
    %305 = vector.shape_cast %304 : vector<1x1x128xf32> to vector<1x128xf32>
    %cst_125 = arith.constant dense<0.000000e+00> : vector<16xf32>
    %306 = vector.multi_reduction <add>, %301, %cst_125 [1] : vector<16x128xf32> to vector<16xf32>
    %307 = vector.shape_cast %306 : vector<16xf32> to vector<16x1xf32>
    %cst_126 = arith.constant 1.280000e+02 : f32
    %308 = vector.broadcast %cst_126 : f32 to vector<16x1xf32>
    %309 = arith.divf %307, %308 : vector<16x1xf32>
    %310 = vector.broadcast %309 : vector<16x1xf32> to vector<16x128xf32>
    %311 = arith.subf %301, %310 : vector<16x128xf32>
    %312 = arith.mulf %311, %311 : vector<16x128xf32>
    %cst_127 = arith.constant dense<0.000000e+00> : vector<16xf32>
    %313 = vector.multi_reduction <add>, %312, %cst_127 [1] : vector<16x128xf32> to vector<16xf32>
    %314 = vector.shape_cast %313 : vector<16xf32> to vector<16x1xf32>
    %cst_128 = arith.constant 0.00787401571 : f32
    %315 = vector.broadcast %cst_128 : f32 to vector<16x1xf32>
    %316 = arith.mulf %314, %315 : vector<16x1xf32>
    %317 = math.sqrt %316 : vector<16x1xf32>
    %cst_129 = arith.constant 1.000000e-03 : f32
    %318 = vector.broadcast %cst_129 : f32 to vector<16x1xf32>
    %319 = arith.addf %317, %318 : vector<16x1xf32>
    %320 = tpu.reciprocal %319 {approx = true} : vector<16x1xf32> -> vector<16x1xf32>
    %321 = vector.broadcast %309 : vector<16x1xf32> to vector<16x128xf32>
    %322 = arith.subf %301, %321 : vector<16x128xf32>
    %323 = vector.broadcast %320 : vector<16x1xf32> to vector<16x128xf32>
    %324 = arith.mulf %322, %323 : vector<16x128xf32>
    %325 = vector.broadcast %303 : vector<1x128xf32> to vector<16x128xf32>
    %326 = arith.mulf %324, %325 : vector<16x128xf32>
    %327 = vector.broadcast %305 : vector<1x128xf32> to vector<16x128xf32>
    %328 = arith.addf %326, %327 : vector<16x128xf32>
    %329 = arith.truncf %328 : vector<16x128xf32> to vector<16x128xbf16>
    %c1_130 = arith.constant 1 : index
    %c0_131 = arith.constant 0 : index
    %c0_132 = arith.constant 0 : index
    %330 = vector.load %arg5[%c1_130, %c0_131, %c0_132] : memref<2x128x192xbf16, #tpu.memory_space<vmem>>, vector<1x128x192xbf16>
    %331 = vector.shape_cast %330 : vector<1x128x192xbf16> to vector<128x192xbf16>
    %cst_133 = arith.constant dense<0.000000e+00> : vector<16x192xf32>
    %332 = tpu.matmul %329, %331, %cst_133 {dimension_numbers = #tpu.dot_dimension_numbers<[1], [0], [0], [1], [0, 0, 1, 1], [], []>} : vector<16x128xbf16>, vector<128x192xbf16>, vector<16x192xf32> -> vector<16x192xf32>
    %333 = arith.truncf %332 : vector<16x192xf32> to vector<16x192xbf16>
    %334 = vector.extract_strided_slice %333 {offsets = [0, 0], sizes = [16, 64], strides = [1, 1]} : vector<16x192xbf16> to vector<16x64xbf16>
    %335 = vector.extract_strided_slice %333 {offsets = [0, 64], sizes = [16, 64], strides = [1, 1]} : vector<16x192xbf16> to vector<16x64xbf16>
    %336 = vector.extract_strided_slice %333 {offsets = [0, 128], sizes = [16, 64], strides = [1, 1]} : vector<16x192xbf16> to vector<16x64xbf16>
    %c1_134 = arith.constant 1 : index
    %c0_135 = arith.constant 0 : index
    %c0_136 = arith.constant 0 : index
    %c0_137 = arith.constant 0 : index
    %337 = vector.load %arg8[%c1_134, %c0_135, %c0_136, %c0_137] : memref<2x2x64x128xbf16, #tpu.memory_space<vmem>>, vector<1x1x64x128xbf16>
    %338 = vector.shape_cast %337 : vector<1x1x64x128xbf16> to vector<64x128xbf16>
    %c1_138 = arith.constant 1 : index
    %c0_139 = arith.constant 0 : index
    %c0_140 = arith.constant 0 : index
    %c0_141 = arith.constant 0 : index
    %339 = vector.load %arg9[%c1_138, %c0_139, %c0_140, %c0_141] : memref<2x2x1x128xf32, #tpu.memory_space<vmem>>, vector<1x1x1x128xf32>
    %340 = vector.shape_cast %339 : vector<1x1x1x128xf32> to vector<1x128xf32>
    %c1_142 = arith.constant 1 : index
    %c0_143 = arith.constant 0 : index
    %c0_144 = arith.constant 0 : index
    %c0_145 = arith.constant 0 : index
    %341 = vector.load %arg10[%c1_142, %c0_143, %c0_144, %c0_145] : memref<2x2x1x128xf32, #tpu.memory_space<vmem>>, vector<1x1x1x128xf32>
    %342 = vector.shape_cast %341 : vector<1x1x1x128xf32> to vector<1x128xf32>
    %c1_146 = arith.constant 1 : index
    %c0_147 = arith.constant 0 : index
    %c0_148 = arith.constant 0 : index
    %c0_149 = arith.constant 0 : index
    %343 = vector.load %arg11[%c1_146, %c0_147, %c0_148, %c0_149] : memref<2x2x1x128xf32, #tpu.memory_space<vmem>>, vector<1x1x1x128xf32>
    %344 = vector.shape_cast %343 : vector<1x1x1x128xf32> to vector<1x128xf32>
    %345 = vector.extract_strided_slice %334 {offsets = [0, 0], sizes = [8, 64], strides = [1, 1]} : vector<16x64xbf16> to vector<8x64xbf16>
    %346 = vector.extract_strided_slice %335 {offsets = [0, 0], sizes = [8, 64], strides = [1, 1]} : vector<16x64xbf16> to vector<8x64xbf16>
    %347 = vector.extract_strided_slice %336 {offsets = [0, 0], sizes = [8, 64], strides = [1, 1]} : vector<16x64xbf16> to vector<8x64xbf16>
    %348 = vector.extract_strided_slice %345 {offsets = [0, 0], sizes = [8, 32], strides = [1, 1]} : vector<8x64xbf16> to vector<8x32xbf16>
    %349 = vector.extract_strided_slice %346 {offsets = [0, 0], sizes = [8, 32], strides = [1, 1]} : vector<8x64xbf16> to vector<8x32xbf16>
    %350 = vector.extract_strided_slice %347 {offsets = [0, 0], sizes = [8, 32], strides = [1, 1]} : vector<8x64xbf16> to vector<8x32xbf16>
    %cst_150 = arith.constant dense<0.000000e+00> : vector<8x8xf32>
    %351 = tpu.matmul %348, %349, %cst_150 {dimension_numbers = #tpu.dot_dimension_numbers<[1], [1], [0], [0], [0, 0, 1, 0], [], []>} : vector<8x32xbf16>, vector<8x32xbf16>, vector<8x8xf32> -> vector<8x8xf32>
    %352 = arith.addf %351, %17 : vector<8x8xf32>
    %cst_151 = arith.constant dense<0xFF800000> : vector<8xf32>
    %353 = vector.multi_reduction <maximumf>, %352, %cst_151 [1] : vector<8x8xf32> to vector<8xf32>
    %354 = vector.shape_cast %353 : vector<8xf32> to vector<8x1xf32>
    %355 = vector.broadcast %354 : vector<8x1xf32> to vector<8x8xf32>
    %356 = arith.subf %352, %355 : vector<8x8xf32>
    %357 = math.exp %356 : vector<8x8xf32>
    %cst_152 = arith.constant dense<0.000000e+00> : vector<8xf32>
    %358 = vector.multi_reduction <add>, %357, %cst_152 [1] : vector<8x8xf32> to vector<8xf32>
    %359 = vector.shape_cast %358 : vector<8xf32> to vector<8x1xf32>
    %360 = tpu.reciprocal %359 {approx = true} : vector<8x1xf32> -> vector<8x1xf32>
    %361 = vector.broadcast %360 : vector<8x1xf32> to vector<8x8xf32>
    %362 = arith.mulf %357, %361 : vector<8x8xf32>
    %363 = arith.truncf %362 : vector<8x8xf32> to vector<8x8xbf16>
    %cst_153 = arith.constant dense<0.000000e+00> : vector<8x32xf32>
    %364 = tpu.matmul %363, %350, %cst_153 {dimension_numbers = #tpu.dot_dimension_numbers<[1], [0], [0], [1], [0, 0, 1, 1], [], []>} : vector<8x8xbf16>, vector<8x32xbf16>, vector<8x32xf32> -> vector<8x32xf32>
    %365 = vector.extract_strided_slice %345 {offsets = [0, 32], sizes = [8, 32], strides = [1, 1]} : vector<8x64xbf16> to vector<8x32xbf16>
    %366 = vector.extract_strided_slice %346 {offsets = [0, 32], sizes = [8, 32], strides = [1, 1]} : vector<8x64xbf16> to vector<8x32xbf16>
    %367 = vector.extract_strided_slice %347 {offsets = [0, 32], sizes = [8, 32], strides = [1, 1]} : vector<8x64xbf16> to vector<8x32xbf16>
    %cst_154 = arith.constant dense<0.000000e+00> : vector<8x8xf32>
    %368 = tpu.matmul %365, %366, %cst_154 {dimension_numbers = #tpu.dot_dimension_numbers<[1], [1], [0], [0], [0, 0, 1, 0], [], []>} : vector<8x32xbf16>, vector<8x32xbf16>, vector<8x8xf32> -> vector<8x8xf32>
    %369 = arith.addf %368, %17 : vector<8x8xf32>
    %cst_155 = arith.constant dense<0xFF800000> : vector<8xf32>
    %370 = vector.multi_reduction <maximumf>, %369, %cst_155 [1] : vector<8x8xf32> to vector<8xf32>
    %371 = vector.shape_cast %370 : vector<8xf32> to vector<8x1xf32>
    %372 = vector.broadcast %371 : vector<8x1xf32> to vector<8x8xf32>
    %373 = arith.subf %369, %372 : vector<8x8xf32>
    %374 = math.exp %373 : vector<8x8xf32>
    %cst_156 = arith.constant dense<0.000000e+00> : vector<8xf32>
    %375 = vector.multi_reduction <add>, %374, %cst_156 [1] : vector<8x8xf32> to vector<8xf32>
    %376 = vector.shape_cast %375 : vector<8xf32> to vector<8x1xf32>
    %377 = tpu.reciprocal %376 {approx = true} : vector<8x1xf32> -> vector<8x1xf32>
    %378 = vector.broadcast %377 : vector<8x1xf32> to vector<8x8xf32>
    %379 = arith.mulf %374, %378 : vector<8x8xf32>
    %380 = arith.truncf %379 : vector<8x8xf32> to vector<8x8xbf16>
    %cst_157 = arith.constant dense<0.000000e+00> : vector<8x32xf32>
    %381 = tpu.matmul %380, %367, %cst_157 {dimension_numbers = #tpu.dot_dimension_numbers<[1], [0], [0], [1], [0, 0, 1, 1], [], []>} : vector<8x8xbf16>, vector<8x32xbf16>, vector<8x32xf32> -> vector<8x32xf32>
    %382 = tpu.concatenate %364, %381 in 1 : vector<8x32xf32>, vector<8x32xf32> -> vector<8x64xf32>
    %383 = vector.extract_strided_slice %334 {offsets = [8, 0], sizes = [8, 64], strides = [1, 1]} : vector<16x64xbf16> to vector<8x64xbf16>
    %384 = vector.extract_strided_slice %335 {offsets = [8, 0], sizes = [8, 64], strides = [1, 1]} : vector<16x64xbf16> to vector<8x64xbf16>
    %385 = vector.extract_strided_slice %336 {offsets = [8, 0], sizes = [8, 64], strides = [1, 1]} : vector<16x64xbf16> to vector<8x64xbf16>
    %386 = vector.extract_strided_slice %383 {offsets = [0, 0], sizes = [8, 32], strides = [1, 1]} : vector<8x64xbf16> to vector<8x32xbf16>
    %387 = vector.extract_strided_slice %384 {offsets = [0, 0], sizes = [8, 32], strides = [1, 1]} : vector<8x64xbf16> to vector<8x32xbf16>
    %388 = vector.extract_strided_slice %385 {offsets = [0, 0], sizes = [8, 32], strides = [1, 1]} : vector<8x64xbf16> to vector<8x32xbf16>
    %cst_158 = arith.constant dense<0.000000e+00> : vector<8x8xf32>
    %389 = tpu.matmul %386, %387, %cst_158 {dimension_numbers = #tpu.dot_dimension_numbers<[1], [1], [0], [0], [0, 0, 1, 0], [], []>} : vector<8x32xbf16>, vector<8x32xbf16>, vector<8x8xf32> -> vector<8x8xf32>
    %390 = arith.addf %389, %31 : vector<8x8xf32>
    %cst_159 = arith.constant dense<0xFF800000> : vector<8xf32>
    %391 = vector.multi_reduction <maximumf>, %390, %cst_159 [1] : vector<8x8xf32> to vector<8xf32>
    %392 = vector.shape_cast %391 : vector<8xf32> to vector<8x1xf32>
    %393 = vector.broadcast %392 : vector<8x1xf32> to vector<8x8xf32>
    %394 = arith.subf %390, %393 : vector<8x8xf32>
    %395 = math.exp %394 : vector<8x8xf32>
    %cst_160 = arith.constant dense<0.000000e+00> : vector<8xf32>
    %396 = vector.multi_reduction <add>, %395, %cst_160 [1] : vector<8x8xf32> to vector<8xf32>
    %397 = vector.shape_cast %396 : vector<8xf32> to vector<8x1xf32>
    %398 = tpu.reciprocal %397 {approx = true} : vector<8x1xf32> -> vector<8x1xf32>
    %399 = vector.broadcast %398 : vector<8x1xf32> to vector<8x8xf32>
    %400 = arith.mulf %395, %399 : vector<8x8xf32>
    %401 = arith.truncf %400 : vector<8x8xf32> to vector<8x8xbf16>
    %cst_161 = arith.constant dense<0.000000e+00> : vector<8x32xf32>
    %402 = tpu.matmul %401, %388, %cst_161 {dimension_numbers = #tpu.dot_dimension_numbers<[1], [0], [0], [1], [0, 0, 1, 1], [], []>} : vector<8x8xbf16>, vector<8x32xbf16>, vector<8x32xf32> -> vector<8x32xf32>
    %403 = vector.extract_strided_slice %383 {offsets = [0, 32], sizes = [8, 32], strides = [1, 1]} : vector<8x64xbf16> to vector<8x32xbf16>
    %404 = vector.extract_strided_slice %384 {offsets = [0, 32], sizes = [8, 32], strides = [1, 1]} : vector<8x64xbf16> to vector<8x32xbf16>
    %405 = vector.extract_strided_slice %385 {offsets = [0, 32], sizes = [8, 32], strides = [1, 1]} : vector<8x64xbf16> to vector<8x32xbf16>
    %cst_162 = arith.constant dense<0.000000e+00> : vector<8x8xf32>
    %406 = tpu.matmul %403, %404, %cst_162 {dimension_numbers = #tpu.dot_dimension_numbers<[1], [1], [0], [0], [0, 0, 1, 0], [], []>} : vector<8x32xbf16>, vector<8x32xbf16>, vector<8x8xf32> -> vector<8x8xf32>
    %407 = arith.addf %406, %31 : vector<8x8xf32>
    %cst_163 = arith.constant dense<0xFF800000> : vector<8xf32>
    %408 = vector.multi_reduction <maximumf>, %407, %cst_163 [1] : vector<8x8xf32> to vector<8xf32>
    %409 = vector.shape_cast %408 : vector<8xf32> to vector<8x1xf32>
    %410 = vector.broadcast %409 : vector<8x1xf32> to vector<8x8xf32>
    %411 = arith.subf %407, %410 : vector<8x8xf32>
    %412 = math.exp %411 : vector<8x8xf32>
    %cst_164 = arith.constant dense<0.000000e+00> : vector<8xf32>
    %413 = vector.multi_reduction <add>, %412, %cst_164 [1] : vector<8x8xf32> to vector<8xf32>
    %414 = vector.shape_cast %413 : vector<8xf32> to vector<8x1xf32>
    %415 = tpu.reciprocal %414 {approx = true} : vector<8x1xf32> -> vector<8x1xf32>
    %416 = vector.broadcast %415 : vector<8x1xf32> to vector<8x8xf32>
    %417 = arith.mulf %412, %416 : vector<8x8xf32>
    %418 = arith.truncf %417 : vector<8x8xf32> to vector<8x8xbf16>
    %cst_165 = arith.constant dense<0.000000e+00> : vector<8x32xf32>
    %419 = tpu.matmul %418, %405, %cst_165 {dimension_numbers = #tpu.dot_dimension_numbers<[1], [0], [0], [1], [0, 0, 1, 1], [], []>} : vector<8x8xbf16>, vector<8x32xbf16>, vector<8x32xf32> -> vector<8x32xf32>
    %420 = tpu.concatenate %402, %419 in 1 : vector<8x32xf32>, vector<8x32xf32> -> vector<8x64xf32>
    %421 = tpu.concatenate %382, %420 in 0 : vector<8x64xf32>, vector<8x64xf32> -> vector<16x64xf32>
    %422 = arith.truncf %421 : vector<16x64xf32> to vector<16x64xbf16>
    %cst_166 = arith.constant dense<0.000000e+00> : vector<16x128xf32>
    %423 = tpu.matmul %422, %338, %cst_166 {dimension_numbers = #tpu.dot_dimension_numbers<[1], [0], [0], [1], [0, 0, 1, 1], [], []>} : vector<16x64xbf16>, vector<64x128xbf16>, vector<16x128xf32> -> vector<16x128xf32>
    %424 = vector.broadcast %340 : vector<1x128xf32> to vector<16x128xf32>
    %425 = arith.addf %423, %424 : vector<16x128xf32>
    %426 = arith.addf %425, %328 : vector<16x128xf32>
    %cst_167 = arith.constant dense<0.000000e+00> : vector<16xf32>
    %427 = vector.multi_reduction <add>, %426, %cst_167 [1] : vector<16x128xf32> to vector<16xf32>
    %428 = vector.shape_cast %427 : vector<16xf32> to vector<16x1xf32>
    %cst_168 = arith.constant 1.280000e+02 : f32
    %429 = vector.broadcast %cst_168 : f32 to vector<16x1xf32>
    %430 = arith.divf %428, %429 : vector<16x1xf32>
    %431 = vector.broadcast %430 : vector<16x1xf32> to vector<16x128xf32>
    %432 = arith.subf %426, %431 : vector<16x128xf32>
    %433 = arith.mulf %432, %432 : vector<16x128xf32>
    %cst_169 = arith.constant dense<0.000000e+00> : vector<16xf32>
    %434 = vector.multi_reduction <add>, %433, %cst_169 [1] : vector<16x128xf32> to vector<16xf32>
    %435 = vector.shape_cast %434 : vector<16xf32> to vector<16x1xf32>
    %cst_170 = arith.constant 0.00787401571 : f32
    %436 = vector.broadcast %cst_170 : f32 to vector<16x1xf32>
    %437 = arith.mulf %435, %436 : vector<16x1xf32>
    %438 = math.sqrt %437 : vector<16x1xf32>
    %cst_171 = arith.constant 1.000000e-03 : f32
    %439 = vector.broadcast %cst_171 : f32 to vector<16x1xf32>
    %440 = arith.addf %438, %439 : vector<16x1xf32>
    %441 = tpu.reciprocal %440 {approx = true} : vector<16x1xf32> -> vector<16x1xf32>
    %442 = vector.broadcast %430 : vector<16x1xf32> to vector<16x128xf32>
    %443 = arith.subf %426, %442 : vector<16x128xf32>
    %444 = vector.broadcast %441 : vector<16x1xf32> to vector<16x128xf32>
    %445 = arith.mulf %443, %444 : vector<16x128xf32>
    %446 = vector.broadcast %342 : vector<1x128xf32> to vector<16x128xf32>
    %447 = arith.mulf %445, %446 : vector<16x128xf32>
    %448 = vector.broadcast %344 : vector<1x128xf32> to vector<16x128xf32>
    %449 = arith.addf %447, %448 : vector<16x128xf32>
    %450 = arith.truncf %449 : vector<16x128xf32> to vector<16x128xbf16>
    %c1_172 = arith.constant 1 : index
    %c0_173 = arith.constant 0 : index
    %c0_174 = arith.constant 0 : index
    %451 = vector.load %arg6[%c1_172, %c0_173, %c0_174] : memref<2x128x64xbf16, #tpu.memory_space<vmem>>, vector<1x128x64xbf16>
    %452 = vector.shape_cast %451 : vector<1x128x64xbf16> to vector<128x64xbf16>
    %cst_175 = arith.constant dense<0.000000e+00> : vector<16x64xf32>
    %453 = tpu.matmul %450, %452, %cst_175 {dimension_numbers = #tpu.dot_dimension_numbers<[1], [0], [0], [1], [0, 0, 1, 1], [], []>} : vector<16x128xbf16>, vector<128x64xbf16>, vector<16x64xf32> -> vector<16x64xf32>
    %454 = arith.truncf %453 : vector<16x64xf32> to vector<16x64xbf16>
    %455 = vector.extract_strided_slice %37 {offsets = [0, 128], sizes = [16, 64], strides = [1, 1]} : vector<16x256xbf16> to vector<16x64xbf16>
    %456 = vector.extract_strided_slice %37 {offsets = [0, 192], sizes = [16, 64], strides = [1, 1]} : vector<16x256xbf16> to vector<16x64xbf16>
    %c1_176 = arith.constant 1 : index
    %c1_177 = arith.constant 1 : index
    %c0_178 = arith.constant 0 : index
    %c0_179 = arith.constant 0 : index
    %457 = vector.load %arg8[%c1_176, %c1_177, %c0_178, %c0_179] : memref<2x2x64x128xbf16, #tpu.memory_space<vmem>>, vector<1x1x64x128xbf16>
    %458 = vector.shape_cast %457 : vector<1x1x64x128xbf16> to vector<64x128xbf16>
    %c1_180 = arith.constant 1 : index
    %c1_181 = arith.constant 1 : index
    %c0_182 = arith.constant 0 : index
    %c0_183 = arith.constant 0 : index
    %459 = vector.load %arg9[%c1_180, %c1_181, %c0_182, %c0_183] : memref<2x2x1x128xf32, #tpu.memory_space<vmem>>, vector<1x1x1x128xf32>
    %460 = vector.shape_cast %459 : vector<1x1x1x128xf32> to vector<1x128xf32>
    %c1_184 = arith.constant 1 : index
    %c1_185 = arith.constant 1 : index
    %c0_186 = arith.constant 0 : index
    %c0_187 = arith.constant 0 : index
    %461 = vector.load %arg10[%c1_184, %c1_185, %c0_186, %c0_187] : memref<2x2x1x128xf32, #tpu.memory_space<vmem>>, vector<1x1x1x128xf32>
    %462 = vector.shape_cast %461 : vector<1x1x1x128xf32> to vector<1x128xf32>
    %c1_188 = arith.constant 1 : index
    %c1_189 = arith.constant 1 : index
    %c0_190 = arith.constant 0 : index
    %c0_191 = arith.constant 0 : index
    %463 = vector.load %arg11[%c1_188, %c1_189, %c0_190, %c0_191] : memref<2x2x1x128xf32, #tpu.memory_space<vmem>>, vector<1x1x1x128xf32>
    %464 = vector.shape_cast %463 : vector<1x1x1x128xf32> to vector<1x128xf32>
    %465 = vector.extract_strided_slice %454 {offsets = [0, 0], sizes = [8, 64], strides = [1, 1]} : vector<16x64xbf16> to vector<8x64xbf16>
    %466 = vector.extract_strided_slice %455 {offsets = [0, 0], sizes = [8, 64], strides = [1, 1]} : vector<16x64xbf16> to vector<8x64xbf16>
    %467 = vector.extract_strided_slice %456 {offsets = [0, 0], sizes = [8, 64], strides = [1, 1]} : vector<16x64xbf16> to vector<8x64xbf16>
    %468 = vector.extract_strided_slice %465 {offsets = [0, 0], sizes = [8, 32], strides = [1, 1]} : vector<8x64xbf16> to vector<8x32xbf16>
    %469 = vector.extract_strided_slice %466 {offsets = [0, 0], sizes = [8, 32], strides = [1, 1]} : vector<8x64xbf16> to vector<8x32xbf16>
    %470 = vector.extract_strided_slice %467 {offsets = [0, 0], sizes = [8, 32], strides = [1, 1]} : vector<8x64xbf16> to vector<8x32xbf16>
    %cst_192 = arith.constant dense<0.000000e+00> : vector<8x8xf32>
    %471 = tpu.matmul %468, %469, %cst_192 {dimension_numbers = #tpu.dot_dimension_numbers<[1], [1], [0], [0], [0, 0, 1, 0], [], []>} : vector<8x32xbf16>, vector<8x32xbf16>, vector<8x8xf32> -> vector<8x8xf32>
    %472 = vector.broadcast %20 : vector<1x8xf32> to vector<8x8xf32>
    %473 = arith.addf %471, %472 : vector<8x8xf32>
    %cst_193 = arith.constant dense<0xFF800000> : vector<8xf32>
    %474 = vector.multi_reduction <maximumf>, %473, %cst_193 [1] : vector<8x8xf32> to vector<8xf32>
    %475 = vector.shape_cast %474 : vector<8xf32> to vector<8x1xf32>
    %476 = vector.broadcast %475 : vector<8x1xf32> to vector<8x8xf32>
    %477 = arith.subf %473, %476 : vector<8x8xf32>
    %478 = math.exp %477 : vector<8x8xf32>
    %cst_194 = arith.constant dense<0.000000e+00> : vector<8xf32>
    %479 = vector.multi_reduction <add>, %478, %cst_194 [1] : vector<8x8xf32> to vector<8xf32>
    %480 = vector.shape_cast %479 : vector<8xf32> to vector<8x1xf32>
    %481 = tpu.reciprocal %480 {approx = true} : vector<8x1xf32> -> vector<8x1xf32>
    %482 = vector.broadcast %481 : vector<8x1xf32> to vector<8x8xf32>
    %483 = arith.mulf %478, %482 : vector<8x8xf32>
    %484 = arith.truncf %483 : vector<8x8xf32> to vector<8x8xbf16>
    %cst_195 = arith.constant dense<0.000000e+00> : vector<8x32xf32>
    %485 = tpu.matmul %484, %470, %cst_195 {dimension_numbers = #tpu.dot_dimension_numbers<[1], [0], [0], [1], [0, 0, 1, 1], [], []>} : vector<8x8xbf16>, vector<8x32xbf16>, vector<8x32xf32> -> vector<8x32xf32>
    %486 = vector.extract_strided_slice %465 {offsets = [0, 32], sizes = [8, 32], strides = [1, 1]} : vector<8x64xbf16> to vector<8x32xbf16>
    %487 = vector.extract_strided_slice %466 {offsets = [0, 32], sizes = [8, 32], strides = [1, 1]} : vector<8x64xbf16> to vector<8x32xbf16>
    %488 = vector.extract_strided_slice %467 {offsets = [0, 32], sizes = [8, 32], strides = [1, 1]} : vector<8x64xbf16> to vector<8x32xbf16>
    %cst_196 = arith.constant dense<0.000000e+00> : vector<8x8xf32>
    %489 = tpu.matmul %486, %487, %cst_196 {dimension_numbers = #tpu.dot_dimension_numbers<[1], [1], [0], [0], [0, 0, 1, 0], [], []>} : vector<8x32xbf16>, vector<8x32xbf16>, vector<8x8xf32> -> vector<8x8xf32>
    %490 = vector.broadcast %20 : vector<1x8xf32> to vector<8x8xf32>
    %491 = arith.addf %489, %490 : vector<8x8xf32>
    %cst_197 = arith.constant dense<0xFF800000> : vector<8xf32>
    %492 = vector.multi_reduction <maximumf>, %491, %cst_197 [1] : vector<8x8xf32> to vector<8xf32>
    %493 = vector.shape_cast %492 : vector<8xf32> to vector<8x1xf32>
    %494 = vector.broadcast %493 : vector<8x1xf32> to vector<8x8xf32>
    %495 = arith.subf %491, %494 : vector<8x8xf32>
    %496 = math.exp %495 : vector<8x8xf32>
    %cst_198 = arith.constant dense<0.000000e+00> : vector<8xf32>
    %497 = vector.multi_reduction <add>, %496, %cst_198 [1] : vector<8x8xf32> to vector<8xf32>
    %498 = vector.shape_cast %497 : vector<8xf32> to vector<8x1xf32>
    %499 = tpu.reciprocal %498 {approx = true} : vector<8x1xf32> -> vector<8x1xf32>
    %500 = vector.broadcast %499 : vector<8x1xf32> to vector<8x8xf32>
    %501 = arith.mulf %496, %500 : vector<8x8xf32>
    %502 = arith.truncf %501 : vector<8x8xf32> to vector<8x8xbf16>
    %cst_199 = arith.constant dense<0.000000e+00> : vector<8x32xf32>
    %503 = tpu.matmul %502, %488, %cst_199 {dimension_numbers = #tpu.dot_dimension_numbers<[1], [0], [0], [1], [0, 0, 1, 1], [], []>} : vector<8x8xbf16>, vector<8x32xbf16>, vector<8x32xf32> -> vector<8x32xf32>
    %504 = tpu.concatenate %485, %503 in 1 : vector<8x32xf32>, vector<8x32xf32> -> vector<8x64xf32>
    %505 = vector.extract_strided_slice %454 {offsets = [8, 0], sizes = [8, 64], strides = [1, 1]} : vector<16x64xbf16> to vector<8x64xbf16>
    %506 = vector.extract_strided_slice %455 {offsets = [8, 0], sizes = [8, 64], strides = [1, 1]} : vector<16x64xbf16> to vector<8x64xbf16>
    %507 = vector.extract_strided_slice %456 {offsets = [8, 0], sizes = [8, 64], strides = [1, 1]} : vector<16x64xbf16> to vector<8x64xbf16>
    %508 = vector.extract_strided_slice %505 {offsets = [0, 0], sizes = [8, 32], strides = [1, 1]} : vector<8x64xbf16> to vector<8x32xbf16>
    %509 = vector.extract_strided_slice %506 {offsets = [0, 0], sizes = [8, 32], strides = [1, 1]} : vector<8x64xbf16> to vector<8x32xbf16>
    %510 = vector.extract_strided_slice %507 {offsets = [0, 0], sizes = [8, 32], strides = [1, 1]} : vector<8x64xbf16> to vector<8x32xbf16>
    %cst_200 = arith.constant dense<0.000000e+00> : vector<8x8xf32>
    %511 = tpu.matmul %508, %509, %cst_200 {dimension_numbers = #tpu.dot_dimension_numbers<[1], [1], [0], [0], [0, 0, 1, 0], [], []>} : vector<8x32xbf16>, vector<8x32xbf16>, vector<8x8xf32> -> vector<8x8xf32>
    %512 = vector.broadcast %34 : vector<1x8xf32> to vector<8x8xf32>
    %513 = arith.addf %511, %512 : vector<8x8xf32>
    %cst_201 = arith.constant dense<0xFF800000> : vector<8xf32>
    %514 = vector.multi_reduction <maximumf>, %513, %cst_201 [1] : vector<8x8xf32> to vector<8xf32>
    %515 = vector.shape_cast %514 : vector<8xf32> to vector<8x1xf32>
    %516 = vector.broadcast %515 : vector<8x1xf32> to vector<8x8xf32>
    %517 = arith.subf %513, %516 : vector<8x8xf32>
    %518 = math.exp %517 : vector<8x8xf32>
    %cst_202 = arith.constant dense<0.000000e+00> : vector<8xf32>
    %519 = vector.multi_reduction <add>, %518, %cst_202 [1] : vector<8x8xf32> to vector<8xf32>
    %520 = vector.shape_cast %519 : vector<8xf32> to vector<8x1xf32>
    %521 = tpu.reciprocal %520 {approx = true} : vector<8x1xf32> -> vector<8x1xf32>
    %522 = vector.broadcast %521 : vector<8x1xf32> to vector<8x8xf32>
    %523 = arith.mulf %518, %522 : vector<8x8xf32>
    %524 = arith.truncf %523 : vector<8x8xf32> to vector<8x8xbf16>
    %cst_203 = arith.constant dense<0.000000e+00> : vector<8x32xf32>
    %525 = tpu.matmul %524, %510, %cst_203 {dimension_numbers = #tpu.dot_dimension_numbers<[1], [0], [0], [1], [0, 0, 1, 1], [], []>} : vector<8x8xbf16>, vector<8x32xbf16>, vector<8x32xf32> -> vector<8x32xf32>
    %526 = vector.extract_strided_slice %505 {offsets = [0, 32], sizes = [8, 32], strides = [1, 1]} : vector<8x64xbf16> to vector<8x32xbf16>
    %527 = vector.extract_strided_slice %506 {offsets = [0, 32], sizes = [8, 32], strides = [1, 1]} : vector<8x64xbf16> to vector<8x32xbf16>
    %528 = vector.extract_strided_slice %507 {offsets = [0, 32], sizes = [8, 32], strides = [1, 1]} : vector<8x64xbf16> to vector<8x32xbf16>
    %cst_204 = arith.constant dense<0.000000e+00> : vector<8x8xf32>
    %529 = tpu.matmul %526, %527, %cst_204 {dimension_numbers = #tpu.dot_dimension_numbers<[1], [1], [0], [0], [0, 0, 1, 0], [], []>} : vector<8x32xbf16>, vector<8x32xbf16>, vector<8x8xf32> -> vector<8x8xf32>
    %530 = vector.broadcast %34 : vector<1x8xf32> to vector<8x8xf32>
    %531 = arith.addf %529, %530 : vector<8x8xf32>
    %cst_205 = arith.constant dense<0xFF800000> : vector<8xf32>
    %532 = vector.multi_reduction <maximumf>, %531, %cst_205 [1] : vector<8x8xf32> to vector<8xf32>
    %533 = vector.shape_cast %532 : vector<8xf32> to vector<8x1xf32>
    %534 = vector.broadcast %533 : vector<8x1xf32> to vector<8x8xf32>
    %535 = arith.subf %531, %534 : vector<8x8xf32>
    %536 = math.exp %535 : vector<8x8xf32>
    %cst_206 = arith.constant dense<0.000000e+00> : vector<8xf32>
    %537 = vector.multi_reduction <add>, %536, %cst_206 [1] : vector<8x8xf32> to vector<8xf32>
    %538 = vector.shape_cast %537 : vector<8xf32> to vector<8x1xf32>
    %539 = tpu.reciprocal %538 {approx = true} : vector<8x1xf32> -> vector<8x1xf32>
    %540 = vector.broadcast %539 : vector<8x1xf32> to vector<8x8xf32>
    %541 = arith.mulf %536, %540 : vector<8x8xf32>
    %542 = arith.truncf %541 : vector<8x8xf32> to vector<8x8xbf16>
    %cst_207 = arith.constant dense<0.000000e+00> : vector<8x32xf32>
    %543 = tpu.matmul %542, %528, %cst_207 {dimension_numbers = #tpu.dot_dimension_numbers<[1], [0], [0], [1], [0, 0, 1, 1], [], []>} : vector<8x8xbf16>, vector<8x32xbf16>, vector<8x32xf32> -> vector<8x32xf32>
    %544 = tpu.concatenate %525, %543 in 1 : vector<8x32xf32>, vector<8x32xf32> -> vector<8x64xf32>
    %545 = tpu.concatenate %504, %544 in 0 : vector<8x64xf32>, vector<8x64xf32> -> vector<16x64xf32>
    %546 = arith.truncf %545 : vector<16x64xf32> to vector<16x64xbf16>
    %cst_208 = arith.constant dense<0.000000e+00> : vector<16x128xf32>
    %547 = tpu.matmul %546, %458, %cst_208 {dimension_numbers = #tpu.dot_dimension_numbers<[1], [0], [0], [1], [0, 0, 1, 1], [], []>} : vector<16x64xbf16>, vector<64x128xbf16>, vector<16x128xf32> -> vector<16x128xf32>
    %548 = vector.broadcast %460 : vector<1x128xf32> to vector<16x128xf32>
    %549 = arith.addf %547, %548 : vector<16x128xf32>
    %550 = arith.addf %549, %449 : vector<16x128xf32>
    %cst_209 = arith.constant dense<0.000000e+00> : vector<16xf32>
    %551 = vector.multi_reduction <add>, %550, %cst_209 [1] : vector<16x128xf32> to vector<16xf32>
    %552 = vector.shape_cast %551 : vector<16xf32> to vector<16x1xf32>
    %cst_210 = arith.constant 1.280000e+02 : f32
    %553 = vector.broadcast %cst_210 : f32 to vector<16x1xf32>
    %554 = arith.divf %552, %553 : vector<16x1xf32>
    %555 = vector.broadcast %554 : vector<16x1xf32> to vector<16x128xf32>
    %556 = arith.subf %550, %555 : vector<16x128xf32>
    %557 = arith.mulf %556, %556 : vector<16x128xf32>
    %cst_211 = arith.constant dense<0.000000e+00> : vector<16xf32>
    %558 = vector.multi_reduction <add>, %557, %cst_211 [1] : vector<16x128xf32> to vector<16xf32>
    %559 = vector.shape_cast %558 : vector<16xf32> to vector<16x1xf32>
    %cst_212 = arith.constant 0.00787401571 : f32
    %560 = vector.broadcast %cst_212 : f32 to vector<16x1xf32>
    %561 = arith.mulf %559, %560 : vector<16x1xf32>
    %562 = math.sqrt %561 : vector<16x1xf32>
    %cst_213 = arith.constant 1.000000e-03 : f32
    %563 = vector.broadcast %cst_213 : f32 to vector<16x1xf32>
    %564 = arith.addf %562, %563 : vector<16x1xf32>
    %565 = tpu.reciprocal %564 {approx = true} : vector<16x1xf32> -> vector<16x1xf32>
    %566 = vector.broadcast %554 : vector<16x1xf32> to vector<16x128xf32>
    %567 = arith.subf %550, %566 : vector<16x128xf32>
    %568 = vector.broadcast %565 : vector<16x1xf32> to vector<16x128xf32>
    %569 = arith.mulf %567, %568 : vector<16x128xf32>
    %570 = vector.broadcast %462 : vector<1x128xf32> to vector<16x128xf32>
    %571 = arith.mulf %569, %570 : vector<16x128xf32>
    %572 = vector.broadcast %464 : vector<1x128xf32> to vector<16x128xf32>
    %573 = arith.addf %571, %572 : vector<16x128xf32>
    %574 = arith.truncf %573 : vector<16x128xf32> to vector<16x128xbf16>
    %c1_214 = arith.constant 1 : index
    %c0_215 = arith.constant 0 : index
    %c0_216 = arith.constant 0 : index
    %575 = vector.load %arg12[%c1_214, %c0_215, %c0_216] : memref<2x128x256xbf16, #tpu.memory_space<vmem>>, vector<1x128x256xbf16>
    %576 = vector.shape_cast %575 : vector<1x128x256xbf16> to vector<128x256xbf16>
    %cst_217 = arith.constant dense<0.000000e+00> : vector<16x256xf32>
    %577 = tpu.matmul %574, %576, %cst_217 {dimension_numbers = #tpu.dot_dimension_numbers<[1], [0], [0], [1], [0, 0, 1, 1], [], []>} : vector<16x128xbf16>, vector<128x256xbf16>, vector<16x256xf32> -> vector<16x256xf32>
    %c1_218 = arith.constant 1 : index
    %c0_219 = arith.constant 0 : index
    %c0_220 = arith.constant 0 : index
    %578 = vector.load %arg13[%c1_218, %c0_219, %c0_220] : memref<2x1x256xf32, #tpu.memory_space<vmem>>, vector<1x1x256xf32>
    %579 = vector.shape_cast %578 : vector<1x1x256xf32> to vector<1x256xf32>
    %580 = vector.broadcast %579 : vector<1x256xf32> to vector<16x256xf32>
    %581 = arith.addf %577, %580 : vector<16x256xf32>
    %cst_221 = arith.constant 0.000000e+00 : f32
    %582 = vector.broadcast %cst_221 : f32 to vector<16x256xf32>
    %583 = arith.maximumf %581, %582 : vector<16x256xf32>
    %584 = arith.truncf %583 : vector<16x256xf32> to vector<16x256xbf16>
    %c1_222 = arith.constant 1 : index
    %c0_223 = arith.constant 0 : index
    %c0_224 = arith.constant 0 : index
    %585 = vector.load %arg14[%c1_222, %c0_223, %c0_224] : memref<2x256x128xbf16, #tpu.memory_space<vmem>>, vector<1x256x128xbf16>
    %586 = vector.shape_cast %585 : vector<1x256x128xbf16> to vector<256x128xbf16>
    %cst_225 = arith.constant dense<0.000000e+00> : vector<16x128xf32>
    %587 = tpu.matmul %584, %586, %cst_225 {dimension_numbers = #tpu.dot_dimension_numbers<[1], [0], [0], [1], [0, 0, 1, 1], [], []>} : vector<16x256xbf16>, vector<256x128xbf16>, vector<16x128xf32> -> vector<16x128xf32>
    %c1_226 = arith.constant 1 : index
    %c0_227 = arith.constant 0 : index
    %c0_228 = arith.constant 0 : index
    %588 = vector.load %arg15[%c1_226, %c0_227, %c0_228] : memref<2x1x128xf32, #tpu.memory_space<vmem>>, vector<1x1x128xf32>
    %589 = vector.shape_cast %588 : vector<1x1x128xf32> to vector<1x128xf32>
    %590 = vector.broadcast %589 : vector<1x128xf32> to vector<16x128xf32>
    %591 = arith.addf %587, %590 : vector<16x128xf32>
    %592 = arith.addf %591, %573 : vector<16x128xf32>
    %c1_229 = arith.constant 1 : index
    %c0_230 = arith.constant 0 : index
    %c0_231 = arith.constant 0 : index
    %593 = vector.load %arg16[%c1_229, %c0_230, %c0_231] : memref<2x1x128xf32, #tpu.memory_space<vmem>>, vector<1x1x128xf32>
    %594 = vector.shape_cast %593 : vector<1x1x128xf32> to vector<1x128xf32>
    %c1_232 = arith.constant 1 : index
    %c0_233 = arith.constant 0 : index
    %c0_234 = arith.constant 0 : index
    %595 = vector.load %arg17[%c1_232, %c0_233, %c0_234] : memref<2x1x128xf32, #tpu.memory_space<vmem>>, vector<1x1x128xf32>
    %596 = vector.shape_cast %595 : vector<1x1x128xf32> to vector<1x128xf32>
    %cst_235 = arith.constant dense<0.000000e+00> : vector<16xf32>
    %597 = vector.multi_reduction <add>, %592, %cst_235 [1] : vector<16x128xf32> to vector<16xf32>
    %598 = vector.shape_cast %597 : vector<16xf32> to vector<16x1xf32>
    %cst_236 = arith.constant 1.280000e+02 : f32
    %599 = vector.broadcast %cst_236 : f32 to vector<16x1xf32>
    %600 = arith.divf %598, %599 : vector<16x1xf32>
    %601 = vector.broadcast %600 : vector<16x1xf32> to vector<16x128xf32>
    %602 = arith.subf %592, %601 : vector<16x128xf32>
    %603 = arith.mulf %602, %602 : vector<16x128xf32>
    %cst_237 = arith.constant dense<0.000000e+00> : vector<16xf32>
    %604 = vector.multi_reduction <add>, %603, %cst_237 [1] : vector<16x128xf32> to vector<16xf32>
    %605 = vector.shape_cast %604 : vector<16xf32> to vector<16x1xf32>
    %cst_238 = arith.constant 0.00787401571 : f32
    %606 = vector.broadcast %cst_238 : f32 to vector<16x1xf32>
    %607 = arith.mulf %605, %606 : vector<16x1xf32>
    %608 = math.sqrt %607 : vector<16x1xf32>
    %cst_239 = arith.constant 1.000000e-03 : f32
    %609 = vector.broadcast %cst_239 : f32 to vector<16x1xf32>
    %610 = arith.addf %608, %609 : vector<16x1xf32>
    %611 = tpu.reciprocal %610 {approx = true} : vector<16x1xf32> -> vector<16x1xf32>
    %612 = vector.broadcast %600 : vector<16x1xf32> to vector<16x128xf32>
    %613 = arith.subf %592, %612 : vector<16x128xf32>
    %614 = vector.broadcast %611 : vector<16x1xf32> to vector<16x128xf32>
    %615 = arith.mulf %613, %614 : vector<16x128xf32>
    %616 = vector.broadcast %594 : vector<1x128xf32> to vector<16x128xf32>
    %617 = arith.mulf %615, %616 : vector<16x128xf32>
    %618 = vector.broadcast %596 : vector<1x128xf32> to vector<16x128xf32>
    %619 = arith.addf %617, %618 : vector<16x128xf32>
    %c0_240 = arith.constant 0 : index
    %c0_241 = arith.constant 0 : index
    %620 = vector.load %arg18[%c0_240, %c0_241] : memref<16x128xf32, #tpu.memory_space<vmem>>, vector<16x128xf32>
    tpu.vector_store %arg18[%c0_240, %c0_241], %619 {strides = array<i32>} : memref<16x128xf32, #tpu.memory_space<vmem>>, vector<16x128xf32>,
    return
  }
  func.func @transform_0(%arg0: i32) -> (i32, i32) {
    %c0_i32 = arith.constant 0 : i32
    %c0_i32_0 = arith.constant 0 : i32
    %c0_i32_1 = arith.constant 0 : i32
    return %c0_i32, %c0_i32_0 : i32, i32
  }
  func.func @transform_1(%arg0: i32) -> (i32, i32) {
    %c0_i32 = arith.constant 0 : i32
    %c0_i32_0 = arith.constant 0 : i32
    %c0_i32_1 = arith.constant 0 : i32
    return %c0_i32, %c0_i32_0 : i32, i32
  }
  func.func @transform_2(%arg0: i32) -> (i32, i32) {
    %c0_i32 = arith.constant 0 : i32
    %c0_i32_0 = arith.constant 0 : i32
    %c0_i32_1 = arith.constant 0 : i32
    return %c0_i32, %c0_i32_0 : i32, i32
  }
  func.func @transform_3(%arg0: i32) -> (i32, i32) {
    %c0_i32 = arith.constant 0 : i32
    %c0_i32_0 = arith.constant 0 : i32
    %c0_i32_1 = arith.constant 0 : i32
    return %c0_i32, %c0_i32_0 : i32, i32
  }
  func.func @transform_4(%arg0: i32) -> (i32, i32, i32) {
    %c0_i32 = arith.constant 0 : i32
    %c0_i32_0 = arith.constant 0 : i32
    %c0_i32_1 = arith.constant 0 : i32
    %c0_i32_2 = arith.constant 0 : i32
    return %c0_i32, %c0_i32_0, %c0_i32_1 : i32, i32, i32
  }
  func.func @transform_5(%arg0: i32) -> (i32, i32, i32) {
    %c0_i32 = arith.constant 0 : i32
    %c0_i32_0 = arith.constant 0 : i32
    %c0_i32_1 = arith.constant 0 : i32
    %c0_i32_2 = arith.constant 0 : i32
    return %c0_i32, %c0_i32_0, %c0_i32_1 : i32, i32, i32
  }
  func.func @transform_6(%arg0: i32) -> (i32, i32) {
    %c0_i32 = arith.constant 0 : i32
    %c0_i32_0 = arith.constant 0 : i32
    %c0_i32_1 = arith.constant 0 : i32
    return %c0_i32, %c0_i32_0 : i32, i32
  }
  func.func @transform_7(%arg0: i32) -> (i32, i32, i32, i32) {
    %c0_i32 = arith.constant 0 : i32
    %c0_i32_0 = arith.constant 0 : i32
    %c0_i32_1 = arith.constant 0 : i32
    %c0_i32_2 = arith.constant 0 : i32
    %c0_i32_3 = arith.constant 0 : i32
    return %c0_i32, %c0_i32_0, %c0_i32_1, %c0_i32_2 : i32, i32, i32, i32
  }
  func.func @transform_8(%arg0: i32) -> (i32, i32, i32, i32) {
    %c0_i32 = arith.constant 0 : i32
    %c0_i32_0 = arith.constant 0 : i32
    %c0_i32_1 = arith.constant 0 : i32
    %c0_i32_2 = arith.constant 0 : i32
    %c0_i32_3 = arith.constant 0 : i32
    return %c0_i32, %c0_i32_0, %c0_i32_1, %c0_i32_2 : i32, i32, i32, i32
  }
  func.func @transform_9(%arg0: i32) -> (i32, i32, i32, i32) {
    %c0_i32 = arith.constant 0 : i32
    %c0_i32_0 = arith.constant 0 : i32
    %c0_i32_1 = arith.constant 0 : i32
    %c0_i32_2 = arith.constant 0 : i32
    %c0_i32_3 = arith.constant 0 : i32
    return %c0_i32, %c0_i32_0, %c0_i32_1, %c0_i32_2 : i32, i32, i32, i32
  }
  func.func @transform_10(%arg0: i32) -> (i32, i32, i32, i32) {
    %c0_i32 = arith.constant 0 : i32
    %c0_i32_0 = arith.constant 0 : i32
    %c0_i32_1 = arith.constant 0 : i32
    %c0_i32_2 = arith.constant 0 : i32
    %c0_i32_3 = arith.constant 0 : i32
    return %c0_i32, %c0_i32_0, %c0_i32_1, %c0_i32_2 : i32, i32, i32, i32
  }
  func.func @transform_11(%arg0: i32) -> (i32, i32, i32) {
    %c0_i32 = arith.constant 0 : i32
    %c0_i32_0 = arith.constant 0 : i32
    %c0_i32_1 = arith.constant 0 : i32
    %c0_i32_2 = arith.constant 0 : i32
    return %c0_i32, %c0_i32_0, %c0_i32_1 : i32, i32, i32
  }
  func.func @transform_12(%arg0: i32) -> (i32, i32, i32) {
    %c0_i32 = arith.constant 0 : i32
    %c0_i32_0 = arith.constant 0 : i32
    %c0_i32_1 = arith.constant 0 : i32
    %c0_i32_2 = arith.constant 0 : i32
    return %c0_i32, %c0_i32_0, %c0_i32_1 : i32, i32, i32
  }
  func.func @transform_13(%arg0: i32) -> (i32, i32, i32) {
    %c0_i32 = arith.constant 0 : i32
    %c0_i32_0 = arith.constant 0 : i32
    %c0_i32_1 = arith.constant 0 : i32
    %c0_i32_2 = arith.constant 0 : i32
    return %c0_i32, %c0_i32_0, %c0_i32_1 : i32, i32, i32
  }
  func.func @transform_14(%arg0: i32) -> (i32, i32, i32) {
    %c0_i32 = arith.constant 0 : i32
    %c0_i32_0 = arith.constant 0 : i32
    %c0_i32_1 = arith.constant 0 : i32
    %c0_i32_2 = arith.constant 0 : i32
    return %c0_i32, %c0_i32_0, %c0_i32_1 : i32, i32, i32
  }
  func.func @transform_15(%arg0: i32) -> (i32, i32, i32) {
    %c0_i32 = arith.constant 0 : i32
    %c0_i32_0 = arith.constant 0 : i32
    %c0_i32_1 = arith.constant 0 : i32
    %c0_i32_2 = arith.constant 0 : i32
    return %c0_i32, %c0_i32_0, %c0_i32_1 : i32, i32, i32
  }
  func.func @transform_16(%arg0: i32) -> (i32, i32, i32) {
    %c0_i32 = arith.constant 0 : i32
    %c0_i32_0 = arith.constant 0 : i32
    %c0_i32_1 = arith.constant 0 : i32
    %c0_i32_2 = arith.constant 0 : i32
    return %c0_i32, %c0_i32_0, %c0_i32_1 : i32, i32, i32
  }
  func.func @transform_17(%arg0: i32) -> (i32, i32) {
    %c0_i32 = arith.constant 0 : i32
    %c0_i32_0 = arith.constant 0 : i32
    %c0_i32_1 = arith.constant 0 : i32
    return %c0_i32, %c0_i32_0 : i32, i32
  }
}

</mosaic_0001>

<llo_original>
// kernel: tpu_custom_call.1
$region0: #{tpu_custom_call.1}
  #allocation0 [shape = 'u32[]', space=smem, size = 0x4, offset = 0x4, fixed_abs, tag = 'smem constant byte address 0x4 - core index']
  #allocation1 [shape = 'u32[144,128]{1,0:T(1,128)}', space=vmem, size = 0x12000, scoped, tag = 'internal scratch']
  %s0 = inlined_call_operand.hbm [shape: f32[16,128], index: 0, kind: input, shape index: {}]
  %s1 = inlined_call_operand.hbm [shape: bf16[16,128], index: 1, kind: input, shape index: {}]
  %s2 = inlined_call_operand.vmem [shape: f32[2,8], index: 2, kind: input, shape index: {}]
  %s3 = inlined_call_operand.hbm [shape: f32[2,8], index: 3, kind: input, shape index: {}]
  %s4 = inlined_call_operand.vmem [shape: bf16[2,128,192], index: 4, kind: input, shape index: {}]
  %s5 = inlined_call_operand.vmem [shape: bf16[2,128,64], index: 5, kind: input, shape index: {}]
  %s6 = inlined_call_operand.vmem [shape: bf16[128,256], index: 6, kind: input, shape index: {}]
  %s7 = inlined_call_operand.hbm [shape: bf16[2,2,64,128], index: 7, kind: input, shape index: {}]
  %s8 = inlined_call_operand.vmem [shape: f32[2,2,1,128], index: 8, kind: input, shape index: {}]
  %s9 = inlined_call_operand.vmem [shape: f32[2,2,1,128], index: 9, kind: input, shape index: {}]
  %s10 = inlined_call_operand.vmem [shape: f32[2,2,1,128], index: 10, kind: input, shape index: {}]
  %s11 = inlined_call_operand.vmem [shape: bf16[2,128,256], index: 11, kind: input, shape index: {}]
  %s12 = inlined_call_operand.vmem [shape: f32[2,1,256], index: 12, kind: input, shape index: {}]
  %s13 = inlined_call_operand.vmem [shape: bf16[2,256,128], index: 13, kind: input, shape index: {}]
  %s14 = inlined_call_operand.vmem [shape: f32[2,1,128], index: 14, kind: input, shape index: {}]
  %s15 = inlined_call_operand.vmem [shape: f32[2,1,128], index: 15, kind: input, shape index: {}]
  %s16 = inlined_call_operand.vmem [shape: f32[2,1,128], index: 16, kind: input, shape index: {}]
  %s17 = inlined_call_operand.hbm [shape: f32[16,128], index: 17, kind: output, shape index: {}]
  %s18 = sld [smem:[#allocation0]]
  $region94: #{tpu_custom_call.1} parent=0
    _
  %s20 = ssub.s32 1, %s18
  %s21 = scalar_select 0, %s20, %s18
  $region1: #{tpu_custom_call.1} parent=0
    #allocation2 [shape = 'u8[8192]{0}', space=vmem, size = 0x2000, scoped, tag = 'input window, operand 0, single buffered']
    #allocation3 [shape = 's32[1]{0}', space=sflag, size = 0x4, scoped, tag = 'scoped memory for tpu_custom_call.1']
    #allocation4 [shape = 's32[1]{0}', space=sflag, size = 0x4, scoped, tag = 'scoped memory for tpu_custom_call.1']
    #allocation5 [shape = 'u8[4096]{0}', space=vmem, size = 0x1000, scoped, tag = 'input window, operand 1, single buffered']
    #allocation6 [shape = 's32[1]{0}', space=sflag, size = 0x4, scoped, tag = 'scoped memory for tpu_custom_call.1']
    #allocation7 [shape = 'u8[1024]{0}', space=vmem, size = 0x400, scoped, tag = 'input window, operand 3, single buffered']
    #allocation8 [shape = 'u8[65536]{0}', space=vmem, size = 0x10000, scoped, tag = 'input window, operand 7, single buffered']
    #allocation9 [shape = 's32[1]{0}', space=sflag, size = 0x4, scoped, tag = 'scoped memory for tpu_custom_call.1']
    #allocation10 [shape = 'u8[8192]{0}', space=vmem, size = 0x2000, scoped, tag = 'output window, operand 0, single buffered']
    %22 = vsyncpa [#allocation3], 0
    %23 = vsyncpa [#allocation6], 0
    %24 = vsyncpa [#allocation9], 0
    %25 = vsyncpa [#allocation4], 0
    // Predicated region
    $region2: #{tpu_custom_call.1} parent=1 // pred_check
      _
    $region3: #{tpu_custom_call.1} parent=1 // pred_check_branch
      %27 = sbr.rel (0) target = $region5
    $region4: #{tpu_custom_call.1} parent=1 // pred_region
      %s29 = ssub.s32 256, 256
      %30 = vsyncadd [#allocation3], %s29
      %s31 = sshll.u32 [#allocation2], 4
      %s32 = int_to_ptr.vmem [resolvable:$true] %s31
      %37 = dma.hbm_to_vmem [thread:$0]  %s0, 256, %s32, [#allocation3], 128, 128, 8
    $region5: #{tpu_custom_call.1} parent=1 // pred_fallthru
      _
    // Predicated region
    $region6: #{tpu_custom_call.1} parent=1 // pred_check
      _
    $region7: #{tpu_custom_call.1} parent=1 // pred_check_branch
      %39 = sbr.rel (0) target = $region9
    $region8: #{tpu_custom_call.1} parent=1 // pred_region
      %s41 = ssub.s32 128, 128
      %42 = vsyncadd [#allocation6], %s41
      %s43 = sshll.u32 [#allocation5], 4
      %s44 = int_to_ptr.vmem [resolvable:$true] %s43
      %49 = dma.hbm_to_vmem [thread:$0]  %s1, 128, %s44, [#allocation6], 64, 64, 4
    $region9: #{tpu_custom_call.1} parent=1 // pred_fallthru
      _
    // Predicated region
    $region10: #{tpu_custom_call.1} parent=1 // pred_check
      _
    $region11: #{tpu_custom_call.1} parent=1 // pred_check_branch
      %51 = sbr.rel (0) target = $region13
    $region12: #{tpu_custom_call.1} parent=1 // pred_region
      _
    $region13: #{tpu_custom_call.1} parent=1 // pred_fallthru
      _
    // Predicated region
    $region14: #{tpu_custom_call.1} parent=1 // pred_check
      _
    $region15: #{tpu_custom_call.1} parent=1 // pred_check_branch
      %53 = sbr.rel (0) target = $region17
    $region16: #{tpu_custom_call.1} parent=1 // pred_region
      %s55 = ssub.s32 32, 32
      %56 = vsyncadd [#allocation6], %s55
      %s58 = sshll.u32 [#allocation7], 4
      %s59 = int_to_ptr.vmem [resolvable:$true] %s58
      %61 = dma.hbm_to_vmem [thread:$0]  %s3, 32, %s59, [#allocation6]
    $region17: #{tpu_custom_call.1} parent=1 // pred_fallthru
      _
    // Predicated region
    $region18: #{tpu_custom_call.1} parent=1 // pred_check
      _
    $region19: #{tpu_custom_call.1} parent=1 // pred_check_branch
      %63 = sbr.rel (0) target = $region21
    $region20: #{tpu_custom_call.1} parent=1 // pred_region
      _
    $region21: #{tpu_custom_call.1} parent=1 // pred_fallthru
      _
    // Predicated region
    $region22: #{tpu_custom_call.1} parent=1 // pred_check
      _
    $region23: #{tpu_custom_call.1} parent=1 // pred_check_branch
      %65 = sbr.rel (0) target = $region25
    $region24: #{tpu_custom_call.1} parent=1 // pred_region
      _
    $region25: #{tpu_custom_call.1} parent=1 // pred_fallthru
      _
    // Predicated region
    $region26: #{tpu_custom_call.1} parent=1 // pred_check
      _
    $region27: #{tpu_custom_call.1} parent=1 // pred_check_branch
      %67 = sbr.rel (0) target = $region29
    $region28: #{tpu_custom_call.1} parent=1 // pred_region
      _
    $region29: #{tpu_custom_call.1} parent=1 // pred_fallthru
      _
    // Predicated region
    $region30: #{tpu_custom_call.1} parent=1 // pred_check
      _
    $region31: #{tpu_custom_call.1} parent=1 // pred_check_branch
      %69 = sbr.rel (0) target = $region33
    $region32: #{tpu_custom_call.1} parent=1 // pred_region
      %s71 = ssub.s32 2048, 2048
      %72 = vsyncadd [#allocation9], %s71
      %s73 = sshll.u32 [#allocation8], 4
      %s74 = int_to_ptr.vmem [resolvable:$true] %s73
      %79 = dma.hbm_to_vmem [thread:$0]  %s7, 2048, %s74, [#allocation9], 64, 64, 4
    $region33: #{tpu_custom_call.1} parent=1 // pred_fallthru
      _
    // Predicated region
    $region34: #{tpu_custom_call.1} parent=1 // pred_check
      _
    $region35: #{tpu_custom_call.1} parent=1 // pred_check_branch
      %81 = sbr.rel (0) target = $region37
    $region36: #{tpu_custom_call.1} parent=1 // pred_region
      _
    $region37: #{tpu_custom_call.1} parent=1 // pred_fallthru
      _
    // Predicated region
    $region38: #{tpu_custom_call.1} parent=1 // pred_check
      _
    $region39: #{tpu_custom_call.1} parent=1 // pred_check_branch
      %83 = sbr.rel (0) target = $region41
    $region40: #{tpu_custom_call.1} parent=1 // pred_region
      _
    $region41: #{tpu_custom_call.1} parent=1 // pred_fallthru
      _
    // Predicated region
    $region42: #{tpu_custom_call.1} parent=1 // pred_check
      _
    $region43: #{tpu_custom_call.1} parent=1 // pred_check_branch
      %85 = sbr.rel (0) target = $region45
    $region44: #{tpu_custom_call.1} parent=1 // pred_region
      _
    $region45: #{tpu_custom_call.1} parent=1 // pred_fallthru
      _
    // Predicated region
    $region46: #{tpu_custom_call.1} parent=1 // pred_check
      _
    $region47: #{tpu_custom_call.1} parent=1 // pred_check_branch
      %87 = sbr.rel (0) target = $region49
    $region48: #{tpu_custom_call.1} parent=1 // pred_region
      _
    $region49: #{tpu_custom_call.1} parent=1 // pred_fallthru
      _
    // Predicated region
    $region50: #{tpu_custom_call.1} parent=1 // pred_check
      _
    $region51: #{tpu_custom_call.1} parent=1 // pred_check_branch
      %89 = sbr.rel (0) target = $region53
    $region52: #{tpu_custom_call.1} parent=1 // pred_region
      _
    $region53: #{tpu_custom_call.1} parent=1 // pred_fallthru
      _
    // Predicated region
    $region54: #{tpu_custom_call.1} parent=1 // pred_check
      _
    $region55: #{tpu_custom_call.1} parent=1 // pred_check_branch
      %91 = sbr.rel (0) target = $region57
    $region56: #{tpu_custom_call.1} parent=1 // pred_region
      _
    $region57: #{tpu_custom_call.1} parent=1 // pred_fallthru
      _
    // Predicated region
    $region58: #{tpu_custom_call.1} parent=1 // pred_check
      _
    $region59: #{tpu_custom_call.1} parent=1 // pred_check_branch
      %93 = sbr.rel (0) target = $region61
    $region60: #{tpu_custom_call.1} parent=1 // pred_region
      _
    $region61: #{tpu_custom_call.1} parent=1 // pred_fallthru
      _
    // Predicated region
    $region62: #{tpu_custom_call.1} parent=1 // pred_check
      _
    $region63: #{tpu_custom_call.1} parent=1 // pred_check_branch
      %95 = sbr.rel (0) target = $region65
    $region64: #{tpu_custom_call.1} parent=1 // pred_region
      _
    $region65: #{tpu_custom_call.1} parent=1 // pred_fallthru
      _
    // Predicated region
    $region66: #{tpu_custom_call.1} parent=1 // pred_check
      _
    $region67: #{tpu_custom_call.1} parent=1 // pred_check_branch
      %97 = sbr.rel (0) target = $region69
    $region68: #{tpu_custom_call.1} parent=1 // pred_region
      _
    $region69: #{tpu_custom_call.1} parent=1 // pred_fallthru
      _
    // Predicated region
    $region70: #{tpu_custom_call.1} parent=1 // pred_check
      _
    $region71: #{tpu_custom_call.1} parent=1 // pred_check_branch
      %99 = sbr.rel (0) target = $region73
    $region72: #{tpu_custom_call.1} parent=1 // pred_region
      %100 = dma.done [#allocation3], 256
    $region73: #{tpu_custom_call.1} parent=1 // pred_fallthru
      _
    // Predicated region
    $region74: #{tpu_custom_call.1} parent=1 // pred_check
      _
    $region75: #{tpu_custom_call.1} parent=1 // pred_check_branch
      %102 = sbr.rel (0) target = $region77
    $region76: #{tpu_custom_call.1} parent=1 // pred_region
      %103 = dma.done [#allocation6], 128
    $region77: #{tpu_custom_call.1} parent=1 // pred_fallthru
      _
    // Predicated region
    $region78: #{tpu_custom_call.1} parent=1 // pred_check
      _
    $region79: #{tpu_custom_call.1} parent=1 // pred_check_branch
      %105 = sbr.rel (0) target = $region81
    $region80: #{tpu_custom_call.1} parent=1 // pred_region
      %106 = dma.done [#allocation6], 32
    $region81: #{tpu_custom_call.1} parent=1 // pred_fallthru
      _
    // Predicated region
    $region82: #{tpu_custom_call.1} parent=1 // pred_check
      _
    $region83: #{tpu_custom_call.1} parent=1 // pred_check_branch
      %108 = sbr.rel (0) target = $region85
    $region84: #{tpu_custom_call.1} parent=1 // pred_region
      %109 = dma.done [#allocation9], 2048
    $region85: #{tpu_custom_call.1} parent=1 // pred_fallthru
      _
    %v111 = vld [vmem:[#allocation2] sm:$0xff]
    %v112 = vld [vmem:[#allocation2 + $0x8] sm:$0xff]
    %v113 = vld [vmem:[#allocation5] sm:$0xf]
    %v114 = vld [vmem:[#allocation5 + $0x4] sm:$0xf]
    %v115 = vlaneseq
    %v116 = vshrl.u32 %v115, 7
    %v117 = vlaneseq
    %v118 = vand.u32 %v117, 127
    %vm119 = vcmp.gt.s32.totalorder %v118, %v116
    %v120 = vld [vmem:[%s2] sm:$0x3]
    %v121 = vld [vmem:[#allocation7] sm:$0x3]
    %vm122 = vcmp.gt.f32.partialorder %v120, 0.5
    %vm123 = vcmp.gt.f32.partialorder %v121, 0.5
    %v124 = vsel %vm122, 1, 0
    %v125 = vlaneseq
    %v126 = vshrl.u32 %v125, 7
    %v127 = vsub.s32 0, %v126
    %v128 = vrot.slane %v124, %v127
    %vm129 = vcmp.eq.s32.totalorder %v128, 1
    %vm130 = vmor %vm119, %vm129
    %v131 = vsel %vm130, -1e+09, 0.0
    %v132 = vsel %vm123, -1e+09, 0.0
    %v133 = vlaneseq
    %v134 = vshrl.u32 %v133, 7
    %v135 = vsub.s32 1, %v134
    %v136 = vrot.slane %v124, %v135
    %vm137 = vcmp.eq.s32.totalorder %v136, 1
    %vm138 = vmor %vm119, %vm137
    %v139 = vsel %vm138, -1e+09, 0.0
    %v140 = vld [vmem:[%s6] sm:$0xff]
    %v141 = vld [vmem:[%s6 + $0x8] sm:$0xff]
    %v142 = vld [vmem:[%s6 + $0x10] sm:$0xff]
    %v143 = vld [vmem:[%s6 + $0x18] sm:$0xff]
    %v144 = vld [vmem:[%s6 + $0x20] sm:$0xff]
    %v145 = vld [vmem:[%s6 + $0x28] sm:$0xff]
    %v146 = vld [vmem:[%s6 + $0x30] sm:$0xff]
    %v147 = vld [vmem:[%s6 + $0x38] sm:$0xff]
    %v148 = vld [vmem:[%s6 + $0x40] sm:$0xff]
    %v149 = vld [vmem:[%s6 + $0x48] sm:$0xff]
    %v150 = vld [vmem:[%s6 + $0x50] sm:$0xff]
    %v151 = vld [vmem:[%s6 + $0x58] sm:$0xff]
    %v152 = vld [vmem:[%s6 + $0x60] sm:$0xff]
    %v153 = vld [vmem:[%s6 + $0x68] sm:$0xff]
    %v154 = vld [vmem:[%s6 + $0x70] sm:$0xff]
    %v155 = vld [vmem:[%s6 + $0x78] sm:$0xff]
    %v158 = vunpack.c.l.b16 %v113
    %v159 = vunpack.c.l.b16 %v114
    %v160 = vpack.c.b16 %v159, %v158
    %v178 = vunpack.c.l.b16 %v140
    %v179 = vunpack.c.h.b16 %v140
    %v180 = vunpack.c.l.b16 %v141
    %v181 = vunpack.c.h.b16 %v141
    %v182 = vunpack.c.l.b16 %v142
    %v183 = vunpack.c.h.b16 %v142
    %v184 = vunpack.c.l.b16 %v143
    %v185 = vunpack.c.h.b16 %v143
    %v186 = vunpack.c.l.b16 %v144
    %v187 = vunpack.c.h.b16 %v144
    %v188 = vunpack.c.l.b16 %v145
    %v189 = vunpack.c.h.b16 %v145
    %v190 = vunpack.c.l.b16 %v146
    %v191 = vunpack.c.h.b16 %v146
    %v192 = vunpack.c.l.b16 %v147
    %v193 = vunpack.c.h.b16 %v147
    %v194 = vunpack.c.l.b16 %v148
    %v195 = vunpack.c.h.b16 %v148
    %v196 = vunpack.c.l.b16 %v149
    %v197 = vunpack.c.h.b16 %v149
    %v198 = vunpack.c.l.b16 %v150
    %v199 = vunpack.c.h.b16 %v150
    %v200 = vunpack.c.l.b16 %v151
    %v201 = vunpack.c.h.b16 %v151
    %v202 = vunpack.c.l.b16 %v152
    %v203 = vunpack.c.h.b16 %v152
    %v204 = vunpack.c.l.b16 %v153
    %v205 = vunpack.c.h.b16 %v153
    %v206 = vunpack.c.l.b16 %v154
    %v207 = vunpack.c.h.b16 %v154
    %v208 = vunpack.c.l.b16 %v155
    %v209 = vunpack.c.h.b16 %v155
    %v210 = vpack.c.b16 %v180, %v178
    %v211 = vpack.c.b16 %v181, %v179
    %v212 = vpack.c.b16 %v184, %v182
    %v213 = vpack.c.b16 %v185, %v183
    %v214 = vpack.c.b16 %v188, %v186
    %v215 = vpack.c.b16 %v189, %v187
    %v216 = vpack.c.b16 %v192, %v190
    %v217 = vpack.c.b16 %v193, %v191
    %v218 = vpack.c.b16 %v196, %v194
    %v219 = vpack.c.b16 %v197, %v195
    %v220 = vpack.c.b16 %v200, %v198
    %v221 = vpack.c.b16 %v201, %v199
    %v222 = vpack.c.b16 %v204, %v202
    %v223 = vpack.c.b16 %v205, %v203
    %v224 = vpack.c.b16 %v208, %v206
    %v225 = vpack.c.b16 %v209, %v207
    %242 = vmatprep.subr.bf16.mxu0 %v211
    %243 = vmatpush1.bf16.msra.mxu0 %v210
    %244 = vmatprep.subr.bf16.mxu0 %v213
    %245 = vmatpush1.bf16.msra.mxu0 %v212
    %246 = vmatprep.subr.bf16.mxu0 %v215
    %247 = vmatpush1.bf16.msra.mxu0 %v214
    %248 = vmatprep.subr.bf16.mxu0 %v217
    %249 = vmatpush1.bf16.msra.mxu0 %v216
    %250 = vmatprep.subr.bf16.mxu0 %v219
    %251 = vmatpush1.bf16.msra.mxu0 %v218
    %252 = vmatprep.subr.bf16.mxu0 %v221
    %253 = vmatpush1.bf16.msra.mxu0 %v220
    %254 = vmatprep.subr.bf16.mxu0 %v223
    %255 = vmatpush1.bf16.msra.mxu0 %v222
    %256 = vmatprep.subr.bf16.mxu0 %v225
    %257 = vmatpush1.bf16.msra.mxu0 %v224
    %258 = vmatprep.subr.bf16.mxu0 0
    %259 = vmatpush1.bf16.msra.mxu0 0
    %260 = vmatprep.subr.bf16.mxu0 0
    %261 = vmatpush1.bf16.msra.mxu0 0
    %262 = vmatprep.subr.bf16.mxu0 0
    %263 = vmatpush1.bf16.msra.mxu0 0
    %264 = vmatprep.subr.bf16.mxu0 0
    %265 = vmatpush1.bf16.msra.mxu0 0
    %266 = vmatprep.subr.bf16.mxu0 0
    %267 = vmatpush1.bf16.msra.mxu0 0
    %268 = vmatprep.subr.bf16.mxu0 0
    %269 = vmatpush1.bf16.msra.mxu0 0
    %270 = vmatprep.subr.bf16.mxu0 0
    %271 = vmatpush1.bf16.msra.mxu0 0
    %272 = vmatprep.subr.bf16.mxu0 0
    %273 = vmatpush1.bf16.msra.mxu0 0
    %274 = vmatprep.mubr.bf16.mxu0 0
    %275 = vmatmul.mubr.bf16.gmra.mrb[0].mxu0 %v160
    %v276 = vpop.f32.mrb[0].mxu0
    %v277 = vadd.f32 0.0, %v276
    %v278 = vpop.f32.mrb[0].mxu0
    %v279 = vadd.f32 0.0, %v278
    %v280 = vpop.f32.mrb[0].mxu0
    %v281 = vadd.f32 0.0, %v280
    %v282 = vpop.f32.mrb[0].mxu0
    %v283 = vadd.f32 0.0, %v282
    %284 = vdwg.mxu0
    %v285 = vpack.c.bf16 %v281, %v277
    %v286 = vpack.c.bf16 %v283, %v279
    %v287 = vpack.c.bf16 %v112, %v111
    %v288 = vld [vmem:[%s4] sm:$0xff]
    %v289 = vld [vmem:[%s4 + $0x8] sm:$0xff]
    %v290 = vld [vmem:[%s4 + $0x10] sm:$0xff]
    %v291 = vld [vmem:[%s4 + $0x18] sm:$0xff]
    %v292 = vld [vmem:[%s4 + $0x20] sm:$0xff]
    %v293 = vld [vmem:[%s4 + $0x28] sm:$0xff]
    %v294 = vld [vmem:[%s4 + $0x30] sm:$0xff]
    %v295 = vld [vmem:[%s4 + $0x38] sm:$0xff]
    %v296 = vld [vmem:[%s4 + $0x40] sm:$0xff]
    %v297 = vld [vmem:[%s4 + $0x48] sm:$0xff]
    %v298 = vld [vmem:[%s4 + $0x50] sm:$0xff]
    %v299 = vld [vmem:[%s4 + $0x58] sm:$0xff]
    %v300 = vld [vmem:[%s4 + $0x60] sm:$0xff]
    %v301 = vld [vmem:[%s4 + $0x68] sm:$0xff]
    %v302 = vld [vmem:[%s4 + $0x70] sm:$0xff]
    %v303 = vld [vmem:[%s4 + $0x78] sm:$0xff]
    %v320 = vunpack.c.l.b16 %v288
    %v321 = vunpack.c.h.b16 %v288
    %v322 = vunpack.c.l.b16 %v289
    %v323 = vunpack.c.h.b16 %v289
    %v324 = vunpack.c.l.b16 %v290
    %v325 = vunpack.c.h.b16 %v290
    %v326 = vunpack.c.l.b16 %v291
    %v327 = vunpack.c.h.b16 %v291
    %v328 = vunpack.c.l.b16 %v292
    %v329 = vunpack.c.h.b16 %v292
    %v330 = vunpack.c.l.b16 %v293
    %v331 = vunpack.c.h.b16 %v293
    %v332 = vunpack.c.l.b16 %v294
    %v333 = vunpack.c.h.b16 %v294
    %v334 = vunpack.c.l.b16 %v295
    %v335 = vunpack.c.h.b16 %v295
    %v336 = vunpack.c.l.b16 %v296
    %v337 = vunpack.c.h.b16 %v296
    %v338 = vunpack.c.l.b16 %v297
    %v339 = vunpack.c.h.b16 %v297
    %v340 = vunpack.c.l.b16 %v298
    %v341 = vunpack.c.h.b16 %v298
    %v342 = vunpack.c.l.b16 %v299
    %v343 = vunpack.c.h.b16 %v299
    %v344 = vunpack.c.l.b16 %v300
    %v345 = vunpack.c.h.b16 %v300
    %v346 = vunpack.c.l.b16 %v301
    %v347 = vunpack.c.h.b16 %v301
    %v348 = vunpack.c.l.b16 %v302
    %v349 = vunpack.c.h.b16 %v302
    %v350 = vunpack.c.l.b16 %v303
    %v351 = vunpack.c.h.b16 %v303
    %v352 = vpack.c.b16 %v322, %v320
    %v353 = vpack.c.b16 %v323, %v321
    %v354 = vpack.c.b16 %v326, %v324
    %v355 = vpack.c.b16 %v327, %v325
    %v356 = vpack.c.b16 %v330, %v328
    %v357 = vpack.c.b16 %v331, %v329
    %v358 = vpack.c.b16 %v334, %v332
    %v359 = vpack.c.b16 %v335, %v333
    %v360 = vpack.c.b16 %v338, %v336
    %v361 = vpack.c.b16 %v339, %v337
    %v362 = vpack.c.b16 %v342, %v340
    %v363 = vpack.c.b16 %v343, %v341
    %v364 = vpack.c.b16 %v346, %v344
    %v365 = vpack.c.b16 %v347, %v345
    %v366 = vpack.c.b16 %v350, %v348
    %v367 = vpack.c.b16 %v351, %v349
    %384 = vmatprep.subr.bf16.mxu0 %v353
    %385 = vmatpush1.bf16.msra.mxu0 %v352
    %386 = vmatprep.subr.bf16.mxu0 %v355
    %387 = vmatpush1.bf16.msra.mxu0 %v354
    %388 = vmatprep.subr.bf16.mxu0 %v357
    %389 = vmatpush1.bf16.msra.mxu0 %v356
    %390 = vmatprep.subr.bf16.mxu0 %v359
    %391 = vmatpush1.bf16.msra.mxu0 %v358
    %392 = vmatprep.subr.bf16.mxu0 %v361
    %393 = vmatpush1.bf16.msra.mxu0 %v360
    %394 = vmatprep.subr.bf16.mxu0 %v363
    %395 = vmatpush1.bf16.msra.mxu0 %v362
    %396 = vmatprep.subr.bf16.mxu0 %v365
    %397 = vmatpush1.bf16.msra.mxu0 %v364
    %398 = vmatprep.subr.bf16.mxu0 %v367
    %399 = vmatpush1.bf16.msra.mxu0 %v366
    %400 = vmatprep.subr.bf16.mxu0 0
    %401 = vmatpush1.bf16.msra.mxu0 0
    %402 = vmatprep.subr.bf16.mxu0 0
    %403 = vmatpush1.bf16.msra.mxu0 0
    %404 = vmatprep.subr.bf16.mxu0 0
    %405 = vmatpush1.bf16.msra.mxu0 0
    %406 = vmatprep.subr.bf16.mxu0 0
    %407 = vmatpush1.bf16.msra.mxu0 0
    %408 = vmatprep.subr.bf16.mxu0 0
    %409 = vmatpush1.bf16.msra.mxu0 0
    %410 = vmatprep.subr.bf16.mxu0 0
    %411 = vmatpush1.bf16.msra.mxu0 0
    %412 = vmatprep.subr.bf16.mxu0 0
    %413 = vmatpush1.bf16.msra.mxu0 0
    %414 = vmatprep.subr.bf16.mxu0 0
    %415 = vmatpush1.bf16.msra.mxu0 0
    %416 = vmatprep.mubr.bf16.mxu0 0
    %417 = vmatmul.mubr.bf16.gmra.mrb[0].mxu0 %v287
    %v418 = vpop.f32.mrb[0].mxu0
    %v419 = vadd.f32 0.0, %v418
    %v420 = vpop.f32.mrb[0].mxu0
    %v421 = vadd.f32 0.0, %v420
    %v422 = vpop.f32.mrb[0].mxu0
    %v423 = vadd.f32 0.0, %v422
    %v424 = vpop.f32.mrb[0].mxu0
    %v425 = vadd.f32 0.0, %v424
    %426 = vdwg.mxu0
    %v427 = vpack.c.bf16 %v423, %v419
    %v428 = vpack.c.bf16 %v425, %v421
    %v429 = vld [vmem:[#allocation8] sm:$0xf]
    %v430 = vld [vmem:[#allocation8 + $0x4] sm:$0xf]
    %v431 = vld [vmem:[#allocation8 + $0x8] sm:$0xf]
    %v432 = vld [vmem:[#allocation8 + $0xc] sm:$0xf]
    %v433 = vld [vmem:[#allocation8 + $0x10] sm:$0xf]
    %v434 = vld [vmem:[#allocation8 + $0x14] sm:$0xf]
    %v435 = vld [vmem:[#allocation8 + $0x18] sm:$0xf]
    %v436 = vld [vmem:[#allocation8 + $0x1c] sm:$0xf]
    %v437 = vld [vmem:[%s8] sm:$0x1]
    %v438 = vld [vmem:[%s9] sm:$0x1]
    %v439 = vld [vmem:[%s10] sm:$0x1]
    %441 = vrot.lane.b32.xlu0 %v427, 64
    %v442 = vpop.permute.xlu0 %441
    %vm443 = vcmask 261120
    %v445 = vsel %vm443, %v427, 0
    %v448 = vsel %vm443, %v442, 0
    %450 = vmatprep.subr.bf16.mxu0 0
    %451 = vmatpush1.bf16.xpose.msra.mxu0 %v448
    %452 = vmatprep.subr.bf16.mxu0 0
    %453 = vmatpush1.bf16.xpose.msra.mxu0 0
    %454 = vmatprep.subr.bf16.mxu0 0
    %455 = vmatpush1.bf16.xpose.msra.mxu0 0
    %456 = vmatprep.subr.bf16.mxu0 0
    %457 = vmatpush1.bf16.xpose.msra.mxu0 0
    %458 = vmatprep.subr.bf16.mxu0 0
    %459 = vmatpush1.bf16.xpose.msra.mxu0 0
    %460 = vmatprep.subr.bf16.mxu0 0
    %461 = vmatpush1.bf16.xpose.msra.mxu0 0
    %462 = vmatprep.subr.bf16.mxu0 0
    %463 = vmatpush1.bf16.xpose.msra.mxu0 0
    %464 = vmatprep.subr.bf16.mxu0 0
    %465 = vmatpush1.bf16.xpose.msra.mxu0 0
    %466 = vmatprep.subr.bf16.mxu0 0
    %467 = vmatpush1.bf16.xpose.msra.mxu0 0
    %468 = vmatprep.subr.bf16.mxu0 0
    %469 = vmatpush1.bf16.xpose.msra.mxu0 0
    %470 = vmatprep.subr.bf16.mxu0 0
    %471 = vmatpush1.bf16.xpose.msra.mxu0 0
    %472 = vmatprep.subr.bf16.mxu0 0
    %473 = vmatpush1.bf16.xpose.msra.mxu0 0
    %474 = vmatprep.subr.bf16.mxu0 0
    %475 = vmatpush1.bf16.xpose.msra.mxu0 0
    %476 = vmatprep.subr.bf16.mxu0 0
    %477 = vmatpush1.bf16.xpose.msra.mxu0 0
    %478 = vmatprep.subr.bf16.mxu0 0
    %479 = vmatpush1.bf16.xpose.msra.mxu0 0
    %480 = vmatprep.subr.bf16.mxu0 0
    %481 = vmatpush1.bf16.xpose.msra.mxu0 0
    %482 = vmatprep.mubr.bf16.mxu0 0
    %483 = vmatmul.mubr.bf16.gmra.mrb[0].mxu0 %v445
    %v484 = vpop.f32.mrb[0].mxu0
    %v485 = vadd.f32 %v131, %v484
    %v486 = vpop.f32.mrb[0].mxu0
    %v487 = vpop.f32.mrb[0].mxu0
    %v488 = vpop.f32.mrb[0].mxu0
    %489 = vdwg.mxu0
    %vm490 = vcmask 64512
    %v491 = vsel %vm490, %v485, -inf
    %492 = vmax.xlane.f32.xlu0 %v491
    %v493 = vpop.xlane.xlu0 %492
    %v494 = vsub.f32 %v485, %v493
    %v495 = vmul.f32 %v494, 1.442695
    %v496 = vpow.pop %v495
    %v497 = vsel %vm490, %v496, 0.0
    %498 = vadd.xlane.f32.xlu0 %v497
    %v499 = vpop.xlane.xlu0 %498
    %v500 = vrcp.pop %v499
    %v501 = vmul.f32 %v496, %v500
    %v502 = vpack.c.bf16 %v501, %v501
    %v504 = vsel %vm490, %v502, 0
    %vm506 = vcmask 1043456
    %v508 = vsel %vm506, %v428, 0
    %510 = vmatprep.subr.bf16.mxu0 0
    %511 = vmatpush1.bf16.msra.mxu0 %v508
    %512 = vmatprep.subr.bf16.mxu0 0
    %513 = vmatpush1.bf16.msra.mxu0 0
    %514 = vmatprep.subr.bf16.mxu0 0
    %515 = vmatpush1.bf16.msra.mxu0 0
    %516 = vmatprep.subr.bf16.mxu0 0
    %517 = vmatpush1.bf16.msra.mxu0 0
    %518 = vmatprep.subr.bf16.mxu0 0
    %519 = vmatpush1.bf16.msra.mxu0 0
    %520 = vmatprep.subr.bf16.mxu0 0
    %521 = vmatpush1.bf16.msra.mxu0 0
    %522 = vmatprep.subr.bf16.mxu0 0
    %523 = vmatpush1.bf16.msra.mxu0 0
    %524 = vmatprep.subr.bf16.mxu0 0
    %525 = vmatpush1.bf16.msra.mxu0 0
    %526 = vmatprep.subr.bf16.mxu0 0
    %527 = vmatpush1.bf16.msra.mxu0 0
    %528 = vmatprep.subr.bf16.mxu0 0
    %529 = vmatpush1.bf16.msra.mxu0 0
    %530 = vmatprep.subr.bf16.mxu0 0
    %531 = vmatpush1.bf16.msra.mxu0 0
    %532 = vmatprep.subr.bf16.mxu0 0
    %533 = vmatpush1.bf16.msra.mxu0 0
    %534 = vmatprep.subr.bf16.mxu0 0
    %535 = vmatpush1.bf16.msra.mxu0 0
    %536 = vmatprep.subr.bf16.mxu0 0
    %537 = vmatpush1.bf16.msra.mxu0 0
    %538 = vmatprep.subr.bf16.mxu0 0
    %539 = vmatpush1.bf16.msra.mxu0 0
    %540 = vmatprep.subr.bf16.mxu0 0
    %541 = vmatpush1.bf16.msra.mxu0 0
    %542 = vmatprep.mubr.bf16.mxu0 0
    %543 = vmatmul.mubr.bf16.gmra.mrb[0].mxu0 %v504
    %v544 = vpop.f32.mrb[0].mxu0
    %v545 = vadd.f32 0.0, %v544
    %v546 = vpop.f32.mrb[0].mxu0
    %v547 = vpop.f32.mrb[0].mxu0
    %v548 = vpop.f32.mrb[0].mxu0
    %549 = vdwg.mxu0
    %550 = vrot.lane.b32.xlu0 %v427, 96
    %v551 = vpop.permute.xlu0 %550
    %552 = vrot.lane.b32.xlu0 %v427, 32
    %v553 = vpop.permute.xlu0 %552
    %v555 = vsel %vm443, %v551, 0
    %v558 = vsel %vm443, %v553, 0
    %560 = vmatprep.subr.bf16.mxu0 0
    %561 = vmatpush1.bf16.xpose.msra.mxu0 %v558
    %562 = vmatprep.subr.bf16.mxu0 0
    %563 = vmatpush1.bf16.xpose.msra.mxu0 0
    %564 = vmatprep.subr.bf16.mxu0 0
    %565 = vmatpush1.bf16.xpose.msra.mxu0 0
    %566 = vmatprep.subr.bf16.mxu0 0
    %567 = vmatpush1.bf16.xpose.msra.mxu0 0
    %568 = vmatprep.subr.bf16.mxu0 0
    %569 = vmatpush1.bf16.xpose.msra.mxu0 0
    %570 = vmatprep.subr.bf16.mxu0 0
    %571 = vmatpush1.bf16.xpose.msra.mxu0 0
    %572 = vmatprep.subr.bf16.mxu0 0
    %573 = vmatpush1.bf16.xpose.msra.mxu0 0
    %574 = vmatprep.subr.bf16.mxu0 0
    %575 = vmatpush1.bf16.xpose.msra.mxu0 0
    %576 = vmatprep.subr.bf16.mxu0 0
    %577 = vmatpush1.bf16.xpose.msra.mxu0 0
    %578 = vmatprep.subr.bf16.mxu0 0
    %579 = vmatpush1.bf16.xpose.msra.mxu0 0
    %580 = vmatprep.subr.bf16.mxu0 0
    %581 = vmatpush1.bf16.xpose.msra.mxu0 0
    %582 = vmatprep.subr.bf16.mxu0 0
    %583 = vmatpush1.bf16.xpose.msra.mxu0 0
    %584 = vmatprep.subr.bf16.mxu0 0
    %585 = vmatpush1.bf16.xpose.msra.mxu0 0
    %586 = vmatprep.subr.bf16.mxu0 0
    %587 = vmatpush1.bf16.xpose.msra.mxu0 0
    %588 = vmatprep.subr.bf16.mxu0 0
    %589 = vmatpush1.bf16.xpose.msra.mxu0 0
    %590 = vmatprep.subr.bf16.mxu0 0
    %591 = vmatpush1.bf16.xpose.msra.mxu0 0
    %592 = vmatprep.mubr.bf16.mxu0 0
    %593 = vmatmul.mubr.bf16.gmra.mrb[0].mxu0 %v555
    %v594 = vpop.f32.mrb[0].mxu0
    %v595 = vadd.f32 %v131, %v594
    %v596 = vpop.f32.mrb[0].mxu0
    %v597 = vpop.f32.mrb[0].mxu0
    %v598 = vpop.f32.mrb[0].mxu0
    %599 = vdwg.mxu0
    %v600 = vsel %vm490, %v595, -inf
    %601 = vmax.xlane.f32.xlu0 %v600
    %v602 = vpop.xlane.xlu0 %601
    %v603 = vsub.f32 %v595, %v602
    %v604 = vmul.f32 %v603, 1.442695
    %v605 = vpow.pop %v604
    %v606 = vsel %vm490, %v605, 0.0
    %607 = vadd.xlane.f32.xlu0 %v606
    %v608 = vpop.xlane.xlu0 %607
    %v609 = vrcp.pop %v608
    %v610 = vmul.f32 %v605, %v609
    %v611 = vpack.c.bf16 %v610, %v610
    %613 = vrot.lane.b32.xlu0 %v428, 96
    %v614 = vpop.permute.xlu0 %613
    %v616 = vsel %vm490, %v611, 0
    %v619 = vsel %vm506, %v614, 0
    %621 = vmatprep.subr.bf16.mxu0 0
    %622 = vmatpush1.bf16.msra.mxu0 %v619
    %623 = vmatprep.subr.bf16.mxu0 0
    %624 = vmatpush1.bf16.msra.mxu0 0
    %625 = vmatprep.subr.bf16.mxu0 0
    %626 = vmatpush1.bf16.msra.mxu0 0
    %627 = vmatprep.subr.bf16.mxu0 0
    %628 = vmatpush1.bf16.msra.mxu0 0
    %629 = vmatprep.subr.bf16.mxu0 0
    %630 = vmatpush1.bf16.msra.mxu0 0
    %631 = vmatprep.subr.bf16.mxu0 0
    %632 = vmatpush1.bf16.msra.mxu0 0
    %633 = vmatprep.subr.bf16.mxu0 0
    %634 = vmatpush1.bf16.msra.mxu0 0
    %635 = vmatprep.subr.bf16.mxu0 0
    %636 = vmatpush1.bf16.msra.mxu0 0
    %637 = vmatprep.subr.bf16.mxu0 0
    %638 = vmatpush1.bf16.msra.mxu0 0
    %639 = vmatprep.subr.bf16.mxu0 0
    %640 = vmatpush1.bf16.msra.mxu0 0
    %641 = vmatprep.subr.bf16.mxu0 0
    %642 = vmatpush1.bf16.msra.mxu0 0
    %643 = vmatprep.subr.bf16.mxu0 0
    %644 = vmatpush1.bf16.msra.mxu0 0
    %645 = vmatprep.subr.bf16.mxu0 0
    %646 = vmatpush1.bf16.msra.mxu0 0
    %647 = vmatprep.subr.bf16.mxu0 0
    %648 = vmatpush1.bf16.msra.mxu0 0
    %649 = vmatprep.subr.bf16.mxu0 0
    %650 = vmatpush1.bf16.msra.mxu0 0
    %651 = vmatprep.subr.bf16.mxu0 0
    %652 = vmatpush1.bf16.msra.mxu0 0
    %653 = vmatprep.mubr.bf16.mxu0 0
    %654 = vmatmul.mubr.bf16.gmra.mrb[0].mxu0 %v616
    %v655 = vpop.f32.mrb[0].mxu0
    %v656 = vadd.f32 0.0, %v655
    %v657 = vpop.f32.mrb[0].mxu0
    %v658 = vpop.f32.mrb[0].mxu0
    %v659 = vpop.f32.mrb[0].mxu0
    %660 = vdwg.mxu0
    %662 = vrot.lane.b32.xlu0 %v656, 32
    %v663 = vpop.permute.xlu0 %662
    %v665 = vsel %vm443, %v545, %v663
    %v666 = vrot.slane %v427, 4
    %667 = vrot.lane.b32.xlu0 %v666, 64
    %v668 = vpop.permute.xlu0 %667
    %v670 = vsel %vm443, %v666, 0
    %v673 = vsel %vm443, %v668, 0
    %675 = vmatprep.subr.bf16.mxu0 0
    %676 = vmatpush1.bf16.xpose.msra.mxu0 %v673
    %677 = vmatprep.subr.bf16.mxu0 0
    %678 = vmatpush1.bf16.xpose.msra.mxu0 0
    %679 = vmatprep.subr.bf16.mxu0 0
    %680 = vmatpush1.bf16.xpose.msra.mxu0 0
    %681 = vmatprep.subr.bf16.mxu0 0
    %682 = vmatpush1.bf16.xpose.msra.mxu0 0
    %683 = vmatprep.subr.bf16.mxu0 0
    %684 = vmatpush1.bf16.xpose.msra.mxu0 0
    %685 = vmatprep.subr.bf16.mxu0 0
    %686 = vmatpush1.bf16.xpose.msra.mxu0 0
    %687 = vmatprep.subr.bf16.mxu0 0
    %688 = vmatpush1.bf16.xpose.msra.mxu0 0
    %689 = vmatprep.subr.bf16.mxu0 0
    %690 = vmatpush1.bf16.xpose.msra.mxu0 0
    %691 = vmatprep.subr.bf16.mxu0 0
    %692 = vmatpush1.bf16.xpose.msra.mxu0 0
    %693 = vmatprep.subr.bf16.mxu0 0
    %694 = vmatpush1.bf16.xpose.msra.mxu0 0
    %695 = vmatprep.subr.bf16.mxu0 0
    %696 = vmatpush1.bf16.xpose.msra.mxu0 0
    %697 = vmatprep.subr.bf16.mxu0 0
    %698 = vmatpush1.bf16.xpose.msra.mxu0 0
    %699 = vmatprep.subr.bf16.mxu0 0
    %700 = vmatpush1.bf16.xpose.msra.mxu0 0
    %701 = vmatprep.subr.bf16.mxu0 0
    %702 = vmatpush1.bf16.xpose.msra.mxu0 0
    %703 = vmatprep.subr.bf16.mxu0 0
    %704 = vmatpush1.bf16.xpose.msra.mxu0 0
    %705 = vmatprep.subr.bf16.mxu0 0
    %706 = vmatpush1.bf16.xpose.msra.mxu0 0
    %707 = vmatprep.mubr.bf16.mxu0 0
    %708 = vmatmul.mubr.bf16.gmra.mrb[0].mxu0 %v670
    %v709 = vpop.f32.mrb[0].mxu0
    %v710 = vadd.f32 %v139, %v709
    %v711 = vpop.f32.mrb[0].mxu0
    %v712 = vpop.f32.mrb[0].mxu0
    %v713 = vpop.f32.mrb[0].mxu0
    %714 = vdwg.mxu0
    %v715 = vsel %vm490, %v710, -inf
    %716 = vmax.xlane.f32.xlu0 %v715
    %v717 = vpop.xlane.xlu0 %716
    %v718 = vsub.f32 %v710, %v717
    %v719 = vmul.f32 %v718, 1.442695
    %v720 = vpow.pop %v719
    %v721 = vsel %vm490, %v720, 0.0
    %722 = vadd.xlane.f32.xlu0 %v721
    %v723 = vpop.xlane.xlu0 %722
    %v724 = vrcp.pop %v723
    %v725 = vmul.f32 %v720, %v724
    %v726 = vpack.c.bf16 %v725, %v725
    %v727 = vrot.slane %v428, 4
    %v729 = vsel %vm490, %v726, 0
    %v732 = vsel %vm506, %v727, 0
    %734 = vmatprep.subr.bf16.mxu0 0
    %735 = vmatpush1.bf16.msra.mxu0 %v732
    %736 = vmatprep.subr.bf16.mxu0 0
    %737 = vmatpush1.bf16.msra.mxu0 0
    %738 = vmatprep.subr.bf16.mxu0 0
    %739 = vmatpush1.bf16.msra.mxu0 0
    %740 = vmatprep.subr.bf16.mxu0 0
    %741 = vmatpush1.bf16.msra.mxu0 0
    %742 = vmatprep.subr.bf16.mxu0 0
    %743 = vmatpush1.bf16.msra.mxu0 0
    %744 = vmatprep.subr.bf16.mxu0 0
    %745 = vmatpush1.bf16.msra.mxu0 0
    %746 = vmatprep.subr.bf16.mxu0 0
    %747 = vmatpush1.bf16.msra.mxu0 0
    %748 = vmatprep.subr.bf16.mxu0 0
    %749 = vmatpush1.bf16.msra.mxu0 0
    %750 = vmatprep.subr.bf16.mxu0 0
    %751 = vmatpush1.bf16.msra.mxu0 0
    %752 = vmatprep.subr.bf16.mxu0 0
    %753 = vmatpush1.bf16.msra.mxu0 0
    %754 = vmatprep.subr.bf16.mxu0 0
    %755 = vmatpush1.bf16.msra.mxu0 0
    %756 = vmatprep.subr.bf16.mxu0 0
    %757 = vmatpush1.bf16.msra.mxu0 0
    %758 = vmatprep.subr.bf16.mxu0 0
    %759 = vmatpush1.bf16.msra.mxu0 0
    %760 = vmatprep.subr.bf16.mxu0 0
    %761 = vmatpush1.bf16.msra.mxu0 0
    %762 = vmatprep.subr.bf16.mxu0 0
    %763 = vmatpush1.bf16.msra.mxu0 0
    %764 = vmatprep.subr.bf16.mxu0 0
    %765 = vmatpush1.bf16.msra.mxu0 0
    %766 = vmatprep.mubr.bf16.mxu0 0
    %767 = vmatmul.mubr.bf16.gmra.mrb[0].mxu0 %v729
    %v768 = vpop.f32.mrb[0].mxu0
    %v769 = vadd.f32 0.0, %v768
    %v770 = vpop.f32.mrb[0].mxu0
    %v771 = vpop.f32.mrb[0].mxu0
    %v772 = vpop.f32.mrb[0].mxu0
    %773 = vdwg.mxu0
    %774 = vrot.lane.b32.xlu0 %v666, 96
    %v775 = vpop.permute.xlu0 %774
    %776 = vrot.lane.b32.xlu0 %v666, 32
    %v777 = vpop.permute.xlu0 %776
    %v779 = vsel %vm443, %v775, 0
    %v782 = vsel %vm443, %v777, 0
    %784 = vmatprep.subr.bf16.mxu0 0
    %785 = vmatpush1.bf16.xpose.msra.mxu0 %v782
    %786 = vmatprep.subr.bf16.mxu0 0
    %787 = vmatpush1.bf16.xpose.msra.mxu0 0
    %788 = vmatprep.subr.bf16.mxu0 0
    %789 = vmatpush1.bf16.xpose.msra.mxu0 0
    %790 = vmatprep.subr.bf16.mxu0 0
    %791 = vmatpush1.bf16.xpose.msra.mxu0 0
    %792 = vmatprep.subr.bf16.mxu0 0
    %793 = vmatpush1.bf16.xpose.msra.mxu0 0
    %794 = vmatprep.subr.bf16.mxu0 0
    %795 = vmatpush1.bf16.xpose.msra.mxu0 0
    %796 = vmatprep.subr.bf16.mxu0 0
    %797 = vmatpush1.bf16.xpose.msra.mxu0 0
    %798 = vmatprep.subr.bf16.mxu0 0
    %799 = vmatpush1.bf16.xpose.msra.mxu0 0
    %800 = vmatprep.subr.bf16.mxu0 0
    %801 = vmatpush1.bf16.xpose.msra.mxu0 0
    %802 = vmatprep.subr.bf16.mxu0 0
    %803 = vmatpush1.bf16.xpose.msra.mxu0 0
    %804 = vmatprep.subr.bf16.mxu0 0
    %805 = vmatpush1.bf16.xpose.msra.mxu0 0
    %806 = vmatprep.subr.bf16.mxu0 0
    %807 = vmatpush1.bf16.xpose.msra.mxu0 0
    %808 = vmatprep.subr.bf16.mxu0 0
    %809 = vmatpush1.bf16.xpose.msra.mxu0 0
    %810 = vmatprep.subr.bf16.mxu0 0
    %811 = vmatpush1.bf16.xpose.msra.mxu0 0
    %812 = vmatprep.subr.bf16.mxu0 0
    %813 = vmatpush1.bf16.xpose.msra.mxu0 0
    %814 = vmatprep.subr.bf16.mxu0 0
    %815 = vmatpush1.bf16.xpose.msra.mxu0 0
    %816 = vmatprep.mubr.bf16.mxu0 0
    %817 = vmatmul.mubr.bf16.gmra.mrb[0].mxu0 %v779
    %v818 = vpop.f32.mrb[0].mxu0
    %v819 = vadd.f32 %v139, %v818
    %v820 = vpop.f32.mrb[0].mxu0
    %v821 = vpop.f32.mrb[0].mxu0
    %v822 = vpop.f32.mrb[0].mxu0
    %823 = vdwg.mxu0
    %v824 = vsel %vm490, %v819, -inf
    %825 = vmax.xlane.f32.xlu0 %v824
    %v826 = vpop.xlane.xlu0 %825
    %v827 = vsub.f32 %v819, %v826
    %v828 = vmul.f32 %v827, 1.442695
    %v829 = vpow.pop %v828
    %v830 = vsel %vm490, %v829, 0.0
    %831 = vadd.xlane.f32.xlu0 %v830
    %v832 = vpop.xlane.xlu0 %831
    %v833 = vrcp.pop %v832
    %v834 = vmul.f32 %v829, %v833
    %v835 = vpack.c.bf16 %v834, %v834
    %836 = vrot.lane.b32.xlu0 %v727, 96
    %v837 = vpop.permute.xlu0 %836
    %v839 = vsel %vm490, %v835, 0
    %v842 = vsel %vm506, %v837, 0
    %844 = vmatprep.subr.bf16.mxu0 0
    %845 = vmatpush1.bf16.msra.mxu0 %v842
    %846 = vmatprep.subr.bf16.mxu0 0
    %847 = vmatpush1.bf16.msra.mxu0 0
    %848 = vmatprep.subr.bf16.mxu0 0
    %849 = vmatpush1.bf16.msra.mxu0 0
    %850 = vmatprep.subr.bf16.mxu0 0
    %851 = vmatpush1.bf16.msra.mxu0 0
    %852 = vmatprep.subr.bf16.mxu0 0
    %853 = vmatpush1.bf16.msra.mxu0 0
    %854 = vmatprep.subr.bf16.mxu0 0
    %855 = vmatpush1.bf16.msra.mxu0 0
    %856 = vmatprep.subr.bf16.mxu0 0
    %857 = vmatpush1.bf16.msra.mxu0 0
    %858 = vmatprep.subr.bf16.mxu0 0
    %859 = vmatpush1.bf16.msra.mxu0 0
    %860 = vmatprep.subr.bf16.mxu0 0
    %861 = vmatpush1.bf16.msra.mxu0 0
    %862 = vmatprep.subr.bf16.mxu0 0
    %863 = vmatpush1.bf16.msra.mxu0 0
    %864 = vmatprep.subr.bf16.mxu0 0
    %865 = vmatpush1.bf16.msra.mxu0 0
    %866 = vmatprep.subr.bf16.mxu0 0
    %867 = vmatpush1.bf16.msra.mxu0 0
    %868 = vmatprep.subr.bf16.mxu0 0
    %869 = vmatpush1.bf16.msra.mxu0 0
    %870 = vmatprep.subr.bf16.mxu0 0
    %871 = vmatpush1.bf16.msra.mxu0 0
    %872 = vmatprep.subr.bf16.mxu0 0
    %873 = vmatpush1.bf16.msra.mxu0 0
    %874 = vmatprep.subr.bf16.mxu0 0
    %875 = vmatpush1.bf16.msra.mxu0 0
    %876 = vmatprep.mubr.bf16.mxu0 0
    %877 = vmatmul.mubr.bf16.gmra.mrb[0].mxu0 %v839
    %v878 = vpop.f32.mrb[0].mxu0
    %v879 = vadd.f32 0.0, %v878
    %v880 = vpop.f32.mrb[0].mxu0
    %v881 = vpop.f32.mrb[0].mxu0
    %v882 = vpop.f32.mrb[0].mxu0
    %883 = vdwg.mxu0
    %885 = vrot.lane.b32.xlu0 %v879, 32
    %v886 = vpop.permute.xlu0 %885
    %v888 = vsel %vm443, %v769, %v886
    %v889 = vpack.c.bf16 %v888, %v665
    %v891 = vlaneseq
    %v892 = vshrl.u32 %v891, 7
    %v893 = vsub.s32 0, %v892
    %v894 = vrot.slane %v437, %v893
    %v904 = vunpack.c.l.b16 %v429
    %v905 = vunpack.c.l.b16 %v430
    %v906 = vunpack.c.l.b16 %v431
    %v907 = vunpack.c.l.b16 %v432
    %v908 = vunpack.c.l.b16 %v433
    %v909 = vunpack.c.l.b16 %v434
    %v910 = vunpack.c.l.b16 %v435
    %v911 = vunpack.c.l.b16 %v436
    %v912 = vpack.c.b16 %v905, %v904
    %v913 = vpack.c.b16 %v907, %v906
    %v914 = vpack.c.b16 %v909, %v908
    %v915 = vpack.c.b16 %v911, %v910
    %vm920 = vcmask 523264
    %v922 = vsel %vm920, %v889, 0
    %924 = vmatprep.subr.bf16.mxu0 0
    %925 = vmatpush1.bf16.msra.mxu0 %v912
    %926 = vmatprep.subr.bf16.mxu0 0
    %927 = vmatpush1.bf16.msra.mxu0 %v913
    %928 = vmatprep.subr.bf16.mxu0 0
    %929 = vmatpush1.bf16.msra.mxu0 %v914
    %930 = vmatprep.subr.bf16.mxu0 0
    %931 = vmatpush1.bf16.msra.mxu0 %v915
    %932 = vmatprep.subr.bf16.mxu0 0
    %933 = vmatpush1.bf16.msra.mxu0 0
    %934 = vmatprep.subr.bf16.mxu0 0
    %935 = vmatpush1.bf16.msra.mxu0 0
    %936 = vmatprep.subr.bf16.mxu0 0
    %937 = vmatpush1.bf16.msra.mxu0 0
    %938 = vmatprep.subr.bf16.mxu0 0
    %939 = vmatpush1.bf16.msra.mxu0 0
    %940 = vmatprep.subr.bf16.mxu0 0
    %941 = vmatpush1.bf16.msra.mxu0 0
    %942 = vmatprep.subr.bf16.mxu0 0
    %943 = vmatpush1.bf16.msra.mxu0 0
    %944 = vmatprep.subr.bf16.mxu0 0
    %945 = vmatpush1.bf16.msra.mxu0 0
    %946 = vmatprep.subr.bf16.mxu0 0
    %947 = vmatpush1.bf16.msra.mxu0 0
    %948 = vmatprep.subr.bf16.mxu0 0
    %949 = vmatpush1.bf16.msra.mxu0 0
    %950 = vmatprep.subr.bf16.mxu0 0
    %951 = vmatpush1.bf16.msra.mxu0 0
    %952 = vmatprep.subr.bf16.mxu0 0
    %953 = vmatpush1.bf16.msra.mxu0 0
    %954 = vmatprep.subr.bf16.mxu0 0
    %955 = vmatpush1.bf16.msra.mxu0 0
    %956 = vmatprep.mubr.bf16.mxu0 0
    %957 = vmatmul.mubr.bf16.gmra.mrb[0].mxu0 %v922
    %v958 = vpop.f32.mrb[0].mxu0
    %v959 = vadd.f32 %v894, %v958
    %v960 = vpop.f32.mrb[0].mxu0
    %v961 = vpop.f32.mrb[0].mxu0
    %v962 = vadd.f32 %v894, %v961
    %v963 = vpop.f32.mrb[0].mxu0
    %964 = vdwg.mxu0
    %v965 = vadd.f32 %v959, %v111
    %v966 = vadd.f32 %v962, %v112
    %967 = vadd.xlane.f32.xlu0 %v965
    %v968 = vpop.xlane.xlu0 %967
    %969 = vadd.xlane.f32.xlu0 %v966
    %v970 = vpop.xlane.xlu0 %969
    %v971 = vrcp.pop 128.0
    %v972 = vmul.f32 %v968, %v971
    %v973 = vmul.f32 %v970, %v971
    %v974 = vsub.f32 %v965, %v972
    %v975 = vsub.f32 %v966, %v973
    %v976 = vmul.f32 %v974, %v974
    %v977 = vmul.f32 %v975, %v975
    %978 = vadd.xlane.f32.xlu0 %v976
    %v979 = vpop.xlane.xlu0 %978
    %980 = vadd.xlane.f32.xlu0 %v977
    %v981 = vpop.xlane.xlu0 %980
    %v982 = vmul.f32 %v979, 0.007874016
    %v983 = vmul.f32 %v981, 0.007874016
    %v984 = vrsqrt.pop %v982
    %v985 = vmul.f32 %v982, %v984
    %vm986 = vcmp.eq.f32.partialorder %v982, inf
    %v987 = vsel %vm986, %v982, %v985
    %vm988 = vcmp.eq.f32.partialorder %v982, 0.0
    %v989 = vand.u32 %v982, 2147483648
    %v990 = vsel %vm988, %v989, %v987
    %v991 = vrsqrt.pop %v983
    %v992 = vmul.f32 %v983, %v991
    %vm993 = vcmp.eq.f32.partialorder %v983, inf
    %v994 = vsel %vm993, %v983, %v992
    %vm995 = vcmp.eq.f32.partialorder %v983, 0.0
    %v996 = vand.u32 %v983, 2147483648
    %v997 = vsel %vm995, %v996, %v994
    %v998 = vadd.f32 %v990, 0.001
    %v999 = vadd.f32 %v997, 0.001
    %v1000 = vrcp.pop %v998
    %v1001 = vrcp.pop %v999
    %v1002 = vmul.f32 %v974, %v1000
    %v1003 = vmul.f32 %v975, %v1001
    %v1005 = vlaneseq
    %v1006 = vshrl.u32 %v1005, 7
    %v1007 = vsub.s32 0, %v1006
    %v1008 = vrot.slane %v438, %v1007
    %v1010 = vmul.f32 %v1002, %v1008
    %v1011 = vmul.f32 %v1003, %v1008
    %v1013 = vlaneseq
    %v1014 = vshrl.u32 %v1013, 7
    %v1015 = vsub.s32 0, %v1014
    %v1016 = vrot.slane %v439, %v1015
    %v1018 = vadd.f32 %v1010, %v1016
    %v1019 = vadd.f32 %v1011, %v1016
    %v1020 = vpack.c.bf16 %v1019, %v1018
    %v1021 = vld [vmem:[%s5] sm:$0xf]
    %v1022 = vld [vmem:[%s5 + $0x4] sm:$0xf]
    %v1023 = vld [vmem:[%s5 + $0x8] sm:$0xf]
    %v1024 = vld [vmem:[%s5 + $0xc] sm:$0xf]
    %v1025 = vld [vmem:[%s5 + $0x10] sm:$0xf]
    %v1026 = vld [vmem:[%s5 + $0x14] sm:$0xf]
    %v1027 = vld [vmem:[%s5 + $0x18] sm:$0xf]
    %v1028 = vld [vmem:[%s5 + $0x1c] sm:$0xf]
    %v1029 = vld [vmem:[%s5 + $0x20] sm:$0xf]
    %v1030 = vld [vmem:[%s5 + $0x24] sm:$0xf]
    %v1031 = vld [vmem:[%s5 + $0x28] sm:$0xf]
    %v1032 = vld [vmem:[%s5 + $0x2c] sm:$0xf]
    %v1033 = vld [vmem:[%s5 + $0x30] sm:$0xf]
    %v1034 = vld [vmem:[%s5 + $0x34] sm:$0xf]
    %v1035 = vld [vmem:[%s5 + $0x38] sm:$0xf]
    %v1036 = vld [vmem:[%s5 + $0x3c] sm:$0xf]
    %v1053 = vunpack.c.l.b16 %v1021
    %v1054 = vunpack.c.l.b16 %v1022
    %v1055 = vunpack.c.l.b16 %v1023
    %v1056 = vunpack.c.l.b16 %v1024
    %v1057 = vunpack.c.l.b16 %v1025
    %v1058 = vunpack.c.l.b16 %v1026
    %v1059 = vunpack.c.l.b16 %v1027
    %v1060 = vunpack.c.l.b16 %v1028
    %v1061 = vunpack.c.l.b16 %v1029
    %v1062 = vunpack.c.l.b16 %v1030
    %v1063 = vunpack.c.l.b16 %v1031
    %v1064 = vunpack.c.l.b16 %v1032
    %v1065 = vunpack.c.l.b16 %v1033
    %v1066 = vunpack.c.l.b16 %v1034
    %v1067 = vunpack.c.l.b16 %v1035
    %v1068 = vunpack.c.l.b16 %v1036
    %v1069 = vpack.c.b16 %v1054, %v1053
    %v1070 = vpack.c.b16 %v1056, %v1055
    %v1071 = vpack.c.b16 %v1058, %v1057
    %v1072 = vpack.c.b16 %v1060, %v1059
    %v1073 = vpack.c.b16 %v1062, %v1061
    %v1074 = vpack.c.b16 %v1064, %v1063
    %v1075 = vpack.c.b16 %v1066, %v1065
    %v1076 = vpack.c.b16 %v1068, %v1067
    %1085 = vmatprep.subr.bf16.mxu0 0
    %1086 = vmatpush1.bf16.msra.mxu0 %v1069
    %1087 = vmatprep.subr.bf16.mxu0 0
    %1088 = vmatpush1.bf16.msra.mxu0 %v1070
    %1089 = vmatprep.subr.bf16.mxu0 0
    %1090 = vmatpush1.bf16.msra.mxu0 %v1071
    %1091 = vmatprep.subr.bf16.mxu0 0
    %1092 = vmatpush1.bf16.msra.mxu0 %v1072
    %1093 = vmatprep.subr.bf16.mxu0 0
    %1094 = vmatpush1.bf16.msra.mxu0 %v1073
    %1095 = vmatprep.subr.bf16.mxu0 0
    %1096 = vmatpush1.bf16.msra.mxu0 %v1074
    %1097 = vmatprep.subr.bf16.mxu0 0
    %1098 = vmatpush1.bf16.msra.mxu0 %v1075
    %1099 = vmatprep.subr.bf16.mxu0 0
    %1100 = vmatpush1.bf16.msra.mxu0 %v1076
    %1101 = vmatprep.subr.bf16.mxu0 0
    %1102 = vmatpush1.bf16.msra.mxu0 0
    %1103 = vmatprep.subr.bf16.mxu0 0
    %1104 = vmatpush1.bf16.msra.mxu0 0
    %1105 = vmatprep.subr.bf16.mxu0 0
    %1106 = vmatpush1.bf16.msra.mxu0 0
    %1107 = vmatprep.subr.bf16.mxu0 0
    %1108 = vmatpush1.bf16.msra.mxu0 0
    %1109 = vmatprep.subr.bf16.mxu0 0
    %1110 = vmatpush1.bf16.msra.mxu0 0
    %1111 = vmatprep.subr.bf16.mxu0 0
    %1112 = vmatpush1.bf16.msra.mxu0 0
    %1113 = vmatprep.subr.bf16.mxu0 0
    %1114 = vmatpush1.bf16.msra.mxu0 0
    %1115 = vmatprep.subr.bf16.mxu0 0
    %1116 = vmatpush1.bf16.msra.mxu0 0
    %1117 = vmatprep.mubr.bf16.mxu0 0
    %1118 = vmatmul.mubr.bf16.gmra.mrb[0].mxu0 %v1020
    %v1119 = vpop.f32.mrb[0].mxu0
    %v1120 = vadd.f32 0.0, %v1119
    %v1121 = vpop.f32.mrb[0].mxu0
    %v1122 = vpop.f32.mrb[0].mxu0
    %v1123 = vadd.f32 0.0, %v1122
    %v1124 = vpop.f32.mrb[0].mxu0
    %1125 = vdwg.mxu0
    %v1126 = vpack.c.bf16 %v1123, %v1120
    %s1127 = scalar_lea.vmem [#allocation8], 32
    %v1128 = vld [vmem:[%s1127] sm:$0xf]
    %v1129 = vld [vmem:[%s1127 + $0x4] sm:$0xf]
    %v1130 = vld [vmem:[%s1127 + $0x8] sm:$0xf]
    %v1131 = vld [vmem:[%s1127 + $0xc] sm:$0xf]
    %v1132 = vld [vmem:[%s1127 + $0x10] sm:$0xf]
    %v1133 = vld [vmem:[%s1127 + $0x14] sm:$0xf]
    %v1134 = vld [vmem:[%s1127 + $0x18] sm:$0xf]
    %v1135 = vld [vmem:[%s1127 + $0x1c] sm:$0xf]
    %s1136 = scalar_lea.vmem %s8, 1
    %v1137 = vld [vmem:[%s1136] sm:$0x1]
    %s1138 = scalar_lea.vmem %s9, 1
    %v1139 = vld [vmem:[%s1138] sm:$0x1]
    %s1140 = scalar_lea.vmem %s10, 1
    %v1141 = vld [vmem:[%s1140] sm:$0x1]
    %v1142 = vlaneseq
    %v1143 = vshrl.u32 %v1142, 7
    %v1144 = vsub.s32 0, %v1143
    %v1145 = vrot.slane %v132, %v1144
    %v1147 = vsel %vm443, %v1126, 0
    %v1150 = vsel %vm443, %v285, 0
    %1152 = vmatprep.subr.bf16.mxu0 0
    %1153 = vmatpush1.bf16.xpose.msra.mxu0 %v1150
    %1154 = vmatprep.subr.bf16.mxu0 0
    %1155 = vmatpush1.bf16.xpose.msra.mxu0 0
    %1156 = vmatprep.subr.bf16.mxu0 0
    %1157 = vmatpush1.bf16.xpose.msra.mxu0 0
    %1158 = vmatprep.subr.bf16.mxu0 0
    %1159 = vmatpush1.bf16.xpose.msra.mxu0 0
    %1160 = vmatprep.subr.bf16.mxu0 0
    %1161 = vmatpush1.bf16.xpose.msra.mxu0 0
    %1162 = vmatprep.subr.bf16.mxu0 0
    %1163 = vmatpush1.bf16.xpose.msra.mxu0 0
    %1164 = vmatprep.subr.bf16.mxu0 0
    %1165 = vmatpush1.bf16.xpose.msra.mxu0 0
    %1166 = vmatprep.subr.bf16.mxu0 0
    %1167 = vmatpush1.bf16.xpose.msra.mxu0 0
    %1168 = vmatprep.subr.bf16.mxu0 0
    %1169 = vmatpush1.bf16.xpose.msra.mxu0 0
    %1170 = vmatprep.subr.bf16.mxu0 0
    %1171 = vmatpush1.bf16.xpose.msra.mxu0 0
    %1172 = vmatprep.subr.bf16.mxu0 0
    %1173 = vmatpush1.bf16.xpose.msra.mxu0 0
    %1174 = vmatprep.subr.bf16.mxu0 0
    %1175 = vmatpush1.bf16.xpose.msra.mxu0 0
    %1176 = vmatprep.subr.bf16.mxu0 0
    %1177 = vmatpush1.bf16.xpose.msra.mxu0 0
    %1178 = vmatprep.subr.bf16.mxu0 0
    %1179 = vmatpush1.bf16.xpose.msra.mxu0 0
    %1180 = vmatprep.subr.bf16.mxu0 0
    %1181 = vmatpush1.bf16.xpose.msra.mxu0 0
    %1182 = vmatprep.subr.bf16.mxu0 0
    %1183 = vmatpush1.bf16.xpose.msra.mxu0 0
    %1184 = vmatprep.mubr.bf16.mxu0 0
    %1185 = vmatmul.mubr.bf16.gmra.mrb[0].mxu0 %v1147
    %v1186 = vpop.f32.mrb[0].mxu0
    %v1187 = vadd.f32 %v1145, %v1186
    %v1188 = vpop.f32.mrb[0].mxu0
    %v1189 = vpop.f32.mrb[0].mxu0
    %v1190 = vpop.f32.mrb[0].mxu0
    %1191 = vdwg.mxu0
    %v1192 = vsel %vm490, %v1187, -inf
    %1193 = vmax.xlane.f32.xlu0 %v1192
    %v1194 = vpop.xlane.xlu0 %1193
    %v1195 = vsub.f32 %v1187, %v1194
    %v1196 = vmul.f32 %v1195, 1.442695
    %v1197 = vpow.pop %v1196
    %v1198 = vsel %vm490, %v1197, 0.0
    %1199 = vadd.xlane.f32.xlu0 %v1198
    %v1200 = vpop.xlane.xlu0 %1199
    %v1201 = vrcp.pop %v1200
    %v1202 = vmul.f32 %v1197, %v1201
    %v1203 = vpack.c.bf16 %v1202, %v1202
    %1205 = vrot.lane.b32.xlu0 %v285, 64
    %v1206 = vpop.permute.xlu0 %1205
    %v1208 = vsel %vm490, %v1203, 0
    %v1211 = vsel %vm506, %v1206, 0
    %1213 = vmatprep.subr.bf16.mxu0 0
    %1214 = vmatpush1.bf16.msra.mxu0 %v1211
    %1215 = vmatprep.subr.bf16.mxu0 0
    %1216 = vmatpush1.bf16.msra.mxu0 0
    %1217 = vmatprep.subr.bf16.mxu0 0
    %1218 = vmatpush1.bf16.msra.mxu0 0
    %1219 = vmatprep.subr.bf16.mxu0 0
    %1220 = vmatpush1.bf16.msra.mxu0 0
    %1221 = vmatprep.subr.bf16.mxu0 0
    %1222 = vmatpush1.bf16.msra.mxu0 0
    %1223 = vmatprep.subr.bf16.mxu0 0
    %1224 = vmatpush1.bf16.msra.mxu0 0
    %1225 = vmatprep.subr.bf16.mxu0 0
    %1226 = vmatpush1.bf16.msra.mxu0 0
    %1227 = vmatprep.subr.bf16.mxu0 0
    %1228 = vmatpush1.bf16.msra.mxu0 0
    %1229 = vmatprep.subr.bf16.mxu0 0
    %1230 = vmatpush1.bf16.msra.mxu0 0
    %1231 = vmatprep.subr.bf16.mxu0 0
    %1232 = vmatpush1.bf16.msra.mxu0 0
    %1233 = vmatprep.subr.bf16.mxu0 0
    %1234 = vmatpush1.bf16.msra.mxu0 0
    %1235 = vmatprep.subr.bf16.mxu0 0
    %1236 = vmatpush1.bf16.msra.mxu0 0
    %1237 = vmatprep.subr.bf16.mxu0 0
    %1238 = vmatpush1.bf16.msra.mxu0 0
    %1239 = vmatprep.subr.bf16.mxu0 0
    %1240 = vmatpush1.bf16.msra.mxu0 0
    %1241 = vmatprep.subr.bf16.mxu0 0
    %1242 = vmatpush1.bf16.msra.mxu0 0
    %1243 = vmatprep.subr.bf16.mxu0 0
    %1244 = vmatpush1.bf16.msra.mxu0 0
    %1245 = vmatprep.mubr.bf16.mxu0 0
    %1246 = vmatmul.mubr.bf16.gmra.mrb[0].mxu0 %v1208
    %v1247 = vpop.f32.mrb[0].mxu0
    %v1248 = vadd.f32 0.0, %v1247
    %v1249 = vpop.f32.mrb[0].mxu0
    %v1250 = vpop.f32.mrb[0].mxu0
    %v1251 = vpop.f32.mrb[0].mxu0
    %1252 = vdwg.mxu0
    %1254 = vrot.lane.b32.xlu0 %v1126, 96
    %v1255 = vpop.permute.xlu0 %1254
    %1256 = vrot.lane.b32.xlu0 %v285, 96
    %v1257 = vpop.permute.xlu0 %1256
    %v1259 = vsel %vm443, %v1255, 0
    %v1262 = vsel %vm443, %v1257, 0
    %1264 = vmatprep.subr.bf16.mxu0 0
    %1265 = vmatpush1.bf16.xpose.msra.mxu0 %v1262
    %1266 = vmatprep.subr.bf16.mxu0 0
    %1267 = vmatpush1.bf16.xpose.msra.mxu0 0
    %1268 = vmatprep.subr.bf16.mxu0 0
    %1269 = vmatpush1.bf16.xpose.msra.mxu0 0
    %1270 = vmatprep.subr.bf16.mxu0 0
    %1271 = vmatpush1.bf16.xpose.msra.mxu0 0
    %1272 = vmatprep.subr.bf16.mxu0 0
    %1273 = vmatpush1.bf16.xpose.msra.mxu0 0
    %1274 = vmatprep.subr.bf16.mxu0 0
    %1275 = vmatpush1.bf16.xpose.msra.mxu0 0
    %1276 = vmatprep.subr.bf16.mxu0 0
    %1277 = vmatpush1.bf16.xpose.msra.mxu0 0
    %1278 = vmatprep.subr.bf16.mxu0 0
    %1279 = vmatpush1.bf16.xpose.msra.mxu0 0
    %1280 = vmatprep.subr.bf16.mxu0 0
    %1281 = vmatpush1.bf16.xpose.msra.mxu0 0
    %1282 = vmatprep.subr.bf16.mxu0 0
    %1283 = vmatpush1.bf16.xpose.msra.mxu0 0
    %1284 = vmatprep.subr.bf16.mxu0 0
    %1285 = vmatpush1.bf16.xpose.msra.mxu0 0
    %1286 = vmatprep.subr.bf16.mxu0 0
    %1287 = vmatpush1.bf16.xpose.msra.mxu0 0
    %1288 = vmatprep.subr.bf16.mxu0 0
    %1289 = vmatpush1.bf16.xpose.msra.mxu0 0
    %1290 = vmatprep.subr.bf16.mxu0 0
    %1291 = vmatpush1.bf16.xpose.msra.mxu0 0
    %1292 = vmatprep.subr.bf16.mxu0 0
    %1293 = vmatpush1.bf16.xpose.msra.mxu0 0
    %1294 = vmatprep.subr.bf16.mxu0 0
    %1295 = vmatpush1.bf16.xpose.msra.mxu0 0
    %1296 = vmatprep.mubr.bf16.mxu0 0
    %1297 = vmatmul.mubr.bf16.gmra.mrb[0].mxu0 %v1259
    %v1298 = vpop.f32.mrb[0].mxu0
    %v1299 = vadd.f32 %v1145, %v1298
    %v1300 = vpop.f32.mrb[0].mxu0
    %v1301 = vpop.f32.mrb[0].mxu0
    %v1302 = vpop.f32.mrb[0].mxu0
    %1303 = vdwg.mxu0
    %v1304 = vsel %vm490, %v1299, -inf
    %1305 = vmax.xlane.f32.xlu0 %v1304
    %v1306 = vpop.xlane.xlu0 %1305
    %v1307 = vsub.f32 %v1299, %v1306
    %v1308 = vmul.f32 %v1307, 1.442695
    %v1309 = vpow.pop %v1308
    %v1310 = vsel %vm490, %v1309, 0.0
    %1311 = vadd.xlane.f32.xlu0 %v1310
    %v1312 = vpop.xlane.xlu0 %1311
    %v1313 = vrcp.pop %v1312
    %v1314 = vmul.f32 %v1309, %v1313
    %v1315 = vpack.c.bf16 %v1314, %v1314
    %1316 = vrot.lane.b32.xlu0 %v285, 32
    %v1317 = vpop.permute.xlu0 %1316
    %v1319 = vsel %vm490, %v1315, 0
    %v1322 = vsel %vm506, %v1317, 0
    %1324 = vmatprep.subr.bf16.mxu0 0
    %1325 = vmatpush1.bf16.msra.mxu0 %v1322
    %1326 = vmatprep.subr.bf16.mxu0 0
    %1327 = vmatpush1.bf16.msra.mxu0 0
    %1328 = vmatprep.subr.bf16.mxu0 0
    %1329 = vmatpush1.bf16.msra.mxu0 0
    %1330 = vmatprep.subr.bf16.mxu0 0
    %1331 = vmatpush1.bf16.msra.mxu0 0
    %1332 = vmatprep.subr.bf16.mxu0 0
    %1333 = vmatpush1.bf16.msra.mxu0 0
    %1334 = vmatprep.subr.bf16.mxu0 0
    %1335 = vmatpush1.bf16.msra.mxu0 0
    %1336 = vmatprep.subr.bf16.mxu0 0
    %1337 = vmatpush1.bf16.msra.mxu0 0
    %1338 = vmatprep.subr.bf16.mxu0 0
    %1339 = vmatpush1.bf16.msra.mxu0 0
    %1340 = vmatprep.subr.bf16.mxu0 0
    %1341 = vmatpush1.bf16.msra.mxu0 0
    %1342 = vmatprep.subr.bf16.mxu0 0
    %1343 = vmatpush1.bf16.msra.mxu0 0
    %1344 = vmatprep.subr.bf16.mxu0 0
    %1345 = vmatpush1.bf16.msra.mxu0 0
    %1346 = vmatprep.subr.bf16.mxu0 0
    %1347 = vmatpush1.bf16.msra.mxu0 0
    %1348 = vmatprep.subr.bf16.mxu0 0
    %1349 = vmatpush1.bf16.msra.mxu0 0
    %1350 = vmatprep.subr.bf16.mxu0 0
    %1351 = vmatpush1.bf16.msra.mxu0 0
    %1352 = vmatprep.subr.bf16.mxu0 0
    %1353 = vmatpush1.bf16.msra.mxu0 0
    %1354 = vmatprep.subr.bf16.mxu0 0
    %1355 = vmatpush1.bf16.msra.mxu0 0
    %1356 = vmatprep.mubr.bf16.mxu0 0
    %1357 = vmatmul.mubr.bf16.gmra.mrb[0].mxu0 %v1319
    %v1358 = vpop.f32.mrb[0].mxu0
    %v1359 = vadd.f32 0.0, %v1358
    %v1360 = vpop.f32.mrb[0].mxu0
    %v1361 = vpop.f32.mrb[0].mxu0
    %v1362 = vpop.f32.mrb[0].mxu0
    %1363 = vdwg.mxu0
    %1365 = vrot.lane.b32.xlu0 %v1359, 32
    %v1366 = vpop.permute.xlu0 %1365
    %v1368 = vsel %vm443, %v1248, %v1366
    %v1369 = vlaneseq
    %v1370 = vshrl.u32 %v1369, 7
    %v1371 = vsub.s32 1, %v1370
    %v1372 = vrot.slane %v132, %v1371
    %v1373 = vrot.slane %v1126, 4
    %v1374 = vrot.slane %v285, 4
    %v1376 = vsel %vm443, %v1373, 0
    %v1379 = vsel %vm443, %v1374, 0
    %1381 = vmatprep.subr.bf16.mxu0 0
    %1382 = vmatpush1.bf16.xpose.msra.mxu0 %v1379
    %1383 = vmatprep.subr.bf16.mxu0 0
    %1384 = vmatpush1.bf16.xpose.msra.mxu0 0
    %1385 = vmatprep.subr.bf16.mxu0 0
    %1386 = vmatpush1.bf16.xpose.msra.mxu0 0
    %1387 = vmatprep.subr.bf16.mxu0 0
    %1388 = vmatpush1.bf16.xpose.msra.mxu0 0
    %1389 = vmatprep.subr.bf16.mxu0 0
    %1390 = vmatpush1.bf16.xpose.msra.mxu0 0
    %1391 = vmatprep.subr.bf16.mxu0 0
    %1392 = vmatpush1.bf16.xpose.msra.mxu0 0
    %1393 = vmatprep.subr.bf16.mxu0 0
    %1394 = vmatpush1.bf16.xpose.msra.mxu0 0
    %1395 = vmatprep.subr.bf16.mxu0 0
    %1396 = vmatpush1.bf16.xpose.msra.mxu0 0
    %1397 = vmatprep.subr.bf16.mxu0 0
    %1398 = vmatpush1.bf16.xpose.msra.mxu0 0
    %1399 = vmatprep.subr.bf16.mxu0 0
    %1400 = vmatpush1.bf16.xpose.msra.mxu0 0
    %1401 = vmatprep.subr.bf16.mxu0 0
    %1402 = vmatpush1.bf16.xpose.msra.mxu0 0
    %1403 = vmatprep.subr.bf16.mxu0 0
    %1404 = vmatpush1.bf16.xpose.msra.mxu0 0
    %1405 = vmatprep.subr.bf16.mxu0 0
    %1406 = vmatpush1.bf16.xpose.msra.mxu0 0
    %1407 = vmatprep.subr.bf16.mxu0 0
    %1408 = vmatpush1.bf16.xpose.msra.mxu0 0
    %1409 = vmatprep.subr.bf16.mxu0 0
    %1410 = vmatpush1.bf16.xpose.msra.mxu0 0
    %1411 = vmatprep.subr.bf16.mxu0 0
    %1412 = vmatpush1.bf16.xpose.msra.mxu0 0
    %1413 = vmatprep.mubr.bf16.mxu0 0
    %1414 = vmatmul.mubr.bf16.gmra.mrb[0].mxu0 %v1376
    %v1415 = vpop.f32.mrb[0].mxu0
    %v1416 = vadd.f32 %v1372, %v1415
    %v1417 = vpop.f32.mrb[0].mxu0
    %v1418 = vpop.f32.mrb[0].mxu0
    %v1419 = vpop.f32.mrb[0].mxu0
    %1420 = vdwg.mxu0
    %v1421 = vsel %vm490, %v1416, -inf
    %1422 = vmax.xlane.f32.xlu0 %v1421
    %v1423 = vpop.xlane.xlu0 %1422
    %v1424 = vsub.f32 %v1416, %v1423
    %v1425 = vmul.f32 %v1424, 1.442695
    %v1426 = vpow.pop %v1425
    %v1427 = vsel %vm490, %v1426, 0.0
    %1428 = vadd.xlane.f32.xlu0 %v1427
    %v1429 = vpop.xlane.xlu0 %1428
    %v1430 = vrcp.pop %v1429
    %v1431 = vmul.f32 %v1426, %v1430
    %v1432 = vpack.c.bf16 %v1431, %v1431
    %1433 = vrot.lane.b32.xlu0 %v1374, 64
    %v1434 = vpop.permute.xlu0 %1433
    %v1436 = vsel %vm490, %v1432, 0
    %v1439 = vsel %vm506, %v1434, 0
    %1441 = vmatprep.subr.bf16.mxu0 0
    %1442 = vmatpush1.bf16.msra.mxu0 %v1439
    %1443 = vmatprep.subr.bf16.mxu0 0
    %1444 = vmatpush1.bf16.msra.mxu0 0
    %1445 = vmatprep.subr.bf16.mxu0 0
    %1446 = vmatpush1.bf16.msra.mxu0 0
    %1447 = vmatprep.subr.bf16.mxu0 0
    %1448 = vmatpush1.bf16.msra.mxu0 0
    %1449 = vmatprep.subr.bf16.mxu0 0
    %1450 = vmatpush1.bf16.msra.mxu0 0
    %1451 = vmatprep.subr.bf16.mxu0 0
    %1452 = vmatpush1.bf16.msra.mxu0 0
    %1453 = vmatprep.subr.bf16.mxu0 0
    %1454 = vmatpush1.bf16.msra.mxu0 0
    %1455 = vmatprep.subr.bf16.mxu0 0
    %1456 = vmatpush1.bf16.msra.mxu0 0
    %1457 = vmatprep.subr.bf16.mxu0 0
    %1458 = vmatpush1.bf16.msra.mxu0 0
    %1459 = vmatprep.subr.bf16.mxu0 0
    %1460 = vmatpush1.bf16.msra.mxu0 0
    %1461 = vmatprep.subr.bf16.mxu0 0
    %1462 = vmatpush1.bf16.msra.mxu0 0
    %1463 = vmatprep.subr.bf16.mxu0 0
    %1464 = vmatpush1.bf16.msra.mxu0 0
    %1465 = vmatprep.subr.bf16.mxu0 0
    %1466 = vmatpush1.bf16.msra.mxu0 0
    %1467 = vmatprep.subr.bf16.mxu0 0
    %1468 = vmatpush1.bf16.msra.mxu0 0
    %1469 = vmatprep.subr.bf16.mxu0 0
    %1470 = vmatpush1.bf16.msra.mxu0 0
    %1471 = vmatprep.subr.bf16.mxu0 0
    %1472 = vmatpush1.bf16.msra.mxu0 0
    %1473 = vmatprep.mubr.bf16.mxu0 0
    %1474 = vmatmul.mubr.bf16.gmra.mrb[0].mxu0 %v1436
    %v1475 = vpop.f32.mrb[0].mxu0
    %v1476 = vadd.f32 0.0, %v1475
    %v1477 = vpop.f32.mrb[0].mxu0
    %v1478 = vpop.f32.mrb[0].mxu0
    %v1479 = vpop.f32.mrb[0].mxu0
    %1480 = vdwg.mxu0
    %1481 = vrot.lane.b32.xlu0 %v1373, 96
    %v1482 = vpop.permute.xlu0 %1481
    %1483 = vrot.lane.b32.xlu0 %v1374, 96
    %v1484 = vpop.permute.xlu0 %1483
    %v1486 = vsel %vm443, %v1482, 0
    %v1489 = vsel %vm443, %v1484, 0
    %1491 = vmatprep.subr.bf16.mxu0 0
    %1492 = vmatpush1.bf16.xpose.msra.mxu0 %v1489
    %1493 = vmatprep.subr.bf16.mxu0 0
    %1494 = vmatpush1.bf16.xpose.msra.mxu0 0
    %1495 = vmatprep.subr.bf16.mxu0 0
    %1496 = vmatpush1.bf16.xpose.msra.mxu0 0
    %1497 = vmatprep.subr.bf16.mxu0 0
    %1498 = vmatpush1.bf16.xpose.msra.mxu0 0
    %1499 = vmatprep.subr.bf16.mxu0 0
    %1500 = vmatpush1.bf16.xpose.msra.mxu0 0
    %1501 = vmatprep.subr.bf16.mxu0 0
    %1502 = vmatpush1.bf16.xpose.msra.mxu0 0
    %1503 = vmatprep.subr.bf16.mxu0 0
    %1504 = vmatpush1.bf16.xpose.msra.mxu0 0
    %1505 = vmatprep.subr.bf16.mxu0 0
    %1506 = vmatpush1.bf16.xpose.msra.mxu0 0
    %1507 = vmatprep.subr.bf16.mxu0 0
    %1508 = vmatpush1.bf16.xpose.msra.mxu0 0
    %1509 = vmatprep.subr.bf16.mxu0 0
    %1510 = vmatpush1.bf16.xpose.msra.mxu0 0
    %1511 = vmatprep.subr.bf16.mxu0 0
    %1512 = vmatpush1.bf16.xpose.msra.mxu0 0
    %1513 = vmatprep.subr.bf16.mxu0 0
    %1514 = vmatpush1.bf16.xpose.msra.mxu0 0
    %1515 = vmatprep.subr.bf16.mxu0 0
    %1516 = vmatpush1.bf16.xpose.msra.mxu0 0
    %1517 = vmatprep.subr.bf16.mxu0 0
    %1518 = vmatpush1.bf16.xpose.msra.mxu0 0
    %1519 = vmatprep.subr.bf16.mxu0 0
    %1520 = vmatpush1.bf16.xpose.msra.mxu0 0
    %1521 = vmatprep.subr.bf16.mxu0 0
    %1522 = vmatpush1.bf16.xpose.msra.mxu0 0
    %1523 = vmatprep.mubr.bf16.mxu0 0
    %1524 = vmatmul.mubr.bf16.gmra.mrb[0].mxu0 %v1486
    %v1525 = vpop.f32.mrb[0].mxu0
    %v1526 = vadd.f32 %v1372, %v1525
    %v1527 = vpop.f32.mrb[0].mxu0
    %v1528 = vpop.f32.mrb[0].mxu0
    %v1529 = vpop.f32.mrb[0].mxu0
    %1530 = vdwg.mxu0
    %v1531 = vsel %vm490, %v1526, -inf
    %1532 = vmax.xlane.f32.xlu0 %v1531
    %v1533 = vpop.xlane.xlu0 %1532
    %v1534 = vsub.f32 %v1526, %v1533
    %v1535 = vmul.f32 %v1534, 1.442695
    %v1536 = vpow.pop %v1535
    %v1537 = vsel %vm490, %v1536, 0.0
    %1538 = vadd.xlane.f32.xlu0 %v1537
    %v1539 = vpop.xlane.xlu0 %1538
    %v1540 = vrcp.pop %v1539
    %v1541 = vmul.f32 %v1536, %v1540
    %v1542 = vpack.c.bf16 %v1541, %v1541
    %1543 = vrot.lane.b32.xlu0 %v1374, 32
    %v1544 = vpop.permute.xlu0 %1543
    %v1546 = vsel %vm490, %v1542, 0
    %v1549 = vsel %vm506, %v1544, 0
    %1551 = vmatprep.subr.bf16.mxu0 0
    %1552 = vmatpush1.bf16.msra.mxu0 %v1549
    %1553 = vmatprep.subr.bf16.mxu0 0
    %1554 = vmatpush1.bf16.msra.mxu0 0
    %1555 = vmatprep.subr.bf16.mxu0 0
    %1556 = vmatpush1.bf16.msra.mxu0 0
    %1557 = vmatprep.subr.bf16.mxu0 0
    %1558 = vmatpush1.bf16.msra.mxu0 0
    %1559 = vmatprep.subr.bf16.mxu0 0
    %1560 = vmatpush1.bf16.msra.mxu0 0
    %1561 = vmatprep.subr.bf16.mxu0 0
    %1562 = vmatpush1.bf16.msra.mxu0 0
    %1563 = vmatprep.subr.bf16.mxu0 0
    %1564 = vmatpush1.bf16.msra.mxu0 0
    %1565 = vmatprep.subr.bf16.mxu0 0
    %1566 = vmatpush1.bf16.msra.mxu0 0
    %1567 = vmatprep.subr.bf16.mxu0 0
    %1568 = vmatpush1.bf16.msra.mxu0 0
    %1569 = vmatprep.subr.bf16.mxu0 0
    %1570 = vmatpush1.bf16.msra.mxu0 0
    %1571 = vmatprep.subr.bf16.mxu0 0
    %1572 = vmatpush1.bf16.msra.mxu0 0
    %1573 = vmatprep.subr.bf16.mxu0 0
    %1574 = vmatpush1.bf16.msra.mxu0 0
    %1575 = vmatprep.subr.bf16.mxu0 0
    %1576 = vmatpush1.bf16.msra.mxu0 0
    %1577 = vmatprep.subr.bf16.mxu0 0
    %1578 = vmatpush1.bf16.msra.mxu0 0
    %1579 = vmatprep.subr.bf16.mxu0 0
    %1580 = vmatpush1.bf16.msra.mxu0 0
    %1581 = vmatprep.subr.bf16.mxu0 0
    %1582 = vmatpush1.bf16.msra.mxu0 0
    %1583 = vmatprep.mubr.bf16.mxu0 0
    %1584 = vmatmul.mubr.bf16.gmra.mrb[0].mxu0 %v1546
    %v1585 = vpop.f32.mrb[0].mxu0
    %v1586 = vadd.f32 0.0, %v1585
    %v1587 = vpop.f32.mrb[0].mxu0
    %v1588 = vpop.f32.mrb[0].mxu0
    %v1589 = vpop.f32.mrb[0].mxu0
    %1590 = vdwg.mxu0
    %1592 = vrot.lane.b32.xlu0 %v1586, 32
    %v1593 = vpop.permute.xlu0 %1592
    %v1595 = vsel %vm443, %v1476, %v1593
    %v1596 = vpack.c.bf16 %v1595, %v1368
    %v1598 = vlaneseq
    %v1599 = vshrl.u32 %v1598, 7
    %v1600 = vsub.s32 0, %v1599
    %v1601 = vrot.slane %v1137, %v1600
    %v1611 = vunpack.c.l.b16 %v1128
    %v1612 = vunpack.c.l.b16 %v1129
    %v1613 = vunpack.c.l.b16 %v1130
    %v1614 = vunpack.c.l.b16 %v1131
    %v1615 = vunpack.c.l.b16 %v1132
    %v1616 = vunpack.c.l.b16 %v1133
    %v1617 = vunpack.c.l.b16 %v1134
    %v1618 = vunpack.c.l.b16 %v1135
    %v1619 = vpack.c.b16 %v1612, %v1611
    %v1620 = vpack.c.b16 %v1614, %v1613
    %v1621 = vpack.c.b16 %v1616, %v1615
    %v1622 = vpack.c.b16 %v1618, %v1617
    %v1628 = vsel %vm920, %v1596, 0
    %1630 = vmatprep.subr.bf16.mxu0 0
    %1631 = vmatpush1.bf16.msra.mxu0 %v1619
    %1632 = vmatprep.subr.bf16.mxu0 0
    %1633 = vmatpush1.bf16.msra.mxu0 %v1620
    %1634 = vmatprep.subr.bf16.mxu0 0
    %1635 = vmatpush1.bf16.msra.mxu0 %v1621
    %1636 = vmatprep.subr.bf16.mxu0 0
    %1637 = vmatpush1.bf16.msra.mxu0 %v1622
    %1638 = vmatprep.subr.bf16.mxu0 0
    %1639 = vmatpush1.bf16.msra.mxu0 0
    %1640 = vmatprep.subr.bf16.mxu0 0
    %1641 = vmatpush1.bf16.msra.mxu0 0
    %1642 = vmatprep.subr.bf16.mxu0 0
    %1643 = vmatpush1.bf16.msra.mxu0 0
    %1644 = vmatprep.subr.bf16.mxu0 0
    %1645 = vmatpush1.bf16.msra.mxu0 0
    %1646 = vmatprep.subr.bf16.mxu0 0
    %1647 = vmatpush1.bf16.msra.mxu0 0
    %1648 = vmatprep.subr.bf16.mxu0 0
    %1649 = vmatpush1.bf16.msra.mxu0 0
    %1650 = vmatprep.subr.bf16.mxu0 0
    %1651 = vmatpush1.bf16.msra.mxu0 0
    %1652 = vmatprep.subr.bf16.mxu0 0
    %1653 = vmatpush1.bf16.msra.mxu0 0
    %1654 = vmatprep.subr.bf16.mxu0 0
    %1655 = vmatpush1.bf16.msra.mxu0 0
    %1656 = vmatprep.subr.bf16.mxu0 0
    %1657 = vmatpush1.bf16.msra.mxu0 0
    %1658 = vmatprep.subr.bf16.mxu0 0
    %1659 = vmatpush1.bf16.msra.mxu0 0
    %1660 = vmatprep.subr.bf16.mxu0 0
    %1661 = vmatpush1.bf16.msra.mxu0 0
    %1662 = vmatprep.mubr.bf16.mxu0 0
    %1663 = vmatmul.mubr.bf16.gmra.mrb[0].mxu0 %v1628
    %v1664 = vpop.f32.mrb[0].mxu0
    %v1665 = vadd.f32 %v1601, %v1664
    %v1666 = vpop.f32.mrb[0].mxu0
    %v1667 = vpop.f32.mrb[0].mxu0
    %v1668 = vadd.f32 %v1601, %v1667
    %v1669 = vpop.f32.mrb[0].mxu0
    %1670 = vdwg.mxu0
    %v1671 = vadd.f32 %v1665, %v1018
    %v1672 = vadd.f32 %v1668, %v1019
    %1673 = vadd.xlane.f32.xlu0 %v1671
    %v1674 = vpop.xlane.xlu0 %1673
    %1675 = vadd.xlane.f32.xlu0 %v1672
    %v1676 = vpop.xlane.xlu0 %1675
    %v1677 = vmul.f32 %v1674, %v971
    %v1678 = vmul.f32 %v1676, %v971
    %v1679 = vsub.f32 %v1671, %v1677
    %v1680 = vsub.f32 %v1672, %v1678
    %v1681 = vmul.f32 %v1679, %v1679
    %v1682 = vmul.f32 %v1680, %v1680
    %1683 = vadd.xlane.f32.xlu0 %v1681
    %v1684 = vpop.xlane.xlu0 %1683
    %1685 = vadd.xlane.f32.xlu0 %v1682
    %v1686 = vpop.xlane.xlu0 %1685
    %v1687 = vmul.f32 %v1684, 0.007874016
    %v1688 = vmul.f32 %v1686, 0.007874016
    %v1689 = vrsqrt.pop %v1687
    %v1690 = vmul.f32 %v1687, %v1689
    %vm1691 = vcmp.eq.f32.partialorder %v1687, inf
    %v1692 = vsel %vm1691, %v1687, %v1690
    %vm1693 = vcmp.eq.f32.partialorder %v1687, 0.0
    %v1694 = vand.u32 %v1687, 2147483648
    %v1695 = vsel %vm1693, %v1694, %v1692
    %v1696 = vrsqrt.pop %v1688
    %v1697 = vmul.f32 %v1688, %v1696
    %vm1698 = vcmp.eq.f32.partialorder %v1688, inf
    %v1699 = vsel %vm1698, %v1688, %v1697
    %vm1700 = vcmp.eq.f32.partialorder %v1688, 0.0
    %v1701 = vand.u32 %v1688, 2147483648
    %v1702 = vsel %vm1700, %v1701, %v1699
    %v1703 = vadd.f32 %v1695, 0.001
    %v1704 = vadd.f32 %v1702, 0.001
    %v1705 = vrcp.pop %v1703
    %v1706 = vrcp.pop %v1704
    %v1707 = vmul.f32 %v1679, %v1705
    %v1708 = vmul.f32 %v1680, %v1706
    %v1710 = vlaneseq
    %v1711 = vshrl.u32 %v1710, 7
    %v1712 = vsub.s32 0, %v1711
    %v1713 = vrot.slane %v1139, %v1712
    %v1715 = vmul.f32 %v1707, %v1713
    %v1716 = vmul.f32 %v1708, %v1713
    %v1718 = vlaneseq
    %v1719 = vshrl.u32 %v1718, 7
    %v1720 = vsub.s32 0, %v1719
    %v1721 = vrot.slane %v1141, %v1720
    %v1723 = vadd.f32 %v1715, %v1721
    %v1724 = vadd.f32 %v1716, %v1721
    %v1725 = vpack.c.bf16 %v1724, %v1723
    %v1726 = vld [vmem:[%s11] sm:$0xff]
    %v1727 = vld [vmem:[%s11 + $0x8] sm:$0xff]
    %v1728 = vld [vmem:[%s11 + $0x10] sm:$0xff]
    %v1729 = vld [vmem:[%s11 + $0x18] sm:$0xff]
    %v1730 = vld [vmem:[%s11 + $0x20] sm:$0xff]
    %v1731 = vld [vmem:[%s11 + $0x28] sm:$0xff]
    %v1732 = vld [vmem:[%s11 + $0x30] sm:$0xff]
    %v1733 = vld [vmem:[%s11 + $0x38] sm:$0xff]
    %v1734 = vld [vmem:[%s11 + $0x40] sm:$0xff]
    %v1735 = vld [vmem:[%s11 + $0x48] sm:$0xff]
    %v1736 = vld [vmem:[%s11 + $0x50] sm:$0xff]
    %v1737 = vld [vmem:[%s11 + $0x58] sm:$0xff]
    %v1738 = vld [vmem:[%s11 + $0x60] sm:$0xff]
    %v1739 = vld [vmem:[%s11 + $0x68] sm:$0xff]
    %v1740 = vld [vmem:[%s11 + $0x70] sm:$0xff]
    %v1741 = vld [vmem:[%s11 + $0x78] sm:$0xff]
    %v1742 = vld [vmem:[%s12] sm:$0x3]
    %v1744 = vlaneseq
    %v1745 = vshrl.u32 %v1744, 7
    %v1746 = vsub.s32 0, %v1745
    %v1747 = vrot.slane %v1742, %v1746
    %v1748 = vlaneseq
    %v1749 = vshrl.u32 %v1748, 7
    %v1750 = vsub.s32 1, %v1749
    %v1751 = vrot.slane %v1742, %v1750
    %v1770 = vunpack.c.l.b16 %v1726
    %v1771 = vunpack.c.h.b16 %v1726
    %v1772 = vunpack.c.l.b16 %v1727
    %v1773 = vunpack.c.h.b16 %v1727
    %v1774 = vunpack.c.l.b16 %v1728
    %v1775 = vunpack.c.h.b16 %v1728
    %v1776 = vunpack.c.l.b16 %v1729
    %v1777 = vunpack.c.h.b16 %v1729
    %v1778 = vunpack.c.l.b16 %v1730
    %v1779 = vunpack.c.h.b16 %v1730
    %v1780 = vunpack.c.l.b16 %v1731
    %v1781 = vunpack.c.h.b16 %v1731
    %v1782 = vunpack.c.l.b16 %v1732
    %v1783 = vunpack.c.h.b16 %v1732
    %v1784 = vunpack.c.l.b16 %v1733
    %v1785 = vunpack.c.h.b16 %v1733
    %v1786 = vunpack.c.l.b16 %v1734
    %v1787 = vunpack.c.h.b16 %v1734
    %v1788 = vunpack.c.l.b16 %v1735
    %v1789 = vunpack.c.h.b16 %v1735
    %v1790 = vunpack.c.l.b16 %v1736
    %v1791 = vunpack.c.h.b16 %v1736
    %v1792 = vunpack.c.l.b16 %v1737
    %v1793 = vunpack.c.h.b16 %v1737
    %v1794 = vunpack.c.l.b16 %v1738
    %v1795 = vunpack.c.h.b16 %v1738
    %v1796 = vunpack.c.l.b16 %v1739
    %v1797 = vunpack.c.h.b16 %v1739
    %v1798 = vunpack.c.l.b16 %v1740
    %v1799 = vunpack.c.h.b16 %v1740
    %v1800 = vunpack.c.l.b16 %v1741
    %v1801 = vunpack.c.h.b16 %v1741
    %v1802 = vpack.c.b16 %v1772, %v1770
    %v1803 = vpack.c.b16 %v1773, %v1771
    %v1804 = vpack.c.b16 %v1776, %v1774
    %v1805 = vpack.c.b16 %v1777, %v1775
    %v1806 = vpack.c.b16 %v1780, %v1778
    %v1807 = vpack.c.b16 %v1781, %v1779
    %v1808 = vpack.c.b16 %v1784, %v1782
    %v1809 = vpack.c.b16 %v1785, %v1783
    %v1810 = vpack.c.b16 %v1788, %v1786
    %v1811 = vpack.c.b16 %v1789, %v1787
    %v1812 = vpack.c.b16 %v1792, %v1790
    %v1813 = vpack.c.b16 %v1793, %v1791
    %v1814 = vpack.c.b16 %v1796, %v1794
    %v1815 = vpack.c.b16 %v1797, %v1795
    %v1816 = vpack.c.b16 %v1800, %v1798
    %v1817 = vpack.c.b16 %v1801, %v1799
    %1834 = vmatprep.subr.bf16.mxu0 %v1803
    %1835 = vmatpush1.bf16.msra.mxu0 %v1802
    %1836 = vmatprep.subr.bf16.mxu0 %v1805
    %1837 = vmatpush1.bf16.msra.mxu0 %v1804
    %1838 = vmatprep.subr.bf16.mxu0 %v1807
    %1839 = vmatpush1.bf16.msra.mxu0 %v1806
    %1840 = vmatprep.subr.bf16.mxu0 %v1809
    %1841 = vmatpush1.bf16.msra.mxu0 %v1808
    %1842 = vmatprep.subr.bf16.mxu0 %v1811
    %1843 = vmatpush1.bf16.msra.mxu0 %v1810
    %1844 = vmatprep.subr.bf16.mxu0 %v1813
    %1845 = vmatpush1.bf16.msra.mxu0 %v1812
    %1846 = vmatprep.subr.bf16.mxu0 %v1815
    %1847 = vmatpush1.bf16.msra.mxu0 %v1814
    %1848 = vmatprep.subr.bf16.mxu0 %v1817
    %1849 = vmatpush1.bf16.msra.mxu0 %v1816
    %1850 = vmatprep.subr.bf16.mxu0 0
    %1851 = vmatpush1.bf16.msra.mxu0 0
    %1852 = vmatprep.subr.bf16.mxu0 0
    %1853 = vmatpush1.bf16.msra.mxu0 0
    %1854 = vmatprep.subr.bf16.mxu0 0
    %1855 = vmatpush1.bf16.msra.mxu0 0
    %1856 = vmatprep.subr.bf16.mxu0 0
    %1857 = vmatpush1.bf16.msra.mxu0 0
    %1858 = vmatprep.subr.bf16.mxu0 0
    %1859 = vmatpush1.bf16.msra.mxu0 0
    %1860 = vmatprep.subr.bf16.mxu0 0
    %1861 = vmatpush1.bf16.msra.mxu0 0
    %1862 = vmatprep.subr.bf16.mxu0 0
    %1863 = vmatpush1.bf16.msra.mxu0 0
    %1864 = vmatprep.subr.bf16.mxu0 0
    %1865 = vmatpush1.bf16.msra.mxu0 0
    %1866 = vmatprep.mubr.bf16.mxu0 0
    %1867 = vmatmul.mubr.bf16.gmra.mrb[0].mxu0 %v1725
    %v1868 = vpop.f32.mrb[0].mxu0
    %v1869 = vadd.f32 %v1747, %v1868
    %v1870 = vpop.f32.mrb[0].mxu0
    %v1871 = vadd.f32 %v1751, %v1870
    %v1872 = vpop.f32.mrb[0].mxu0
    %v1873 = vadd.f32 %v1747, %v1872
    %v1874 = vpop.f32.mrb[0].mxu0
    %v1875 = vadd.f32 %v1751, %v1874
    %1876 = vdwg.mxu0
    %v1877 = vmax.f32 %v1869, 0.0
    %v1878 = vmax.f32 %v1871, 0.0
    %v1879 = vmax.f32 %v1873, 0.0
    %v1880 = vmax.f32 %v1875, 0.0
    %v1881 = vpack.c.bf16 %v1879, %v1877
    %v1882 = vpack.c.bf16 %v1880, %v1878
    %v1883 = vld [vmem:[%s13] sm:$0xf]
    %v1884 = vld [vmem:[%s13 + $0x4] sm:$0xf]
    %v1885 = vld [vmem:[%s13 + $0x8] sm:$0xf]
    %v1886 = vld [vmem:[%s13 + $0xc] sm:$0xf]
    %v1887 = vld [vmem:[%s13 + $0x10] sm:$0xf]
    %v1888 = vld [vmem:[%s13 + $0x14] sm:$0xf]
    %v1889 = vld [vmem:[%s13 + $0x18] sm:$0xf]
    %v1890 = vld [vmem:[%s13 + $0x1c] sm:$0xf]
    %v1891 = vld [vmem:[%s13 + $0x20] sm:$0xf]
    %v1892 = vld [vmem:[%s13 + $0x24] sm:$0xf]
    %v1893 = vld [vmem:[%s13 + $0x28] sm:$0xf]
    %v1894 = vld [vmem:[%s13 + $0x2c] sm:$0xf]
    %v1895 = vld [vmem:[%s13 + $0x30] sm:$0xf]
    %v1896 = vld [vmem:[%s13 + $0x34] sm:$0xf]
    %v1897 = vld [vmem:[%s13 + $0x38] sm:$0xf]
    %v1898 = vld [vmem:[%s13 + $0x3c] sm:$0xf]
    %v1899 = vld [vmem:[%s13 + $0x40] sm:$0xf]
    %v1900 = vld [vmem:[%s13 + $0x44] sm:$0xf]
    %v1901 = vld [vmem:[%s13 + $0x48] sm:$0xf]
    %v1902 = vld [vmem:[%s13 + $0x4c] sm:$0xf]
    %v1903 = vld [vmem:[%s13 + $0x50] sm:$0xf]
    %v1904 = vld [vmem:[%s13 + $0x54] sm:$0xf]
    %v1905 = vld [vmem:[%s13 + $0x58] sm:$0xf]
    %v1906 = vld [vmem:[%s13 + $0x5c] sm:$0xf]
    %v1907 = vld [vmem:[%s13 + $0x60] sm:$0xf]
    %v1908 = vld [vmem:[%s13 + $0x64] sm:$0xf]
    %v1909 = vld [vmem:[%s13 + $0x68] sm:$0xf]
    %v1910 = vld [vmem:[%s13 + $0x6c] sm:$0xf]
    %v1911 = vld [vmem:[%s13 + $0x70] sm:$0xf]
    %v1912 = vld [vmem:[%s13 + $0x74] sm:$0xf]
    %v1913 = vld [vmem:[%s13 + $0x78] sm:$0xf]
    %v1914 = vld [vmem:[%s13 + $0x7c] sm:$0xf]
    %v1915 = vld [vmem:[%s14] sm:$0x1]
    %v1917 = vlaneseq
    %v1918 = vshrl.u32 %v1917, 7
    %v1919 = vsub.s32 0, %v1918
    %v1920 = vrot.slane %v1915, %v1919
    %v1954 = vunpack.c.l.b16 %v1883
    %v1955 = vunpack.c.l.b16 %v1884
    %v1956 = vunpack.c.l.b16 %v1885
    %v1957 = vunpack.c.l.b16 %v1886
    %v1958 = vunpack.c.l.b16 %v1887
    %v1959 = vunpack.c.l.b16 %v1888
    %v1960 = vunpack.c.l.b16 %v1889
    %v1961 = vunpack.c.l.b16 %v1890
    %v1962 = vunpack.c.l.b16 %v1891
    %v1963 = vunpack.c.l.b16 %v1892
    %v1964 = vunpack.c.l.b16 %v1893
    %v1965 = vunpack.c.l.b16 %v1894
    %v1966 = vunpack.c.l.b16 %v1895
    %v1967 = vunpack.c.l.b16 %v1896
    %v1968 = vunpack.c.l.b16 %v1897
    %v1969 = vunpack.c.l.b16 %v1898
    %v1970 = vunpack.c.l.b16 %v1899
    %v1971 = vunpack.c.l.b16 %v1900
    %v1972 = vunpack.c.l.b16 %v1901
    %v1973 = vunpack.c.l.b16 %v1902
    %v1974 = vunpack.c.l.b16 %v1903
    %v1975 = vunpack.c.l.b16 %v1904
    %v1976 = vunpack.c.l.b16 %v1905
    %v1977 = vunpack.c.l.b16 %v1906
    %v1978 = vunpack.c.l.b16 %v1907
    %v1979 = vunpack.c.l.b16 %v1908
    %v1980 = vunpack.c.l.b16 %v1909
    %v1981 = vunpack.c.l.b16 %v1910
    %v1982 = vunpack.c.l.b16 %v1911
    %v1983 = vunpack.c.l.b16 %v1912
    %v1984 = vunpack.c.l.b16 %v1913
    %v1985 = vunpack.c.l.b16 %v1914
    %v1986 = vpack.c.b16 %v1955, %v1954
    %v1987 = vpack.c.b16 %v1957, %v1956
    %v1988 = vpack.c.b16 %v1959, %v1958
    %v1989 = vpack.c.b16 %v1961, %v1960
    %v1990 = vpack.c.b16 %v1963, %v1962
    %v1991 = vpack.c.b16 %v1965, %v1964
    %v1992 = vpack.c.b16 %v1967, %v1966
    %v1993 = vpack.c.b16 %v1969, %v1968
    %v1994 = vpack.c.b16 %v1971, %v1970
    %v1995 = vpack.c.b16 %v1973, %v1972
    %v1996 = vpack.c.b16 %v1975, %v1974
    %v1997 = vpack.c.b16 %v1977, %v1976
    %v1998 = vpack.c.b16 %v1979, %v1978
    %v1999 = vpack.c.b16 %v1981, %v1980
    %v2000 = vpack.c.b16 %v1983, %v1982
    %v2001 = vpack.c.b16 %v1985, %v1984
    %2018 = vmatprep.subr.bf16.mxu0 0
    %2019 = vmatpush1.bf16.msra.mxu0 %v1986
    %2020 = vmatprep.subr.bf16.mxu0 0
    %2021 = vmatpush1.bf16.msra.mxu0 %v1987
    %2022 = vmatprep.subr.bf16.mxu0 0
    %2023 = vmatpush1.bf16.msra.mxu0 %v1988
    %2024 = vmatprep.subr.bf16.mxu0 0
    %2025 = vmatpush1.bf16.msra.mxu0 %v1989
    %2026 = vmatprep.subr.bf16.mxu0 0
    %2027 = vmatpush1.bf16.msra.mxu0 %v1990
    %2028 = vmatprep.subr.bf16.mxu0 0
    %2029 = vmatpush1.bf16.msra.mxu0 %v1991
    %2030 = vmatprep.subr.bf16.mxu0 0
    %2031 = vmatpush1.bf16.msra.mxu0 %v1992
    %2032 = vmatprep.subr.bf16.mxu0 0
    %2033 = vmatpush1.bf16.msra.mxu0 %v1993
    %2034 = vmatprep.subr.bf16.mxu0 0
    %2035 = vmatpush1.bf16.msra.mxu0 %v1994
    %2036 = vmatprep.subr.bf16.mxu0 0
    %2037 = vmatpush1.bf16.msra.mxu0 %v1995
    %2038 = vmatprep.subr.bf16.mxu0 0
    %2039 = vmatpush1.bf16.msra.mxu0 %v1996
    %2040 = vmatprep.subr.bf16.mxu0 0
    %2041 = vmatpush1.bf16.msra.mxu0 %v1997
    %2042 = vmatprep.subr.bf16.mxu0 0
    %2043 = vmatpush1.bf16.msra.mxu0 %v1998
    %2044 = vmatprep.subr.bf16.mxu0 0
    %2045 = vmatpush1.bf16.msra.mxu0 %v1999
    %2046 = vmatprep.subr.bf16.mxu0 0
    %2047 = vmatpush1.bf16.msra.mxu0 %v2000
    %2048 = vmatprep.subr.bf16.mxu0 0
    %2049 = vmatpush1.bf16.msra.mxu0 %v2001
    %2050 = vmatprep.mubr.bf16.mxu0 %v1882
    %2051 = vmatmul.mubr.bf16.gmra.mrb[0].mxu0 %v1881
    %v2052 = vpop.f32.mrb[0].mxu0
    %v2053 = vadd.f32 %v1920, %v2052
    %v2054 = vpop.f32.mrb[0].mxu0
    %v2055 = vpop.f32.mrb[0].mxu0
    %v2056 = vadd.f32 %v1920, %v2055
    %v2057 = vpop.f32.mrb[0].mxu0
    %2058 = vdwg.mxu0
    %v2059 = vadd.f32 %v2053, %v1723
    %v2060 = vadd.f32 %v2056, %v1724
    %v2061 = vld [vmem:[%s15] sm:$0x1]
    %v2062 = vld [vmem:[%s16] sm:$0x1]
    %2063 = vadd.xlane.f32.xlu0 %v2059
    %v2064 = vpop.xlane.xlu0 %2063
    %2065 = vadd.xlane.f32.xlu0 %v2060
    %v2066 = vpop.xlane.xlu0 %2065
    %v2067 = vmul.f32 %v2064, %v971
    %v2068 = vmul.f32 %v2066, %v971
    %v2069 = vsub.f32 %v2059, %v2067
    %v2070 = vsub.f32 %v2060, %v2068
    %v2071 = vmul.f32 %v2069, %v2069
    %v2072 = vmul.f32 %v2070, %v2070
    %2073 = vadd.xlane.f32.xlu0 %v2071
    %v2074 = vpop.xlane.xlu0 %2073
    %2075 = vadd.xlane.f32.xlu0 %v2072
    %v2076 = vpop.xlane.xlu0 %2075
    %v2077 = vmul.f32 %v2074, 0.007874016
    %v2078 = vmul.f32 %v2076, 0.007874016
    %v2079 = vrsqrt.pop %v2077
    %v2080 = vmul.f32 %v2077, %v2079
    %vm2081 = vcmp.eq.f32.partialorder %v2077, inf
    %v2082 = vsel %vm2081, %v2077, %v2080
    %vm2083 = vcmp.eq.f32.partialorder %v2077, 0.0
    %v2084 = vand.u32 %v2077, 2147483648
    %v2085 = vsel %vm2083, %v2084, %v2082
    %v2086 = vrsqrt.pop %v2078
    %v2087 = vmul.f32 %v2078, %v2086
    %vm2088 = vcmp.eq.f32.partialorder %v2078, inf
    %v2089 = vsel %vm2088, %v2078, %v2087
    %vm2090 = vcmp.eq.f32.partialorder %v2078, 0.0
    %v2091 = vand.u32 %v2078, 2147483648
    %v2092 = vsel %vm2090, %v2091, %v2089
    %v2093 = vadd.f32 %v2085, 0.001
    %v2094 = vadd.f32 %v2092, 0.001
    %v2095 = vrcp.pop %v2093
    %v2096 = vrcp.pop %v2094
    %v2097 = vmul.f32 %v2069, %v2095
    %v2098 = vmul.f32 %v2070, %v2096
    %v2100 = vlaneseq
    %v2101 = vshrl.u32 %v2100, 7
    %v2102 = vsub.s32 0, %v2101
    %v2103 = vrot.slane %v2061, %v2102
    %v2105 = vmul.f32 %v2097, %v2103
    %v2106 = vmul.f32 %v2098, %v2103
    %v2108 = vlaneseq
    %v2109 = vshrl.u32 %v2108, 7
    %v2110 = vsub.s32 0, %v2109
    %v2111 = vrot.slane %v2062, %v2110
    %v2113 = vadd.f32 %v2105, %v2111
    %v2114 = vadd.f32 %v2106, %v2111
    %v2115 = vpack.c.bf16 %v2114, %v2113
    %s2116 = scalar_lea.vmem %s4, 128
    %v2117 = vld [vmem:[%s2116] sm:$0xff]
    %v2118 = vld [vmem:[%s2116 + $0x8] sm:$0xff]
    %v2119 = vld [vmem:[%s2116 + $0x10] sm:$0xff]
    %v2120 = vld [vmem:[%s2116 + $0x18] sm:$0xff]
    %v2121 = vld [vmem:[%s2116 + $0x20] sm:$0xff]
    %v2122 = vld [vmem:[%s2116 + $0x28] sm:$0xff]
    %v2123 = vld [vmem:[%s2116 + $0x30] sm:$0xff]
    %v2124 = vld [vmem:[%s2116 + $0x38] sm:$0xff]
    %v2125 = vld [vmem:[%s2116 + $0x40] sm:$0xff]
    %v2126 = vld [vmem:[%s2116 + $0x48] sm:$0xff]
    %v2127 = vld [vmem:[%s2116 + $0x50] sm:$0xff]
    %v2128 = vld [vmem:[%s2116 + $0x58] sm:$0xff]
    %v2129 = vld [vmem:[%s2116 + $0x60] sm:$0xff]
    %v2130 = vld [vmem:[%s2116 + $0x68] sm:$0xff]
    %v2131 = vld [vmem:[%s2116 + $0x70] sm:$0xff]
    %v2132 = vld [vmem:[%s2116 + $0x78] sm:$0xff]
    %v2149 = vunpack.c.l.b16 %v2117
    %v2150 = vunpack.c.h.b16 %v2117
    %v2151 = vunpack.c.l.b16 %v2118
    %v2152 = vunpack.c.h.b16 %v2118
    %v2153 = vunpack.c.l.b16 %v2119
    %v2154 = vunpack.c.h.b16 %v2119
    %v2155 = vunpack.c.l.b16 %v2120
    %v2156 = vunpack.c.h.b16 %v2120
    %v2157 = vunpack.c.l.b16 %v2121
    %v2158 = vunpack.c.h.b16 %v2121
    %v2159 = vunpack.c.l.b16 %v2122
    %v2160 = vunpack.c.h.b16 %v2122
    %v2161 = vunpack.c.l.b16 %v2123
    %v2162 = vunpack.c.h.b16 %v2123
    %v2163 = vunpack.c.l.b16 %v2124
    %v2164 = vunpack.c.h.b16 %v2124
    %v2165 = vunpack.c.l.b16 %v2125
    %v2166 = vunpack.c.h.b16 %v2125
    %v2167 = vunpack.c.l.b16 %v2126
    %v2168 = vunpack.c.h.b16 %v2126
    %v2169 = vunpack.c.l.b16 %v2127
    %v2170 = vunpack.c.h.b16 %v2127
    %v2171 = vunpack.c.l.b16 %v2128
    %v2172 = vunpack.c.h.b16 %v2128
    %v2173 = vunpack.c.l.b16 %v2129
    %v2174 = vunpack.c.h.b16 %v2129
    %v2175 = vunpack.c.l.b16 %v2130
    %v2176 = vunpack.c.h.b16 %v2130
    %v2177 = vunpack.c.l.b16 %v2131
    %v2178 = vunpack.c.h.b16 %v2131
    %v2179 = vunpack.c.l.b16 %v2132
    %v2180 = vunpack.c.h.b16 %v2132
    %v2181 = vpack.c.b16 %v2151, %v2149
    %v2182 = vpack.c.b16 %v2152, %v2150
    %v2183 = vpack.c.b16 %v2155, %v2153
    %v2184 = vpack.c.b16 %v2156, %v2154
    %v2185 = vpack.c.b16 %v2159, %v2157
    %v2186 = vpack.c.b16 %v2160, %v2158
    %v2187 = vpack.c.b16 %v2163, %v2161
    %v2188 = vpack.c.b16 %v2164, %v2162
    %v2189 = vpack.c.b16 %v2167, %v2165
    %v2190 = vpack.c.b16 %v2168, %v2166
    %v2191 = vpack.c.b16 %v2171, %v2169
    %v2192 = vpack.c.b16 %v2172, %v2170
    %v2193 = vpack.c.b16 %v2175, %v2173
    %v2194 = vpack.c.b16 %v2176, %v2174
    %v2195 = vpack.c.b16 %v2179, %v2177
    %v2196 = vpack.c.b16 %v2180, %v2178
    %2213 = vmatprep.subr.bf16.mxu0 %v2182
    %2214 = vmatpush1.bf16.msra.mxu0 %v2181
    %2215 = vmatprep.subr.bf16.mxu0 %v2184
    %2216 = vmatpush1.bf16.msra.mxu0 %v2183
    %2217 = vmatprep.subr.bf16.mxu0 %v2186
    %2218 = vmatpush1.bf16.msra.mxu0 %v2185
    %2219 = vmatprep.subr.bf16.mxu0 %v2188
    %2220 = vmatpush1.bf16.msra.mxu0 %v2187
    %2221 = vmatprep.subr.bf16.mxu0 %v2190
    %2222 = vmatpush1.bf16.msra.mxu0 %v2189
    %2223 = vmatprep.subr.bf16.mxu0 %v2192
    %2224 = vmatpush1.bf16.msra.mxu0 %v2191
    %2225 = vmatprep.subr.bf16.mxu0 %v2194
    %2226 = vmatpush1.bf16.msra.mxu0 %v2193
    %2227 = vmatprep.subr.bf16.mxu0 %v2196
    %2228 = vmatpush1.bf16.msra.mxu0 %v2195
    %2229 = vmatprep.subr.bf16.mxu0 0
    %2230 = vmatpush1.bf16.msra.mxu0 0
    %2231 = vmatprep.subr.bf16.mxu0 0
    %2232 = vmatpush1.bf16.msra.mxu0 0
    %2233 = vmatprep.subr.bf16.mxu0 0
    %2234 = vmatpush1.bf16.msra.mxu0 0
    %2235 = vmatprep.subr.bf16.mxu0 0
    %2236 = vmatpush1.bf16.msra.mxu0 0
    %2237 = vmatprep.subr.bf16.mxu0 0
    %2238 = vmatpush1.bf16.msra.mxu0 0
    %2239 = vmatprep.subr.bf16.mxu0 0
    %2240 = vmatpush1.bf16.msra.mxu0 0
    %2241 = vmatprep.subr.bf16.mxu0 0
    %2242 = vmatpush1.bf16.msra.mxu0 0
    %2243 = vmatprep.subr.bf16.mxu0 0
    %2244 = vmatpush1.bf16.msra.mxu0 0
    %2245 = vmatprep.mubr.bf16.mxu0 0
    %2246 = vmatmul.mubr.bf16.gmra.mrb[0].mxu0 %v2115
    %v2247 = vpop.f32.mrb[0].mxu0
    %v2248 = vadd.f32 0.0, %v2247
    %v2249 = vpop.f32.mrb[0].mxu0
    %v2250 = vadd.f32 0.0, %v2249
    %v2251 = vpop.f32.mrb[0].mxu0
    %v2252 = vadd.f32 0.0, %v2251
    %v2253 = vpop.f32.mrb[0].mxu0
    %v2254 = vadd.f32 0.0, %v2253
    %2255 = vdwg.mxu0
    %v2256 = vpack.c.bf16 %v2252, %v2248
    %v2257 = vpack.c.bf16 %v2254, %v2250
    %s2258 = scalar_lea.vmem [#allocation8], 64
    %v2259 = vld [vmem:[%s2258] sm:$0xf]
    %v2260 = vld [vmem:[%s2258 + $0x4] sm:$0xf]
    %v2261 = vld [vmem:[%s2258 + $0x8] sm:$0xf]
    %v2262 = vld [vmem:[%s2258 + $0xc] sm:$0xf]
    %v2263 = vld [vmem:[%s2258 + $0x10] sm:$0xf]
    %v2264 = vld [vmem:[%s2258 + $0x14] sm:$0xf]
    %v2265 = vld [vmem:[%s2258 + $0x18] sm:$0xf]
    %v2266 = vld [vmem:[%s2258 + $0x1c] sm:$0xf]
    %s2267 = scalar_lea.vmem %s8, 2
    %v2268 = vld [vmem:[%s2267] sm:$0x1]
    %s2269 = scalar_lea.vmem %s9, 2
    %v2270 = vld [vmem:[%s2269] sm:$0x1]
    %s2271 = scalar_lea.vmem %s10, 2
    %v2272 = vld [vmem:[%s2271] sm:$0x1]
    %2274 = vrot.lane.b32.xlu0 %v2256, 64
    %v2275 = vpop.permute.xlu0 %2274
    %v2277 = vsel %vm443, %v2256, 0
    %v2280 = vsel %vm443, %v2275, 0
    %2282 = vmatprep.subr.bf16.mxu0 0
    %2283 = vmatpush1.bf16.xpose.msra.mxu0 %v2280
    %2284 = vmatprep.subr.bf16.mxu0 0
    %2285 = vmatpush1.bf16.xpose.msra.mxu0 0
    %2286 = vmatprep.subr.bf16.mxu0 0
    %2287 = vmatpush1.bf16.xpose.msra.mxu0 0
    %2288 = vmatprep.subr.bf16.mxu0 0
    %2289 = vmatpush1.bf16.xpose.msra.mxu0 0
    %2290 = vmatprep.subr.bf16.mxu0 0
    %2291 = vmatpush1.bf16.xpose.msra.mxu0 0
    %2292 = vmatprep.subr.bf16.mxu0 0
    %2293 = vmatpush1.bf16.xpose.msra.mxu0 0
    %2294 = vmatprep.subr.bf16.mxu0 0
    %2295 = vmatpush1.bf16.xpose.msra.mxu0 0
    %2296 = vmatprep.subr.bf16.mxu0 0
    %2297 = vmatpush1.bf16.xpose.msra.mxu0 0
    %2298 = vmatprep.subr.bf16.mxu0 0
    %2299 = vmatpush1.bf16.xpose.msra.mxu0 0
    %2300 = vmatprep.subr.bf16.mxu0 0
    %2301 = vmatpush1.bf16.xpose.msra.mxu0 0
    %2302 = vmatprep.subr.bf16.mxu0 0
    %2303 = vmatpush1.bf16.xpose.msra.mxu0 0
    %2304 = vmatprep.subr.bf16.mxu0 0
    %2305 = vmatpush1.bf16.xpose.msra.mxu0 0
    %2306 = vmatprep.subr.bf16.mxu0 0
    %2307 = vmatpush1.bf16.xpose.msra.mxu0 0
    %2308 = vmatprep.subr.bf16.mxu0 0
    %2309 = vmatpush1.bf16.xpose.msra.mxu0 0
    %2310 = vmatprep.subr.bf16.mxu0 0
    %2311 = vmatpush1.bf16.xpose.msra.mxu0 0
    %2312 = vmatprep.subr.bf16.mxu0 0
    %2313 = vmatpush1.bf16.xpose.msra.mxu0 0
    %2314 = vmatprep.mubr.bf16.mxu0 0
    %2315 = vmatmul.mubr.bf16.gmra.mrb[0].mxu0 %v2277
    %v2316 = vpop.f32.mrb[0].mxu0
    %v2317 = vadd.f32 %v131, %v2316
    %v2318 = vpop.f32.mrb[0].mxu0
    %v2319 = vpop.f32.mrb[0].mxu0
    %v2320 = vpop.f32.mrb[0].mxu0
    %2321 = vdwg.mxu0
    %v2322 = vsel %vm490, %v2317, -inf
    %2323 = vmax.xlane.f32.xlu0 %v2322
    %v2324 = vpop.xlane.xlu0 %2323
    %v2325 = vsub.f32 %v2317, %v2324
    %v2326 = vmul.f32 %v2325, 1.442695
    %v2327 = vpow.pop %v2326
    %v2328 = vsel %vm490, %v2327, 0.0
    %2329 = vadd.xlane.f32.xlu0 %v2328
    %v2330 = vpop.xlane.xlu0 %2329
    %v2331 = vrcp.pop %v2330
    %v2332 = vmul.f32 %v2327, %v2331
    %v2333 = vpack.c.bf16 %v2332, %v2332
    %v2335 = vsel %vm490, %v2333, 0
    %v2338 = vsel %vm506, %v2257, 0
    %2340 = vmatprep.subr.bf16.mxu0 0
    %2341 = vmatpush1.bf16.msra.mxu0 %v2338
    %2342 = vmatprep.subr.bf16.mxu0 0
    %2343 = vmatpush1.bf16.msra.mxu0 0
    %2344 = vmatprep.subr.bf16.mxu0 0
    %2345 = vmatpush1.bf16.msra.mxu0 0
    %2346 = vmatprep.subr.bf16.mxu0 0
    %2347 = vmatpush1.bf16.msra.mxu0 0
    %2348 = vmatprep.subr.bf16.mxu0 0
    %2349 = vmatpush1.bf16.msra.mxu0 0
    %2350 = vmatprep.subr.bf16.mxu0 0
    %2351 = vmatpush1.bf16.msra.mxu0 0
    %2352 = vmatprep.subr.bf16.mxu0 0
    %2353 = vmatpush1.bf16.msra.mxu0 0
    %2354 = vmatprep.subr.bf16.mxu0 0
    %2355 = vmatpush1.bf16.msra.mxu0 0
    %2356 = vmatprep.subr.bf16.mxu0 0
    %2357 = vmatpush1.bf16.msra.mxu0 0
    %2358 = vmatprep.subr.bf16.mxu0 0
    %2359 = vmatpush1.bf16.msra.mxu0 0
    %2360 = vmatprep.subr.bf16.mxu0 0
    %2361 = vmatpush1.bf16.msra.mxu0 0
    %2362 = vmatprep.subr.bf16.mxu0 0
    %2363 = vmatpush1.bf16.msra.mxu0 0
    %2364 = vmatprep.subr.bf16.mxu0 0
    %2365 = vmatpush1.bf16.msra.mxu0 0
    %2366 = vmatprep.subr.bf16.mxu0 0
    %2367 = vmatpush1.bf16.msra.mxu0 0
    %2368 = vmatprep.subr.bf16.mxu0 0
    %2369 = vmatpush1.bf16.msra.mxu0 0
    %2370 = vmatprep.subr.bf16.mxu0 0
    %2371 = vmatpush1.bf16.msra.mxu0 0
    %2372 = vmatprep.mubr.bf16.mxu0 0
    %2373 = vmatmul.mubr.bf16.gmra.mrb[0].mxu0 %v2335
    %v2374 = vpop.f32.mrb[0].mxu0
    %v2375 = vadd.f32 0.0, %v2374
    %v2376 = vpop.f32.mrb[0].mxu0
    %v2377 = vpop.f32.mrb[0].mxu0
    %v2378 = vpop.f32.mrb[0].mxu0
    %2379 = vdwg.mxu0
    %2380 = vrot.lane.b32.xlu0 %v2256, 96
    %v2381 = vpop.permute.xlu0 %2380
    %2382 = vrot.lane.b32.xlu0 %v2256, 32
    %v2383 = vpop.permute.xlu0 %2382
    %v2385 = vsel %vm443, %v2381, 0
    %v2388 = vsel %vm443, %v2383, 0
    %2390 = vmatprep.subr.bf16.mxu0 0
    %2391 = vmatpush1.bf16.xpose.msra.mxu0 %v2388
    %2392 = vmatprep.subr.bf16.mxu0 0
    %2393 = vmatpush1.bf16.xpose.msra.mxu0 0
    %2394 = vmatprep.subr.bf16.mxu0 0
    %2395 = vmatpush1.bf16.xpose.msra.mxu0 0
    %2396 = vmatprep.subr.bf16.mxu0 0
    %2397 = vmatpush1.bf16.xpose.msra.mxu0 0
    %2398 = vmatprep.subr.bf16.mxu0 0
    %2399 = vmatpush1.bf16.xpose.msra.mxu0 0
    %2400 = vmatprep.subr.bf16.mxu0 0
    %2401 = vmatpush1.bf16.xpose.msra.mxu0 0
    %2402 = vmatprep.subr.bf16.mxu0 0
    %2403 = vmatpush1.bf16.xpose.msra.mxu0 0
    %2404 = vmatprep.subr.bf16.mxu0 0
    %2405 = vmatpush1.bf16.xpose.msra.mxu0 0
    %2406 = vmatprep.subr.bf16.mxu0 0
    %2407 = vmatpush1.bf16.xpose.msra.mxu0 0
    %2408 = vmatprep.subr.bf16.mxu0 0
    %2409 = vmatpush1.bf16.xpose.msra.mxu0 0
    %2410 = vmatprep.subr.bf16.mxu0 0
    %2411 = vmatpush1.bf16.xpose.msra.mxu0 0
    %2412 = vmatprep.subr.bf16.mxu0 0
    %2413 = vmatpush1.bf16.xpose.msra.mxu0 0
    %2414 = vmatprep.subr.bf16.mxu0 0
    %2415 = vmatpush1.bf16.xpose.msra.mxu0 0
    %2416 = vmatprep.subr.bf16.mxu0 0
    %2417 = vmatpush1.bf16.xpose.msra.mxu0 0
    %2418 = vmatprep.subr.bf16.mxu0 0
    %2419 = vmatpush1.bf16.xpose.msra.mxu0 0
    %2420 = vmatprep.subr.bf16.mxu0 0
    %2421 = vmatpush1.bf16.xpose.msra.mxu0 0
    %2422 = vmatprep.mubr.bf16.mxu0 0
    %2423 = vmatmul.mubr.bf16.gmra.mrb[0].mxu0 %v2385
    %v2424 = vpop.f32.mrb[0].mxu0
    %v2425 = vadd.f32 %v131, %v2424
    %v2426 = vpop.f32.mrb[0].mxu0
    %v2427 = vpop.f32.mrb[0].mxu0
    %v2428 = vpop.f32.mrb[0].mxu0
    %2429 = vdwg.mxu0
    %v2430 = vsel %vm490, %v2425, -inf
    %2431 = vmax.xlane.f32.xlu0 %v2430
    %v2432 = vpop.xlane.xlu0 %2431
    %v2433 = vsub.f32 %v2425, %v2432
    %v2434 = vmul.f32 %v2433, 1.442695
    %v2435 = vpow.pop %v2434
    %v2436 = vsel %vm490, %v2435, 0.0
    %2437 = vadd.xlane.f32.xlu0 %v2436
    %v2438 = vpop.xlane.xlu0 %2437
    %v2439 = vrcp.pop %v2438
    %v2440 = vmul.f32 %v2435, %v2439
    %v2441 = vpack.c.bf16 %v2440, %v2440
    %2443 = vrot.lane.b32.xlu0 %v2257, 96
    %v2444 = vpop.permute.xlu0 %2443
    %v2446 = vsel %vm490, %v2441, 0
    %v2449 = vsel %vm506, %v2444, 0
    %2451 = vmatprep.subr.bf16.mxu0 0
    %2452 = vmatpush1.bf16.msra.mxu0 %v2449
    %2453 = vmatprep.subr.bf16.mxu0 0
    %2454 = vmatpush1.bf16.msra.mxu0 0
    %2455 = vmatprep.subr.bf16.mxu0 0
    %2456 = vmatpush1.bf16.msra.mxu0 0
    %2457 = vmatprep.subr.bf16.mxu0 0
    %2458 = vmatpush1.bf16.msra.mxu0 0
    %2459 = vmatprep.subr.bf16.mxu0 0
    %2460 = vmatpush1.bf16.msra.mxu0 0
    %2461 = vmatprep.subr.bf16.mxu0 0
    %2462 = vmatpush1.bf16.msra.mxu0 0
    %2463 = vmatprep.subr.bf16.mxu0 0
    %2464 = vmatpush1.bf16.msra.mxu0 0
    %2465 = vmatprep.subr.bf16.mxu0 0
    %2466 = vmatpush1.bf16.msra.mxu0 0
    %2467 = vmatprep.subr.bf16.mxu0 0
    %2468 = vmatpush1.bf16.msra.mxu0 0
    %2469 = vmatprep.subr.bf16.mxu0 0
    %2470 = vmatpush1.bf16.msra.mxu0 0
    %2471 = vmatprep.subr.bf16.mxu0 0
    %2472 = vmatpush1.bf16.msra.mxu0 0
    %2473 = vmatprep.subr.bf16.mxu0 0
    %2474 = vmatpush1.bf16.msra.mxu0 0
    %2475 = vmatprep.subr.bf16.mxu0 0
    %2476 = vmatpush1.bf16.msra.mxu0 0
    %2477 = vmatprep.subr.bf16.mxu0 0
    %2478 = vmatpush1.bf16.msra.mxu0 0
    %2479 = vmatprep.subr.bf16.mxu0 0
    %2480 = vmatpush1.bf16.msra.mxu0 0
    %2481 = vmatprep.subr.bf16.mxu0 0
    %2482 = vmatpush1.bf16.msra.mxu0 0
    %2483 = vmatprep.mubr.bf16.mxu0 0
    %2484 = vmatmul.mubr.bf16.gmra.mrb[0].mxu0 %v2446
    %v2485 = vpop.f32.mrb[0].mxu0
    %v2486 = vadd.f32 0.0, %v2485
    %v2487 = vpop.f32.mrb[0].mxu0
    %v2488 = vpop.f32.mrb[0].mxu0
    %v2489 = vpop.f32.mrb[0].mxu0
    %2490 = vdwg.mxu0
    %2492 = vrot.lane.b32.xlu0 %v2486, 32
    %v2493 = vpop.permute.xlu0 %2492
    %v2495 = vsel %vm443, %v2375, %v2493
    %v2496 = vrot.slane %v2256, 4
    %2497 = vrot.lane.b32.xlu0 %v2496, 64
    %v2498 = vpop.permute.xlu0 %2497
    %v2500 = vsel %vm443, %v2496, 0
    %v2503 = vsel %vm443, %v2498, 0
    %2505 = vmatprep.subr.bf16.mxu0 0
    %2506 = vmatpush1.bf16.xpose.msra.mxu0 %v2503
    %2507 = vmatprep.subr.bf16.mxu0 0
    %2508 = vmatpush1.bf16.xpose.msra.mxu0 0
    %2509 = vmatprep.subr.bf16.mxu0 0
    %2510 = vmatpush1.bf16.xpose.msra.mxu0 0
    %2511 = vmatprep.subr.bf16.mxu0 0
    %2512 = vmatpush1.bf16.xpose.msra.mxu0 0
    %2513 = vmatprep.subr.bf16.mxu0 0
    %2514 = vmatpush1.bf16.xpose.msra.mxu0 0
    %2515 = vmatprep.subr.bf16.mxu0 0
    %2516 = vmatpush1.bf16.xpose.msra.mxu0 0
    %2517 = vmatprep.subr.bf16.mxu0 0
    %2518 = vmatpush1.bf16.xpose.msra.mxu0 0
    %2519 = vmatprep.subr.bf16.mxu0 0
    %2520 = vmatpush1.bf16.xpose.msra.mxu0 0
    %2521 = vmatprep.subr.bf16.mxu0 0
    %2522 = vmatpush1.bf16.xpose.msra.mxu0 0
    %2523 = vmatprep.subr.bf16.mxu0 0
    %2524 = vmatpush1.bf16.xpose.msra.mxu0 0
    %2525 = vmatprep.subr.bf16.mxu0 0
    %2526 = vmatpush1.bf16.xpose.msra.mxu0 0
    %2527 = vmatprep.subr.bf16.mxu0 0
    %2528 = vmatpush1.bf16.xpose.msra.mxu0 0
    %2529 = vmatprep.subr.bf16.mxu0 0
    %2530 = vmatpush1.bf16.xpose.msra.mxu0 0
    %2531 = vmatprep.subr.bf16.mxu0 0
    %2532 = vmatpush1.bf16.xpose.msra.mxu0 0
    %2533 = vmatprep.subr.bf16.mxu0 0
    %2534 = vmatpush1.bf16.xpose.msra.mxu0 0
    %2535 = vmatprep.subr.bf16.mxu0 0
    %2536 = vmatpush1.bf16.xpose.msra.mxu0 0
    %2537 = vmatprep.mubr.bf16.mxu0 0
    %2538 = vmatmul.mubr.bf16.gmra.mrb[0].mxu0 %v2500
    %v2539 = vpop.f32.mrb[0].mxu0
    %v2540 = vadd.f32 %v139, %v2539
    %v2541 = vpop.f32.mrb[0].mxu0
    %v2542 = vpop.f32.mrb[0].mxu0
    %v2543 = vpop.f32.mrb[0].mxu0
    %2544 = vdwg.mxu0
    %v2545 = vsel %vm490, %v2540, -inf
    %2546 = vmax.xlane.f32.xlu0 %v2545
    %v2547 = vpop.xlane.xlu0 %2546
    %v2548 = vsub.f32 %v2540, %v2547
    %v2549 = vmul.f32 %v2548, 1.442695
    %v2550 = vpow.pop %v2549
    %v2551 = vsel %vm490, %v2550, 0.0
    %2552 = vadd.xlane.f32.xlu0 %v2551
    %v2553 = vpop.xlane.xlu0 %2552
    %v2554 = vrcp.pop %v2553
    %v2555 = vmul.f32 %v2550, %v2554
    %v2556 = vpack.c.bf16 %v2555, %v2555
    %v2557 = vrot.slane %v2257, 4
    %v2559 = vsel %vm490, %v2556, 0
    %v2562 = vsel %vm506, %v2557, 0
    %2564 = vmatprep.subr.bf16.mxu0 0
    %2565 = vmatpush1.bf16.msra.mxu0 %v2562
    %2566 = vmatprep.subr.bf16.mxu0 0
    %2567 = vmatpush1.bf16.msra.mxu0 0
    %2568 = vmatprep.subr.bf16.mxu0 0
    %2569 = vmatpush1.bf16.msra.mxu0 0
    %2570 = vmatprep.subr.bf16.mxu0 0
    %2571 = vmatpush1.bf16.msra.mxu0 0
    %2572 = vmatprep.subr.bf16.mxu0 0
    %2573 = vmatpush1.bf16.msra.mxu0 0
    %2574 = vmatprep.subr.bf16.mxu0 0
    %2575 = vmatpush1.bf16.msra.mxu0 0
    %2576 = vmatprep.subr.bf16.mxu0 0
    %2577 = vmatpush1.bf16.msra.mxu0 0
    %2578 = vmatprep.subr.bf16.mxu0 0
    %2579 = vmatpush1.bf16.msra.mxu0 0
    %2580 = vmatprep.subr.bf16.mxu0 0
    %2581 = vmatpush1.bf16.msra.mxu0 0
    %2582 = vmatprep.subr.bf16.mxu0 0
    %2583 = vmatpush1.bf16.msra.mxu0 0
    %2584 = vmatprep.subr.bf16.mxu0 0
    %2585 = vmatpush1.bf16.msra.mxu0 0
    %2586 = vmatprep.subr.bf16.mxu0 0
    %2587 = vmatpush1.bf16.msra.mxu0 0
    %2588 = vmatprep.subr.bf16.mxu0 0
    %2589 = vmatpush1.bf16.msra.mxu0 0
    %2590 = vmatprep.subr.bf16.mxu0 0
    %2591 = vmatpush1.bf16.msra.mxu0 0
    %2592 = vmatprep.subr.bf16.mxu0 0
    %2593 = vmatpush1.bf16.msra.mxu0 0
    %2594 = vmatprep.subr.bf16.mxu0 0
    %2595 = vmatpush1.bf16.msra.mxu0 0
    %2596 = vmatprep.mubr.bf16.mxu0 0
    %2597 = vmatmul.mubr.bf16.gmra.mrb[0].mxu0 %v2559
    %v2598 = vpop.f32.mrb[0].mxu0
    %v2599 = vadd.f32 0.0, %v2598
    %v2600 = vpop.f32.mrb[0].mxu0
    %v2601 = vpop.f32.mrb[0].mxu0
    %v2602 = vpop.f32.mrb[0].mxu0
    %2603 = vdwg.mxu0
    %2604 = vrot.lane.b32.xlu0 %v2496, 96
    %v2605 = vpop.permute.xlu0 %2604
    %2606 = vrot.lane.b32.xlu0 %v2496, 32
    %v2607 = vpop.permute.xlu0 %2606
    %v2609 = vsel %vm443, %v2605, 0
    %v2612 = vsel %vm443, %v2607, 0
    %2614 = vmatprep.subr.bf16.mxu0 0
    %2615 = vmatpush1.bf16.xpose.msra.mxu0 %v2612
    %2616 = vmatprep.subr.bf16.mxu0 0
    %2617 = vmatpush1.bf16.xpose.msra.mxu0 0
    %2618 = vmatprep.subr.bf16.mxu0 0
    %2619 = vmatpush1.bf16.xpose.msra.mxu0 0
    %2620 = vmatprep.subr.bf16.mxu0 0
    %2621 = vmatpush1.bf16.xpose.msra.mxu0 0
    %2622 = vmatprep.subr.bf16.mxu0 0
    %2623 = vmatpush1.bf16.xpose.msra.mxu0 0
    %2624 = vmatprep.subr.bf16.mxu0 0
    %2625 = vmatpush1.bf16.xpose.msra.mxu0 0
    %2626 = vmatprep.subr.bf16.mxu0 0
    %2627 = vmatpush1.bf16.xpose.msra.mxu0 0
    %2628 = vmatprep.subr.bf16.mxu0 0
    %2629 = vmatpush1.bf16.xpose.msra.mxu0 0
    %2630 = vmatprep.subr.bf16.mxu0 0
    %2631 = vmatpush1.bf16.xpose.msra.mxu0 0
    %2632 = vmatprep.subr.bf16.mxu0 0
    %2633 = vmatpush1.bf16.xpose.msra.mxu0 0
    %2634 = vmatprep.subr.bf16.mxu0 0
    %2635 = vmatpush1.bf16.xpose.msra.mxu0 0
    %2636 = vmatprep.subr.bf16.mxu0 0
    %2637 = vmatpush1.bf16.xpose.msra.mxu0 0
    %2638 = vmatprep.subr.bf16.mxu0 0
    %2639 = vmatpush1.bf16.xpose.msra.mxu0 0
    %2640 = vmatprep.subr.bf16.mxu0 0
    %2641 = vmatpush1.bf16.xpose.msra.mxu0 0
    %2642 = vmatprep.subr.bf16.mxu0 0
    %2643 = vmatpush1.bf16.xpose.msra.mxu0 0
    %2644 = vmatprep.subr.bf16.mxu0 0
    %2645 = vmatpush1.bf16.xpose.msra.mxu0 0
    %2646 = vmatprep.mubr.bf16.mxu0 0
    %2647 = vmatmul.mubr.bf16.gmra.mrb[0].mxu0 %v2609
    %v2648 = vpop.f32.mrb[0].mxu0
    %v2649 = vadd.f32 %v139, %v2648
    %v2650 = vpop.f32.mrb[0].mxu0
    %v2651 = vpop.f32.mrb[0].mxu0
    %v2652 = vpop.f32.mrb[0].mxu0
    %2653 = vdwg.mxu0
    %v2654 = vsel %vm490, %v2649, -inf
    %2655 = vmax.xlane.f32.xlu0 %v2654
    %v2656 = vpop.xlane.xlu0 %2655
    %v2657 = vsub.f32 %v2649, %v2656
    %v2658 = vmul.f32 %v2657, 1.442695
    %v2659 = vpow.pop %v2658
    %v2660 = vsel %vm490, %v2659, 0.0
    %2661 = vadd.xlane.f32.xlu0 %v2660
    %v2662 = vpop.xlane.xlu0 %2661
    %v2663 = vrcp.pop %v2662
    %v2664 = vmul.f32 %v2659, %v2663
    %v2665 = vpack.c.bf16 %v2664, %v2664
    %2666 = vrot.lane.b32.xlu0 %v2557, 96
    %v2667 = vpop.permute.xlu0 %2666
    %v2669 = vsel %vm490, %v2665, 0
    %v2672 = vsel %vm506, %v2667, 0
    %2674 = vmatprep.subr.bf16.mxu0 0
    %2675 = vmatpush1.bf16.msra.mxu0 %v2672
    %2676 = vmatprep.subr.bf16.mxu0 0
    %2677 = vmatpush1.bf16.msra.mxu0 0
    %2678 = vmatprep.subr.bf16.mxu0 0
    %2679 = vmatpush1.bf16.msra.mxu0 0
    %2680 = vmatprep.subr.bf16.mxu0 0
    %2681 = vmatpush1.bf16.msra.mxu0 0
    %2682 = vmatprep.subr.bf16.mxu0 0
    %2683 = vmatpush1.bf16.msra.mxu0 0
    %2684 = vmatprep.subr.bf16.mxu0 0
    %2685 = vmatpush1.bf16.msra.mxu0 0
    %2686 = vmatprep.subr.bf16.mxu0 0
    %2687 = vmatpush1.bf16.msra.mxu0 0
    %2688 = vmatprep.subr.bf16.mxu0 0
    %2689 = vmatpush1.bf16.msra.mxu0 0
    %2690 = vmatprep.subr.bf16.mxu0 0
    %2691 = vmatpush1.bf16.msra.mxu0 0
    %2692 = vmatprep.subr.bf16.mxu0 0
    %2693 = vmatpush1.bf16.msra.mxu0 0
    %2694 = vmatprep.subr.bf16.mxu0 0
    %2695 = vmatpush1.bf16.msra.mxu0 0
    %2696 = vmatprep.subr.bf16.mxu0 0
    %2697 = vmatpush1.bf16.msra.mxu0 0
    %2698 = vmatprep.subr.bf16.mxu0 0
    %2699 = vmatpush1.bf16.msra.mxu0 0
    %2700 = vmatprep.subr.bf16.mxu0 0
    %2701 = vmatpush1.bf16.msra.mxu0 0
    %2702 = vmatprep.subr.bf16.mxu0 0
    %2703 = vmatpush1.bf16.msra.mxu0 0
    %2704 = vmatprep.subr.bf16.mxu0 0
    %2705 = vmatpush1.bf16.msra.mxu0 0
    %2706 = vmatprep.mubr.bf16.mxu0 0
    %2707 = vmatmul.mubr.bf16.gmra.mrb[0].mxu0 %v2669
    %v2708 = vpop.f32.mrb[0].mxu0
    %v2709 = vadd.f32 0.0, %v2708
    %v2710 = vpop.f32.mrb[0].mxu0
    %v2711 = vpop.f32.mrb[0].mxu0
    %v2712 = vpop.f32.mrb[0].mxu0
    %2713 = vdwg.mxu0
    %2715 = vrot.lane.b32.xlu0 %v2709, 32
    %v2716 = vpop.permute.xlu0 %2715
    %v2718 = vsel %vm443, %v2599, %v2716
    %v2719 = vpack.c.bf16 %v2718, %v2495
    %v2721 = vlaneseq
    %v2722 = vshrl.u32 %v2721, 7
    %v2723 = vsub.s32 0, %v2722
    %v2724 = vrot.slane %v2268, %v2723
    %v2734 = vunpack.c.l.b16 %v2259
    %v2735 = vunpack.c.l.b16 %v2260
    %v2736 = vunpack.c.l.b16 %v2261
    %v2737 = vunpack.c.l.b16 %v2262
    %v2738 = vunpack.c.l.b16 %v2263
    %v2739 = vunpack.c.l.b16 %v2264
    %v2740 = vunpack.c.l.b16 %v2265
    %v2741 = vunpack.c.l.b16 %v2266
    %v2742 = vpack.c.b16 %v2735, %v2734
    %v2743 = vpack.c.b16 %v2737, %v2736
    %v2744 = vpack.c.b16 %v2739, %v2738
    %v2745 = vpack.c.b16 %v2741, %v2740
    %v2751 = vsel %vm920, %v2719, 0
    %2753 = vmatprep.subr.bf16.mxu0 0
    %2754 = vmatpush1.bf16.msra.mxu0 %v2742
    %2755 = vmatprep.subr.bf16.mxu0 0
    %2756 = vmatpush1.bf16.msra.mxu0 %v2743
    %2757 = vmatprep.subr.bf16.mxu0 0
    %2758 = vmatpush1.bf16.msra.mxu0 %v2744
    %2759 = vmatprep.subr.bf16.mxu0 0
    %2760 = vmatpush1.bf16.msra.mxu0 %v2745
    %2761 = vmatprep.subr.bf16.mxu0 0
    %2762 = vmatpush1.bf16.msra.mxu0 0
    %2763 = vmatprep.subr.bf16.mxu0 0
    %2764 = vmatpush1.bf16.msra.mxu0 0
    %2765 = vmatprep.subr.bf16.mxu0 0
    %2766 = vmatpush1.bf16.msra.mxu0 0
    %2767 = vmatprep.subr.bf16.mxu0 0
    %2768 = vmatpush1.bf16.msra.mxu0 0
    %2769 = vmatprep.subr.bf16.mxu0 0
    %2770 = vmatpush1.bf16.msra.mxu0 0
    %2771 = vmatprep.subr.bf16.mxu0 0
    %2772 = vmatpush1.bf16.msra.mxu0 0
    %2773 = vmatprep.subr.bf16.mxu0 0
    %2774 = vmatpush1.bf16.msra.mxu0 0
    %2775 = vmatprep.subr.bf16.mxu0 0
    %2776 = vmatpush1.bf16.msra.mxu0 0
    %2777 = vmatprep.subr.bf16.mxu0 0
    %2778 = vmatpush1.bf16.msra.mxu0 0
    %2779 = vmatprep.subr.bf16.mxu0 0
    %2780 = vmatpush1.bf16.msra.mxu0 0
    %2781 = vmatprep.subr.bf16.mxu0 0
    %2782 = vmatpush1.bf16.msra.mxu0 0
    %2783 = vmatprep.subr.bf16.mxu0 0
    %2784 = vmatpush1.bf16.msra.mxu0 0
    %2785 = vmatprep.mubr.bf16.mxu0 0
    %2786 = vmatmul.mubr.bf16.gmra.mrb[0].mxu0 %v2751
    %v2787 = vpop.f32.mrb[0].mxu0
    %v2788 = vadd.f32 %v2724, %v2787
    %v2789 = vpop.f32.mrb[0].mxu0
    %v2790 = vpop.f32.mrb[0].mxu0
    %v2791 = vadd.f32 %v2724, %v2790
    %v2792 = vpop.f32.mrb[0].mxu0
    %2793 = vdwg.mxu0
    %v2794 = vadd.f32 %v2788, %v2113
    %v2795 = vadd.f32 %v2791, %v2114
    %2796 = vadd.xlane.f32.xlu0 %v2794
    %v2797 = vpop.xlane.xlu0 %2796
    %2798 = vadd.xlane.f32.xlu0 %v2795
    %v2799 = vpop.xlane.xlu0 %2798
    %v2800 = vmul.f32 %v2797, %v971
    %v2801 = vmul.f32 %v2799, %v971
    %v2802 = vsub.f32 %v2794, %v2800
    %v2803 = vsub.f32 %v2795, %v2801
    %v2804 = vmul.f32 %v2802, %v2802
    %v2805 = vmul.f32 %v2803, %v2803
    %2806 = vadd.xlane.f32.xlu0 %v2804
    %v2807 = vpop.xlane.xlu0 %2806
    %2808 = vadd.xlane.f32.xlu0 %v2805
    %v2809 = vpop.xlane.xlu0 %2808
    %v2810 = vmul.f32 %v2807, 0.007874016
    %v2811 = vmul.f32 %v2809, 0.007874016
    %v2812 = vrsqrt.pop %v2810
    %v2813 = vmul.f32 %v2810, %v2812
    %vm2814 = vcmp.eq.f32.partialorder %v2810, inf
    %v2815 = vsel %vm2814, %v2810, %v2813
    %vm2816 = vcmp.eq.f32.partialorder %v2810, 0.0
    %v2817 = vand.u32 %v2810, 2147483648
    %v2818 = vsel %vm2816, %v2817, %v2815
    %v2819 = vrsqrt.pop %v2811
    %v2820 = vmul.f32 %v2811, %v2819
    %vm2821 = vcmp.eq.f32.partialorder %v2811, inf
    %v2822 = vsel %vm2821, %v2811, %v2820
    %vm2823 = vcmp.eq.f32.partialorder %v2811, 0.0
    %v2824 = vand.u32 %v2811, 2147483648
    %v2825 = vsel %vm2823, %v2824, %v2822
    %v2826 = vadd.f32 %v2818, 0.001
    %v2827 = vadd.f32 %v2825, 0.001
    %v2828 = vrcp.pop %v2826
    %v2829 = vrcp.pop %v2827
    %v2830 = vmul.f32 %v2802, %v2828
    %v2831 = vmul.f32 %v2803, %v2829
    %v2833 = vlaneseq
    %v2834 = vshrl.u32 %v2833, 7
    %v2835 = vsub.s32 0, %v2834
    %v2836 = vrot.slane %v2270, %v2835
    %v2838 = vmul.f32 %v2830, %v2836
    %v2839 = vmul.f32 %v2831, %v2836
    %v2841 = vlaneseq
    %v2842 = vshrl.u32 %v2841, 7
    %v2843 = vsub.s32 0, %v2842
    %v2844 = vrot.slane %v2272, %v2843
    %v2846 = vadd.f32 %v2838, %v2844
    %v2847 = vadd.f32 %v2839, %v2844
    %v2848 = vpack.c.bf16 %v2847, %v2846
    %s2849 = scalar_lea.vmem %s5, 64
    %v2850 = vld [vmem:[%s2849] sm:$0xf]
    %v2851 = vld [vmem:[%s2849 + $0x4] sm:$0xf]
    %v2852 = vld [vmem:[%s2849 + $0x8] sm:$0xf]
    %v2853 = vld [vmem:[%s2849 + $0xc] sm:$0xf]
    %v2854 = vld [vmem:[%s2849 + $0x10] sm:$0xf]
    %v2855 = vld [vmem:[%s2849 + $0x14] sm:$0xf]
    %v2856 = vld [vmem:[%s2849 + $0x18] sm:$0xf]
    %v2857 = vld [vmem:[%s2849 + $0x1c] sm:$0xf]
    %v2858 = vld [vmem:[%s2849 + $0x20] sm:$0xf]
    %v2859 = vld [vmem:[%s2849 + $0x24] sm:$0xf]
    %v2860 = vld [vmem:[%s2849 + $0x28] sm:$0xf]
    %v2861 = vld [vmem:[%s2849 + $0x2c] sm:$0xf]
    %v2862 = vld [vmem:[%s2849 + $0x30] sm:$0xf]
    %v2863 = vld [vmem:[%s2849 + $0x34] sm:$0xf]
    %v2864 = vld [vmem:[%s2849 + $0x38] sm:$0xf]
    %v2865 = vld [vmem:[%s2849 + $0x3c] sm:$0xf]
    %v2882 = vunpack.c.l.b16 %v2850
    %v2883 = vunpack.c.l.b16 %v2851
    %v2884 = vunpack.c.l.b16 %v2852
    %v2885 = vunpack.c.l.b16 %v2853
    %v2886 = vunpack.c.l.b16 %v2854
    %v2887 = vunpack.c.l.b16 %v2855
    %v2888 = vunpack.c.l.b16 %v2856
    %v2889 = vunpack.c.l.b16 %v2857
    %v2890 = vunpack.c.l.b16 %v2858
    %v2891 = vunpack.c.l.b16 %v2859
    %v2892 = vunpack.c.l.b16 %v2860
    %v2893 = vunpack.c.l.b16 %v2861
    %v2894 = vunpack.c.l.b16 %v2862
    %v2895 = vunpack.c.l.b16 %v2863
    %v2896 = vunpack.c.l.b16 %v2864
    %v2897 = vunpack.c.l.b16 %v2865
    %v2898 = vpack.c.b16 %v2883, %v2882
    %v2899 = vpack.c.b16 %v2885, %v2884
    %v2900 = vpack.c.b16 %v2887, %v2886
    %v2901 = vpack.c.b16 %v2889, %v2888
    %v2902 = vpack.c.b16 %v2891, %v2890
    %v2903 = vpack.c.b16 %v2893, %v2892
    %v2904 = vpack.c.b16 %v2895, %v2894
    %v2905 = vpack.c.b16 %v2897, %v2896
    %2914 = vmatprep.subr.bf16.mxu0 0
    %2915 = vmatpush1.bf16.msra.mxu0 %v2898
    %2916 = vmatprep.subr.bf16.mxu0 0
    %2917 = vmatpush1.bf16.msra.mxu0 %v2899
    %2918 = vmatprep.subr.bf16.mxu0 0
    %2919 = vmatpush1.bf16.msra.mxu0 %v2900
    %2920 = vmatprep.subr.bf16.mxu0 0
    %2921 = vmatpush1.bf16.msra.mxu0 %v2901
    %2922 = vmatprep.subr.bf16.mxu0 0
    %2923 = vmatpush1.bf16.msra.mxu0 %v2902
    %2924 = vmatprep.subr.bf16.mxu0 0
    %2925 = vmatpush1.bf16.msra.mxu0 %v2903
    %2926 = vmatprep.subr.bf16.mxu0 0
    %2927 = vmatpush1.bf16.msra.mxu0 %v2904
    %2928 = vmatprep.subr.bf16.mxu0 0
    %2929 = vmatpush1.bf16.msra.mxu0 %v2905
    %2930 = vmatprep.subr.bf16.mxu0 0
    %2931 = vmatpush1.bf16.msra.mxu0 0
    %2932 = vmatprep.subr.bf16.mxu0 0
    %2933 = vmatpush1.bf16.msra.mxu0 0
    %2934 = vmatprep.subr.bf16.mxu0 0
    %2935 = vmatpush1.bf16.msra.mxu0 0
    %2936 = vmatprep.subr.bf16.mxu0 0
    %2937 = vmatpush1.bf16.msra.mxu0 0
    %2938 = vmatprep.subr.bf16.mxu0 0
    %2939 = vmatpush1.bf16.msra.mxu0 0
    %2940 = vmatprep.subr.bf16.mxu0 0
    %2941 = vmatpush1.bf16.msra.mxu0 0
    %2942 = vmatprep.subr.bf16.mxu0 0
    %2943 = vmatpush1.bf16.msra.mxu0 0
    %2944 = vmatprep.subr.bf16.mxu0 0
    %2945 = vmatpush1.bf16.msra.mxu0 0
    %2946 = vmatprep.mubr.bf16.mxu0 0
    %2947 = vmatmul.mubr.bf16.gmra.mrb[0].mxu0 %v2848
    %v2948 = vpop.f32.mrb[0].mxu0
    %v2949 = vadd.f32 0.0, %v2948
    %v2950 = vpop.f32.mrb[0].mxu0
    %v2951 = vpop.f32.mrb[0].mxu0
    %v2952 = vadd.f32 0.0, %v2951
    %v2953 = vpop.f32.mrb[0].mxu0
    %2954 = vdwg.mxu0
    %v2955 = vpack.c.bf16 %v2952, %v2949
    %s2956 = scalar_lea.vmem [#allocation8], 96
    %v2957 = vld [vmem:[%s2956] sm:$0xf]
    %v2958 = vld [vmem:[%s2956 + $0x4] sm:$0xf]
    %v2959 = vld [vmem:[%s2956 + $0x8] sm:$0xf]
    %v2960 = vld [vmem:[%s2956 + $0xc] sm:$0xf]
    %v2961 = vld [vmem:[%s2956 + $0x10] sm:$0xf]
    %v2962 = vld [vmem:[%s2956 + $0x14] sm:$0xf]
    %v2963 = vld [vmem:[%s2956 + $0x18] sm:$0xf]
    %v2964 = vld [vmem:[%s2956 + $0x1c] sm:$0xf]
    %s2965 = scalar_lea.vmem %s8, 3
    %v2966 = vld [vmem:[%s2965] sm:$0x1]
    %s2967 = scalar_lea.vmem %s9, 3
    %v2968 = vld [vmem:[%s2967] sm:$0x1]
    %s2969 = scalar_lea.vmem %s10, 3
    %v2970 = vld [vmem:[%s2969] sm:$0x1]
    %v2972 = vsel %vm443, %v2955, 0
    %v2975 = vsel %vm443, %v286, 0
    %2977 = vmatprep.subr.bf16.mxu0 0
    %2978 = vmatpush1.bf16.xpose.msra.mxu0 %v2975
    %2979 = vmatprep.subr.bf16.mxu0 0
    %2980 = vmatpush1.bf16.xpose.msra.mxu0 0
    %2981 = vmatprep.subr.bf16.mxu0 0
    %2982 = vmatpush1.bf16.xpose.msra.mxu0 0
    %2983 = vmatprep.subr.bf16.mxu0 0
    %2984 = vmatpush1.bf16.xpose.msra.mxu0 0
    %2985 = vmatprep.subr.bf16.mxu0 0
    %2986 = vmatpush1.bf16.xpose.msra.mxu0 0
    %2987 = vmatprep.subr.bf16.mxu0 0
    %2988 = vmatpush1.bf16.xpose.msra.mxu0 0
    %2989 = vmatprep.subr.bf16.mxu0 0
    %2990 = vmatpush1.bf16.xpose.msra.mxu0 0
    %2991 = vmatprep.subr.bf16.mxu0 0
    %2992 = vmatpush1.bf16.xpose.msra.mxu0 0
    %2993 = vmatprep.subr.bf16.mxu0 0
    %2994 = vmatpush1.bf16.xpose.msra.mxu0 0
    %2995 = vmatprep.subr.bf16.mxu0 0
    %2996 = vmatpush1.bf16.xpose.msra.mxu0 0
    %2997 = vmatprep.subr.bf16.mxu0 0
    %2998 = vmatpush1.bf16.xpose.msra.mxu0 0
    %2999 = vmatprep.subr.bf16.mxu0 0
    %3000 = vmatpush1.bf16.xpose.msra.mxu0 0
    %3001 = vmatprep.subr.bf16.mxu0 0
    %3002 = vmatpush1.bf16.xpose.msra.mxu0 0
    %3003 = vmatprep.subr.bf16.mxu0 0
    %3004 = vmatpush1.bf16.xpose.msra.mxu0 0
    %3005 = vmatprep.subr.bf16.mxu0 0
    %3006 = vmatpush1.bf16.xpose.msra.mxu0 0
    %3007 = vmatprep.subr.bf16.mxu0 0
    %3008 = vmatpush1.bf16.xpose.msra.mxu0 0
    %3009 = vmatprep.mubr.bf16.mxu0 0
    %3010 = vmatmul.mubr.bf16.gmra.mrb[0].mxu0 %v2972
    %v3011 = vpop.f32.mrb[0].mxu0
    %v3012 = vadd.f32 %v1145, %v3011
    %v3013 = vpop.f32.mrb[0].mxu0
    %v3014 = vpop.f32.mrb[0].mxu0
    %v3015 = vpop.f32.mrb[0].mxu0
    %3016 = vdwg.mxu0
    %v3017 = vsel %vm490, %v3012, -inf
    %3018 = vmax.xlane.f32.xlu0 %v3017
    %v3019 = vpop.xlane.xlu0 %3018
    %v3020 = vsub.f32 %v3012, %v3019
    %v3021 = vmul.f32 %v3020, 1.442695
    %v3022 = vpow.pop %v3021
    %v3023 = vsel %vm490, %v3022, 0.0
    %3024 = vadd.xlane.f32.xlu0 %v3023
    %v3025 = vpop.xlane.xlu0 %3024
    %v3026 = vrcp.pop %v3025
    %v3027 = vmul.f32 %v3022, %v3026
    %v3028 = vpack.c.bf16 %v3027, %v3027
    %3030 = vrot.lane.b32.xlu0 %v286, 64
    %v3031 = vpop.permute.xlu0 %3030
    %v3033 = vsel %vm490, %v3028, 0
    %v3036 = vsel %vm506, %v3031, 0
    %3038 = vmatprep.subr.bf16.mxu0 0
    %3039 = vmatpush1.bf16.msra.mxu0 %v3036
    %3040 = vmatprep.subr.bf16.mxu0 0
    %3041 = vmatpush1.bf16.msra.mxu0 0
    %3042 = vmatprep.subr.bf16.mxu0 0
    %3043 = vmatpush1.bf16.msra.mxu0 0
    %3044 = vmatprep.subr.bf16.mxu0 0
    %3045 = vmatpush1.bf16.msra.mxu0 0
    %3046 = vmatprep.subr.bf16.mxu0 0
    %3047 = vmatpush1.bf16.msra.mxu0 0
    %3048 = vmatprep.subr.bf16.mxu0 0
    %3049 = vmatpush1.bf16.msra.mxu0 0
    %3050 = vmatprep.subr.bf16.mxu0 0
    %3051 = vmatpush1.bf16.msra.mxu0 0
    %3052 = vmatprep.subr.bf16.mxu0 0
    %3053 = vmatpush1.bf16.msra.mxu0 0
    %3054 = vmatprep.subr.bf16.mxu0 0
    %3055 = vmatpush1.bf16.msra.mxu0 0
    %3056 = vmatprep.subr.bf16.mxu0 0
    %3057 = vmatpush1.bf16.msra.mxu0 0
    %3058 = vmatprep.subr.bf16.mxu0 0
    %3059 = vmatpush1.bf16.msra.mxu0 0
    %3060 = vmatprep.subr.bf16.mxu0 0
    %3061 = vmatpush1.bf16.msra.mxu0 0
    %3062 = vmatprep.subr.bf16.mxu0 0
    %3063 = vmatpush1.bf16.msra.mxu0 0
    %3064 = vmatprep.subr.bf16.mxu0 0
    %3065 = vmatpush1.bf16.msra.mxu0 0
    %3066 = vmatprep.subr.bf16.mxu0 0
    %3067 = vmatpush1.bf16.msra.mxu0 0
    %3068 = vmatprep.subr.bf16.mxu0 0
    %3069 = vmatpush1.bf16.msra.mxu0 0
    %3070 = vmatprep.mubr.bf16.mxu0 0
    %3071 = vmatmul.mubr.bf16.gmra.mrb[0].mxu0 %v3033
    %v3072 = vpop.f32.mrb[0].mxu0
    %v3073 = vadd.f32 0.0, %v3072
    %v3074 = vpop.f32.mrb[0].mxu0
    %v3075 = vpop.f32.mrb[0].mxu0
    %v3076 = vpop.f32.mrb[0].mxu0
    %3077 = vdwg.mxu0
    %3079 = vrot.lane.b32.xlu0 %v2955, 96
    %v3080 = vpop.permute.xlu0 %3079
    %3081 = vrot.lane.b32.xlu0 %v286, 96
    %v3082 = vpop.permute.xlu0 %3081
    %v3084 = vsel %vm443, %v3080, 0
    %v3087 = vsel %vm443, %v3082, 0
    %3089 = vmatprep.subr.bf16.mxu0 0
    %3090 = vmatpush1.bf16.xpose.msra.mxu0 %v3087
    %3091 = vmatprep.subr.bf16.mxu0 0
    %3092 = vmatpush1.bf16.xpose.msra.mxu0 0
    %3093 = vmatprep.subr.bf16.mxu0 0
    %3094 = vmatpush1.bf16.xpose.msra.mxu0 0
    %3095 = vmatprep.subr.bf16.mxu0 0
    %3096 = vmatpush1.bf16.xpose.msra.mxu0 0
    %3097 = vmatprep.subr.bf16.mxu0 0
    %3098 = vmatpush1.bf16.xpose.msra.mxu0 0
    %3099 = vmatprep.subr.bf16.mxu0 0
    %3100 = vmatpush1.bf16.xpose.msra.mxu0 0
    %3101 = vmatprep.subr.bf16.mxu0 0
    %3102 = vmatpush1.bf16.xpose.msra.mxu0 0
    %3103 = vmatprep.subr.bf16.mxu0 0
    %3104 = vmatpush1.bf16.xpose.msra.mxu0 0
    %3105 = vmatprep.subr.bf16.mxu0 0
    %3106 = vmatpush1.bf16.xpose.msra.mxu0 0
    %3107 = vmatprep.subr.bf16.mxu0 0
    %3108 = vmatpush1.bf16.xpose.msra.mxu0 0
    %3109 = vmatprep.subr.bf16.mxu0 0
    %3110 = vmatpush1.bf16.xpose.msra.mxu0 0
    %3111 = vmatprep.subr.bf16.mxu0 0
    %3112 = vmatpush1.bf16.xpose.msra.mxu0 0
    %3113 = vmatprep.subr.bf16.mxu0 0
    %3114 = vmatpush1.bf16.xpose.msra.mxu0 0
    %3115 = vmatprep.subr.bf16.mxu0 0
    %3116 = vmatpush1.bf16.xpose.msra.mxu0 0
    %3117 = vmatprep.subr.bf16.mxu0 0
    %3118 = vmatpush1.bf16.xpose.msra.mxu0 0
    %3119 = vmatprep.subr.bf16.mxu0 0
    %3120 = vmatpush1.bf16.xpose.msra.mxu0 0
    %3121 = vmatprep.mubr.bf16.mxu0 0
    %3122 = vmatmul.mubr.bf16.gmra.mrb[0].mxu0 %v3084
    %v3123 = vpop.f32.mrb[0].mxu0
    %v3124 = vadd.f32 %v1145, %v3123
    %v3125 = vpop.f32.mrb[0].mxu0
    %v3126 = vpop.f32.mrb[0].mxu0
    %v3127 = vpop.f32.mrb[0].mxu0
    %3128 = vdwg.mxu0
    %v3129 = vsel %vm490, %v3124, -inf
    %3130 = vmax.xlane.f32.xlu0 %v3129
    %v3131 = vpop.xlane.xlu0 %3130
    %v3132 = vsub.f32 %v3124, %v3131
    %v3133 = vmul.f32 %v3132, 1.442695
    %v3134 = vpow.pop %v3133
    %v3135 = vsel %vm490, %v3134, 0.0
    %3136 = vadd.xlane.f32.xlu0 %v3135
    %v3137 = vpop.xlane.xlu0 %3136
    %v3138 = vrcp.pop %v3137
    %v3139 = vmul.f32 %v3134, %v3138
    %v3140 = vpack.c.bf16 %v3139, %v3139
    %3141 = vrot.lane.b32.xlu0 %v286, 32
    %v3142 = vpop.permute.xlu0 %3141
    %v3144 = vsel %vm490, %v3140, 0
    %v3147 = vsel %vm506, %v3142, 0
    %3149 = vmatprep.subr.bf16.mxu0 0
    %3150 = vmatpush1.bf16.msra.mxu0 %v3147
    %3151 = vmatprep.subr.bf16.mxu0 0
    %3152 = vmatpush1.bf16.msra.mxu0 0
    %3153 = vmatprep.subr.bf16.mxu0 0
    %3154 = vmatpush1.bf16.msra.mxu0 0
    %3155 = vmatprep.subr.bf16.mxu0 0
    %3156 = vmatpush1.bf16.msra.mxu0 0
    %3157 = vmatprep.subr.bf16.mxu0 0
    %3158 = vmatpush1.bf16.msra.mxu0 0
    %3159 = vmatprep.subr.bf16.mxu0 0
    %3160 = vmatpush1.bf16.msra.mxu0 0
    %3161 = vmatprep.subr.bf16.mxu0 0
    %3162 = vmatpush1.bf16.msra.mxu0 0
    %3163 = vmatprep.subr.bf16.mxu0 0
    %3164 = vmatpush1.bf16.msra.mxu0 0
    %3165 = vmatprep.subr.bf16.mxu0 0
    %3166 = vmatpush1.bf16.msra.mxu0 0
    %3167 = vmatprep.subr.bf16.mxu0 0
    %3168 = vmatpush1.bf16.msra.mxu0 0
    %3169 = vmatprep.subr.bf16.mxu0 0
    %3170 = vmatpush1.bf16.msra.mxu0 0
    %3171 = vmatprep.subr.bf16.mxu0 0
    %3172 = vmatpush1.bf16.msra.mxu0 0
    %3173 = vmatprep.subr.bf16.mxu0 0
    %3174 = vmatpush1.bf16.msra.mxu0 0
    %3175 = vmatprep.subr.bf16.mxu0 0
    %3176 = vmatpush1.bf16.msra.mxu0 0
    %3177 = vmatprep.subr.bf16.mxu0 0
    %3178 = vmatpush1.bf16.msra.mxu0 0
    %3179 = vmatprep.subr.bf16.mxu0 0
    %3180 = vmatpush1.bf16.msra.mxu0 0
    %3181 = vmatprep.mubr.bf16.mxu0 0
    %3182 = vmatmul.mubr.bf16.gmra.mrb[0].mxu0 %v3144
    %v3183 = vpop.f32.mrb[0].mxu0
    %v3184 = vadd.f32 0.0, %v3183
    %v3185 = vpop.f32.mrb[0].mxu0
    %v3186 = vpop.f32.mrb[0].mxu0
    %v3187 = vpop.f32.mrb[0].mxu0
    %3188 = vdwg.mxu0
    %3190 = vrot.lane.b32.xlu0 %v3184, 32
    %v3191 = vpop.permute.xlu0 %3190
    %v3193 = vsel %vm443, %v3073, %v3191
    %v3194 = vrot.slane %v2955, 4
    %v3195 = vrot.slane %v286, 4
    %v3197 = vsel %vm443, %v3194, 0
    %v3200 = vsel %vm443, %v3195, 0
    %3202 = vmatprep.subr.bf16.mxu0 0
    %3203 = vmatpush1.bf16.xpose.msra.mxu0 %v3200
    %3204 = vmatprep.subr.bf16.mxu0 0
    %3205 = vmatpush1.bf16.xpose.msra.mxu0 0
    %3206 = vmatprep.subr.bf16.mxu0 0
    %3207 = vmatpush1.bf16.xpose.msra.mxu0 0
    %3208 = vmatprep.subr.bf16.mxu0 0
    %3209 = vmatpush1.bf16.xpose.msra.mxu0 0
    %3210 = vmatprep.subr.bf16.mxu0 0
    %3211 = vmatpush1.bf16.xpose.msra.mxu0 0
    %3212 = vmatprep.subr.bf16.mxu0 0
    %3213 = vmatpush1.bf16.xpose.msra.mxu0 0
    %3214 = vmatprep.subr.bf16.mxu0 0
    %3215 = vmatpush1.bf16.xpose.msra.mxu0 0
    %3216 = vmatprep.subr.bf16.mxu0 0
    %3217 = vmatpush1.bf16.xpose.msra.mxu0 0
    %3218 = vmatprep.subr.bf16.mxu0 0
    %3219 = vmatpush1.bf16.xpose.msra.mxu0 0
    %3220 = vmatprep.subr.bf16.mxu0 0
    %3221 = vmatpush1.bf16.xpose.msra.mxu0 0
    %3222 = vmatprep.subr.bf16.mxu0 0
    %3223 = vmatpush1.bf16.xpose.msra.mxu0 0
    %3224 = vmatprep.subr.bf16.mxu0 0
    %3225 = vmatpush1.bf16.xpose.msra.mxu0 0
    %3226 = vmatprep.subr.bf16.mxu0 0
    %3227 = vmatpush1.bf16.xpose.msra.mxu0 0
    %3228 = vmatprep.subr.bf16.mxu0 0
    %3229 = vmatpush1.bf16.xpose.msra.mxu0 0
    %3230 = vmatprep.subr.bf16.mxu0 0
    %3231 = vmatpush1.bf16.xpose.msra.mxu0 0
    %3232 = vmatprep.subr.bf16.mxu0 0
    %3233 = vmatpush1.bf16.xpose.msra.mxu0 0
    %3234 = vmatprep.mubr.bf16.mxu0 0
    %3235 = vmatmul.mubr.bf16.gmra.mrb[0].mxu0 %v3197
    %v3236 = vpop.f32.mrb[0].mxu0
    %v3237 = vadd.f32 %v1372, %v3236
    %v3238 = vpop.f32.mrb[0].mxu0
    %v3239 = vpop.f32.mrb[0].mxu0
    %v3240 = vpop.f32.mrb[0].mxu0
    %3241 = vdwg.mxu0
    %v3242 = vsel %vm490, %v3237, -inf
    %3243 = vmax.xlane.f32.xlu0 %v3242
    %v3244 = vpop.xlane.xlu0 %3243
    %v3245 = vsub.f32 %v3237, %v3244
    %v3246 = vmul.f32 %v3245, 1.442695
    %v3247 = vpow.pop %v3246
    %v3248 = vsel %vm490, %v3247, 0.0
    %3249 = vadd.xlane.f32.xlu0 %v3248
    %v3250 = vpop.xlane.xlu0 %3249
    %v3251 = vrcp.pop %v3250
    %v3252 = vmul.f32 %v3247, %v3251
    %v3253 = vpack.c.bf16 %v3252, %v3252
    %3254 = vrot.lane.b32.xlu0 %v3195, 64
    %v3255 = vpop.permute.xlu0 %3254
    %v3257 = vsel %vm490, %v3253, 0
    %v3260 = vsel %vm506, %v3255, 0
    %3262 = vmatprep.subr.bf16.mxu0 0
    %3263 = vmatpush1.bf16.msra.mxu0 %v3260
    %3264 = vmatprep.subr.bf16.mxu0 0
    %3265 = vmatpush1.bf16.msra.mxu0 0
    %3266 = vmatprep.subr.bf16.mxu0 0
    %3267 = vmatpush1.bf16.msra.mxu0 0
    %3268 = vmatprep.subr.bf16.mxu0 0
    %3269 = vmatpush1.bf16.msra.mxu0 0
    %3270 = vmatprep.subr.bf16.mxu0 0
    %3271 = vmatpush1.bf16.msra.mxu0 0
    %3272 = vmatprep.subr.bf16.mxu0 0
    %3273 = vmatpush1.bf16.msra.mxu0 0
    %3274 = vmatprep.subr.bf16.mxu0 0
    %3275 = vmatpush1.bf16.msra.mxu0 0
    %3276 = vmatprep.subr.bf16.mxu0 0
    %3277 = vmatpush1.bf16.msra.mxu0 0
    %3278 = vmatprep.subr.bf16.mxu0 0
    %3279 = vmatpush1.bf16.msra.mxu0 0
    %3280 = vmatprep.subr.bf16.mxu0 0
    %3281 = vmatpush1.bf16.msra.mxu0 0
    %3282 = vmatprep.subr.bf16.mxu0 0
    %3283 = vmatpush1.bf16.msra.mxu0 0
    %3284 = vmatprep.subr.bf16.mxu0 0
    %3285 = vmatpush1.bf16.msra.mxu0 0
    %3286 = vmatprep.subr.bf16.mxu0 0
    %3287 = vmatpush1.bf16.msra.mxu0 0
    %3288 = vmatprep.subr.bf16.mxu0 0
    %3289 = vmatpush1.bf16.msra.mxu0 0
    %3290 = vmatprep.subr.bf16.mxu0 0
    %3291 = vmatpush1.bf16.msra.mxu0 0
    %3292 = vmatprep.subr.bf16.mxu0 0
    %3293 = vmatpush1.bf16.msra.mxu0 0
    %3294 = vmatprep.mubr.bf16.mxu0 0
    %3295 = vmatmul.mubr.bf16.gmra.mrb[0].mxu0 %v3257
    %v3296 = vpop.f32.mrb[0].mxu0
    %v3297 = vadd.f32 0.0, %v3296
    %v3298 = vpop.f32.mrb[0].mxu0
    %v3299 = vpop.f32.mrb[0].mxu0
    %v3300 = vpop.f32.mrb[0].mxu0
    %3301 = vdwg.mxu0
    %3302 = vrot.lane.b32.xlu0 %v3194, 96
    %v3303 = vpop.permute.xlu0 %3302
    %3304 = vrot.lane.b32.xlu0 %v3195, 96
    %v3305 = vpop.permute.xlu0 %3304
    %v3307 = vsel %vm443, %v3303, 0
    %v3310 = vsel %vm443, %v3305, 0
    %3312 = vmatprep.subr.bf16.mxu0 0
    %3313 = vmatpush1.bf16.xpose.msra.mxu0 %v3310
    %3314 = vmatprep.subr.bf16.mxu0 0
    %3315 = vmatpush1.bf16.xpose.msra.mxu0 0
    %3316 = vmatprep.subr.bf16.mxu0 0
    %3317 = vmatpush1.bf16.xpose.msra.mxu0 0
    %3318 = vmatprep.subr.bf16.mxu0 0
    %3319 = vmatpush1.bf16.xpose.msra.mxu0 0
    %3320 = vmatprep.subr.bf16.mxu0 0
    %3321 = vmatpush1.bf16.xpose.msra.mxu0 0
    %3322 = vmatprep.subr.bf16.mxu0 0
    %3323 = vmatpush1.bf16.xpose.msra.mxu0 0
    %3324 = vmatprep.subr.bf16.mxu0 0
    %3325 = vmatpush1.bf16.xpose.msra.mxu0 0
    %3326 = vmatprep.subr.bf16.mxu0 0
    %3327 = vmatpush1.bf16.xpose.msra.mxu0 0
    %3328 = vmatprep.subr.bf16.mxu0 0
    %3329 = vmatpush1.bf16.xpose.msra.mxu0 0
    %3330 = vmatprep.subr.bf16.mxu0 0
    %3331 = vmatpush1.bf16.xpose.msra.mxu0 0
    %3332 = vmatprep.subr.bf16.mxu0 0
    %3333 = vmatpush1.bf16.xpose.msra.mxu0 0
    %3334 = vmatprep.subr.bf16.mxu0 0
    %3335 = vmatpush1.bf16.xpose.msra.mxu0 0
    %3336 = vmatprep.subr.bf16.mxu0 0
    %3337 = vmatpush1.bf16.xpose.msra.mxu0 0
    %3338 = vmatprep.subr.bf16.mxu0 0
    %3339 = vmatpush1.bf16.xpose.msra.mxu0 0
    %3340 = vmatprep.subr.bf16.mxu0 0
    %3341 = vmatpush1.bf16.xpose.msra.mxu0 0
    %3342 = vmatprep.subr.bf16.mxu0 0
    %3343 = vmatpush1.bf16.xpose.msra.mxu0 0
    %3344 = vmatprep.mubr.bf16.mxu0 0
    %3345 = vmatmul.mubr.bf16.gmra.mrb[0].mxu0 %v3307
    %v3346 = vpop.f32.mrb[0].mxu0
    %v3347 = vadd.f32 %v1372, %v3346
    %v3348 = vpop.f32.mrb[0].mxu0
    %v3349 = vpop.f32.mrb[0].mxu0
    %v3350 = vpop.f32.mrb[0].mxu0
    %3351 = vdwg.mxu0
    %v3352 = vsel %vm490, %v3347, -inf
    %3353 = vmax.xlane.f32.xlu0 %v3352
    %v3354 = vpop.xlane.xlu0 %3353
    %v3355 = vsub.f32 %v3347, %v3354
    %v3356 = vmul.f32 %v3355, 1.442695
    %v3357 = vpow.pop %v3356
    %v3358 = vsel %vm490, %v3357, 0.0
    %3359 = vadd.xlane.f32.xlu0 %v3358
    %v3360 = vpop.xlane.xlu0 %3359
    %v3361 = vrcp.pop %v3360
    %v3362 = vmul.f32 %v3357, %v3361
    %v3363 = vpack.c.bf16 %v3362, %v3362
    %3364 = vrot.lane.b32.xlu0 %v3195, 32
    %v3365 = vpop.permute.xlu0 %3364
    %v3367 = vsel %vm490, %v3363, 0
    %v3370 = vsel %vm506, %v3365, 0
    %3372 = vmatprep.subr.bf16.mxu0 0
    %3373 = vmatpush1.bf16.msra.mxu0 %v3370
    %3374 = vmatprep.subr.bf16.mxu0 0
    %3375 = vmatpush1.bf16.msra.mxu0 0
    %3376 = vmatprep.subr.bf16.mxu0 0
    %3377 = vmatpush1.bf16.msra.mxu0 0
    %3378 = vmatprep.subr.bf16.mxu0 0
    %3379 = vmatpush1.bf16.msra.mxu0 0
    %3380 = vmatprep.subr.bf16.mxu0 0
    %3381 = vmatpush1.bf16.msra.mxu0 0
    %3382 = vmatprep.subr.bf16.mxu0 0
    %3383 = vmatpush1.bf16.msra.mxu0 0
    %3384 = vmatprep.subr.bf16.mxu0 0
    %3385 = vmatpush1.bf16.msra.mxu0 0
    %3386 = vmatprep.subr.bf16.mxu0 0
    %3387 = vmatpush1.bf16.msra.mxu0 0
    %3388 = vmatprep.subr.bf16.mxu0 0
    %3389 = vmatpush1.bf16.msra.mxu0 0
    %3390 = vmatprep.subr.bf16.mxu0 0
    %3391 = vmatpush1.bf16.msra.mxu0 0
    %3392 = vmatprep.subr.bf16.mxu0 0
    %3393 = vmatpush1.bf16.msra.mxu0 0
    %3394 = vmatprep.subr.bf16.mxu0 0
    %3395 = vmatpush1.bf16.msra.mxu0 0
    %3396 = vmatprep.subr.bf16.mxu0 0
    %3397 = vmatpush1.bf16.msra.mxu0 0
    %3398 = vmatprep.subr.bf16.mxu0 0
    %3399 = vmatpush1.bf16.msra.mxu0 0
    %3400 = vmatprep.subr.bf16.mxu0 0
    %3401 = vmatpush1.bf16.msra.mxu0 0
    %3402 = vmatprep.subr.bf16.mxu0 0
    %3403 = vmatpush1.bf16.msra.mxu0 0
    %3404 = vmatprep.mubr.bf16.mxu0 0
    %3405 = vmatmul.mubr.bf16.gmra.mrb[0].mxu0 %v3367
    %v3406 = vpop.f32.mrb[0].mxu0
    %v3407 = vadd.f32 0.0, %v3406
    %v3408 = vpop.f32.mrb[0].mxu0
    %v3409 = vpop.f32.mrb[0].mxu0
    %v3410 = vpop.f32.mrb[0].mxu0
    %3411 = vdwg.mxu0
    %3413 = vrot.lane.b32.xlu0 %v3407, 32
    %v3414 = vpop.permute.xlu0 %3413
    %v3416 = vsel %vm443, %v3297, %v3414
    %v3417 = vpack.c.bf16 %v3416, %v3193
    %v3419 = vlaneseq
    %v3420 = vshrl.u32 %v3419, 7
    %v3421 = vsub.s32 0, %v3420
    %v3422 = vrot.slane %v2966, %v3421
    %v3432 = vunpack.c.l.b16 %v2957
    %v3433 = vunpack.c.l.b16 %v2958
    %v3434 = vunpack.c.l.b16 %v2959
    %v3435 = vunpack.c.l.b16 %v2960
    %v3436 = vunpack.c.l.b16 %v2961
    %v3437 = vunpack.c.l.b16 %v2962
    %v3438 = vunpack.c.l.b16 %v2963
    %v3439 = vunpack.c.l.b16 %v2964
    %v3440 = vpack.c.b16 %v3433, %v3432
    %v3441 = vpack.c.b16 %v3435, %v3434
    %v3442 = vpack.c.b16 %v3437, %v3436
    %v3443 = vpack.c.b16 %v3439, %v3438
    %v3449 = vsel %vm920, %v3417, 0
    %3451 = vmatprep.subr.bf16.mxu0 0
    %3452 = vmatpush1.bf16.msra.mxu0 %v3440
    %3453 = vmatprep.subr.bf16.mxu0 0
    %3454 = vmatpush1.bf16.msra.mxu0 %v3441
    %3455 = vmatprep.subr.bf16.mxu0 0
    %3456 = vmatpush1.bf16.msra.mxu0 %v3442
    %3457 = vmatprep.subr.bf16.mxu0 0
    %3458 = vmatpush1.bf16.msra.mxu0 %v3443
    %3459 = vmatprep.subr.bf16.mxu0 0
    %3460 = vmatpush1.bf16.msra.mxu0 0
    %3461 = vmatprep.subr.bf16.mxu0 0
    %3462 = vmatpush1.bf16.msra.mxu0 0
    %3463 = vmatprep.subr.bf16.mxu0 0
    %3464 = vmatpush1.bf16.msra.mxu0 0
    %3465 = vmatprep.subr.bf16.mxu0 0
    %3466 = vmatpush1.bf16.msra.mxu0 0
    %3467 = vmatprep.subr.bf16.mxu0 0
    %3468 = vmatpush1.bf16.msra.mxu0 0
    %3469 = vmatprep.subr.bf16.mxu0 0
    %3470 = vmatpush1.bf16.msra.mxu0 0
    %3471 = vmatprep.subr.bf16.mxu0 0
    %3472 = vmatpush1.bf16.msra.mxu0 0
    %3473 = vmatprep.subr.bf16.mxu0 0
    %3474 = vmatpush1.bf16.msra.mxu0 0
    %3475 = vmatprep.subr.bf16.mxu0 0
    %3476 = vmatpush1.bf16.msra.mxu0 0
    %3477 = vmatprep.subr.bf16.mxu0 0
    %3478 = vmatpush1.bf16.msra.mxu0 0
    %3479 = vmatprep.subr.bf16.mxu0 0
    %3480 = vmatpush1.bf16.msra.mxu0 0
    %3481 = vmatprep.subr.bf16.mxu0 0
    %3482 = vmatpush1.bf16.msra.mxu0 0
    %3483 = vmatprep.mubr.bf16.mxu0 0
    %3484 = vmatmul.mubr.bf16.gmra.mrb[0].mxu0 %v3449
    %v3485 = vpop.f32.mrb[0].mxu0
    %v3486 = vadd.f32 %v3422, %v3485
    %v3487 = vpop.f32.mrb[0].mxu0
    %v3488 = vpop.f32.mrb[0].mxu0
    %v3489 = vadd.f32 %v3422, %v3488
    %v3490 = vpop.f32.mrb[0].mxu0
    %3491 = vdwg.mxu0
    %v3492 = vadd.f32 %v3486, %v2846
    %v3493 = vadd.f32 %v3489, %v2847
    %3494 = vadd.xlane.f32.xlu0 %v3492
    %v3495 = vpop.xlane.xlu0 %3494
    %3496 = vadd.xlane.f32.xlu0 %v3493
    %v3497 = vpop.xlane.xlu0 %3496
    %v3498 = vmul.f32 %v3495, %v971
    %v3499 = vmul.f32 %v3497, %v971
    %v3500 = vsub.f32 %v3492, %v3498
    %v3501 = vsub.f32 %v3493, %v3499
    %v3502 = vmul.f32 %v3500, %v3500
    %v3503 = vmul.f32 %v3501, %v3501
    %3504 = vadd.xlane.f32.xlu0 %v3502
    %v3505 = vpop.xlane.xlu0 %3504
    %3506 = vadd.xlane.f32.xlu0 %v3503
    %v3507 = vpop.xlane.xlu0 %3506
    %v3508 = vmul.f32 %v3505, 0.007874016
    %v3509 = vmul.f32 %v3507, 0.007874016
    %v3510 = vrsqrt.pop %v3508
    %v3511 = vmul.f32 %v3508, %v3510
    %vm3512 = vcmp.eq.f32.partialorder %v3508, inf
    %v3513 = vsel %vm3512, %v3508, %v3511
    %vm3514 = vcmp.eq.f32.partialorder %v3508, 0.0
    %v3515 = vand.u32 %v3508, 2147483648
    %v3516 = vsel %vm3514, %v3515, %v3513
    %v3517 = vrsqrt.pop %v3509
    %v3518 = vmul.f32 %v3509, %v3517
    %vm3519 = vcmp.eq.f32.partialorder %v3509, inf
    %v3520 = vsel %vm3519, %v3509, %v3518
    %vm3521 = vcmp.eq.f32.partialorder %v3509, 0.0
    %v3522 = vand.u32 %v3509, 2147483648
    %v3523 = vsel %vm3521, %v3522, %v3520
    %v3524 = vadd.f32 %v3516, 0.001
    %v3525 = vadd.f32 %v3523, 0.001
    %v3526 = vrcp.pop %v3524
    %v3527 = vrcp.pop %v3525
    %v3528 = vmul.f32 %v3500, %v3526
    %v3529 = vmul.f32 %v3501, %v3527
    %v3531 = vlaneseq
    %v3532 = vshrl.u32 %v3531, 7
    %v3533 = vsub.s32 0, %v3532
    %v3534 = vrot.slane %v2968, %v3533
    %v3536 = vmul.f32 %v3528, %v3534
    %v3537 = vmul.f32 %v3529, %v3534
    %v3539 = vlaneseq
    %v3540 = vshrl.u32 %v3539, 7
    %v3541 = vsub.s32 0, %v3540
    %v3542 = vrot.slane %v2970, %v3541
    %v3544 = vadd.f32 %v3536, %v3542
    %v3545 = vadd.f32 %v3537, %v3542
    %v3546 = vpack.c.bf16 %v3545, %v3544
    %s3547 = scalar_lea.vmem %s11, 128
    %v3548 = vld [vmem:[%s3547] sm:$0xff]
    %v3549 = vld [vmem:[%s3547 + $0x8] sm:$0xff]
    %v3550 = vld [vmem:[%s3547 + $0x10] sm:$0xff]
    %v3551 = vld [vmem:[%s3547 + $0x18] sm:$0xff]
    %v3552 = vld [vmem:[%s3547 + $0x20] sm:$0xff]
    %v3553 = vld [vmem:[%s3547 + $0x28] sm:$0xff]
    %v3554 = vld [vmem:[%s3547 + $0x30] sm:$0xff]
    %v3555 = vld [vmem:[%s3547 + $0x38] sm:$0xff]
    %v3556 = vld [vmem:[%s3547 + $0x40] sm:$0xff]
    %v3557 = vld [vmem:[%s3547 + $0x48] sm:$0xff]
    %v3558 = vld [vmem:[%s3547 + $0x50] sm:$0xff]
    %v3559 = vld [vmem:[%s3547 + $0x58] sm:$0xff]
    %v3560 = vld [vmem:[%s3547 + $0x60] sm:$0xff]
    %v3561 = vld [vmem:[%s3547 + $0x68] sm:$0xff]
    %v3562 = vld [vmem:[%s3547 + $0x70] sm:$0xff]
    %v3563 = vld [vmem:[%s3547 + $0x78] sm:$0xff]
    %s3564 = scalar_lea.vmem %s12, 2
    %v3565 = vld [vmem:[%s3564] sm:$0x3]
    %v3567 = vlaneseq
    %v3568 = vshrl.u32 %v3567, 7
    %v3569 = vsub.s32 0, %v3568
    %v3570 = vrot.slane %v3565, %v3569
    %v3571 = vlaneseq
    %v3572 = vshrl.u32 %v3571, 7
    %v3573 = vsub.s32 1, %v3572
    %v3574 = vrot.slane %v3565, %v3573
    %v3593 = vunpack.c.l.b16 %v3548
    %v3594 = vunpack.c.h.b16 %v3548
    %v3595 = vunpack.c.l.b16 %v3549
    %v3596 = vunpack.c.h.b16 %v3549
    %v3597 = vunpack.c.l.b16 %v3550
    %v3598 = vunpack.c.h.b16 %v3550
    %v3599 = vunpack.c.l.b16 %v3551
    %v3600 = vunpack.c.h.b16 %v3551
    %v3601 = vunpack.c.l.b16 %v3552
    %v3602 = vunpack.c.h.b16 %v3552
    %v3603 = vunpack.c.l.b16 %v3553
    %v3604 = vunpack.c.h.b16 %v3553
    %v3605 = vunpack.c.l.b16 %v3554
    %v3606 = vunpack.c.h.b16 %v3554
    %v3607 = vunpack.c.l.b16 %v3555
    %v3608 = vunpack.c.h.b16 %v3555
    %v3609 = vunpack.c.l.b16 %v3556
    %v3610 = vunpack.c.h.b16 %v3556
    %v3611 = vunpack.c.l.b16 %v3557
    %v3612 = vunpack.c.h.b16 %v3557
    %v3613 = vunpack.c.l.b16 %v3558
    %v3614 = vunpack.c.h.b16 %v3558
    %v3615 = vunpack.c.l.b16 %v3559
    %v3616 = vunpack.c.h.b16 %v3559
    %v3617 = vunpack.c.l.b16 %v3560
    %v3618 = vunpack.c.h.b16 %v3560
    %v3619 = vunpack.c.l.b16 %v3561
    %v3620 = vunpack.c.h.b16 %v3561
    %v3621 = vunpack.c.l.b16 %v3562
    %v3622 = vunpack.c.h.b16 %v3562
    %v3623 = vunpack.c.l.b16 %v3563
    %v3624 = vunpack.c.h.b16 %v3563
    %v3625 = vpack.c.b16 %v3595, %v3593
    %v3626 = vpack.c.b16 %v3596, %v3594
    %v3627 = vpack.c.b16 %v3599, %v3597
    %v3628 = vpack.c.b16 %v3600, %v3598
    %v3629 = vpack.c.b16 %v3603, %v3601
    %v3630 = vpack.c.b16 %v3604, %v3602
    %v3631 = vpack.c.b16 %v3607, %v3605
    %v3632 = vpack.c.b16 %v3608, %v3606
    %v3633 = vpack.c.b16 %v3611, %v3609
    %v3634 = vpack.c.b16 %v3612, %v3610
    %v3635 = vpack.c.b16 %v3615, %v3613
    %v3636 = vpack.c.b16 %v3616, %v3614
    %v3637 = vpack.c.b16 %v3619, %v3617
    %v3638 = vpack.c.b16 %v3620, %v3618
    %v3639 = vpack.c.b16 %v3623, %v3621
    %v3640 = vpack.c.b16 %v3624, %v3622
    %3657 = vmatprep.subr.bf16.mxu0 %v3626
    %3658 = vmatpush1.bf16.msra.mxu0 %v3625
    %3659 = vmatprep.subr.bf16.mxu0 %v3628
    %3660 = vmatpush1.bf16.msra.mxu0 %v3627
    %3661 = vmatprep.subr.bf16.mxu0 %v3630
    %3662 = vmatpush1.bf16.msra.mxu0 %v3629
    %3663 = vmatprep.subr.bf16.mxu0 %v3632
    %3664 = vmatpush1.bf16.msra.mxu0 %v3631
    %3665 = vmatprep.subr.bf16.mxu0 %v3634
    %3666 = vmatpush1.bf16.msra.mxu0 %v3633
    %3667 = vmatprep.subr.bf16.mxu0 %v3636
    %3668 = vmatpush1.bf16.msra.mxu0 %v3635
    %3669 = vmatprep.subr.bf16.mxu0 %v3638
    %3670 = vmatpush1.bf16.msra.mxu0 %v3637
    %3671 = vmatprep.subr.bf16.mxu0 %v3640
    %3672 = vmatpush1.bf16.msra.mxu0 %v3639
    %3673 = vmatprep.subr.bf16.mxu0 0
    %3674 = vmatpush1.bf16.msra.mxu0 0
    %3675 = vmatprep.subr.bf16.mxu0 0
    %3676 = vmatpush1.bf16.msra.mxu0 0
    %3677 = vmatprep.subr.bf16.mxu0 0
    %3678 = vmatpush1.bf16.msra.mxu0 0
    %3679 = vmatprep.subr.bf16.mxu0 0
    %3680 = vmatpush1.bf16.msra.mxu0 0
    %3681 = vmatprep.subr.bf16.mxu0 0
    %3682 = vmatpush1.bf16.msra.mxu0 0
    %3683 = vmatprep.subr.bf16.mxu0 0
    %3684 = vmatpush1.bf16.msra.mxu0 0
    %3685 = vmatprep.subr.bf16.mxu0 0
    %3686 = vmatpush1.bf16.msra.mxu0 0
    %3687 = vmatprep.subr.bf16.mxu0 0
    %3688 = vmatpush1.bf16.msra.mxu0 0
    %3689 = vmatprep.mubr.bf16.mxu0 0
    %3690 = vmatmul.mubr.bf16.gmra.mrb[0].mxu0 %v3546
    %v3691 = vpop.f32.mrb[0].mxu0
    %v3692 = vadd.f32 %v3570, %v3691
    %v3693 = vpop.f32.mrb[0].mxu0
    %v3694 = vadd.f32 %v3574, %v3693
    %v3695 = vpop.f32.mrb[0].mxu0
    %v3696 = vadd.f32 %v3570, %v3695
    %v3697 = vpop.f32.mrb[0].mxu0
    %v3698 = vadd.f32 %v3574, %v3697
    %3699 = vdwg.mxu0
    %v3700 = vmax.f32 %v3692, 0.0
    %v3701 = vmax.f32 %v3694, 0.0
    %v3702 = vmax.f32 %v3696, 0.0
    %v3703 = vmax.f32 %v3698, 0.0
    %v3704 = vpack.c.bf16 %v3702, %v3700
    %v3705 = vpack.c.bf16 %v3703, %v3701
    %s3706 = scalar_lea.vmem %s13, 128
    %v3707 = vld [vmem:[%s3706] sm:$0xf]
    %v3708 = vld [vmem:[%s3706 + $0x4] sm:$0xf]
    %v3709 = vld [vmem:[%s3706 + $0x8] sm:$0xf]
    %v3710 = vld [vmem:[%s3706 + $0xc] sm:$0xf]
    %v3711 = vld [vmem:[%s3706 + $0x10] sm:$0xf]
    %v3712 = vld [vmem:[%s3706 + $0x14] sm:$0xf]
    %v3713 = vld [vmem:[%s3706 + $0x18] sm:$0xf]
    %v3714 = vld [vmem:[%s3706 + $0x1c] sm:$0xf]
    %v3715 = vld [vmem:[%s3706 + $0x20] sm:$0xf]
    %v3716 = vld [vmem:[%s3706 + $0x24] sm:$0xf]
    %v3717 = vld [vmem:[%s3706 + $0x28] sm:$0xf]
    %v3718 = vld [vmem:[%s3706 + $0x2c] sm:$0xf]
    %v3719 = vld [vmem:[%s3706 + $0x30] sm:$0xf]
    %v3720 = vld [vmem:[%s3706 + $0x34] sm:$0xf]
    %v3721 = vld [vmem:[%s3706 + $0x38] sm:$0xf]
    %v3722 = vld [vmem:[%s3706 + $0x3c] sm:$0xf]
    %v3723 = vld [vmem:[%s3706 + $0x40] sm:$0xf]
    %v3724 = vld [vmem:[%s3706 + $0x44] sm:$0xf]
    %v3725 = vld [vmem:[%s3706 + $0x48] sm:$0xf]
    %v3726 = vld [vmem:[%s3706 + $0x4c] sm:$0xf]
    %v3727 = vld [vmem:[%s3706 + $0x50] sm:$0xf]
    %v3728 = vld [vmem:[%s3706 + $0x54] sm:$0xf]
    %v3729 = vld [vmem:[%s3706 + $0x58] sm:$0xf]
    %v3730 = vld [vmem:[%s3706 + $0x5c] sm:$0xf]
    %v3731 = vld [vmem:[%s3706 + $0x60] sm:$0xf]
    %v3732 = vld [vmem:[%s3706 + $0x64] sm:$0xf]
    %v3733 = vld [vmem:[%s3706 + $0x68] sm:$0xf]
    %v3734 = vld [vmem:[%s3706 + $0x6c] sm:$0xf]
    %v3735 = vld [vmem:[%s3706 + $0x70] sm:$0xf]
    %v3736 = vld [vmem:[%s3706 + $0x74] sm:$0xf]
    %v3737 = vld [vmem:[%s3706 + $0x78] sm:$0xf]
    %v3738 = vld [vmem:[%s3706 + $0x7c] sm:$0xf]
    %s3739 = scalar_lea.vmem %s14, 1
    %v3740 = vld [vmem:[%s3739] sm:$0x1]
    %v3742 = vlaneseq
    %v3743 = vshrl.u32 %v3742, 7
    %v3744 = vsub.s32 0, %v3743
    %v3745 = vrot.slane %v3740, %v3744
    %v3779 = vunpack.c.l.b16 %v3707
    %v3780 = vunpack.c.l.b16 %v3708
    %v3781 = vunpack.c.l.b16 %v3709
    %v3782 = vunpack.c.l.b16 %v3710
    %v3783 = vunpack.c.l.b16 %v3711
    %v3784 = vunpack.c.l.b16 %v3712
    %v3785 = vunpack.c.l.b16 %v3713
    %v3786 = vunpack.c.l.b16 %v3714
    %v3787 = vunpack.c.l.b16 %v3715
    %v3788 = vunpack.c.l.b16 %v3716
    %v3789 = vunpack.c.l.b16 %v3717
    %v3790 = vunpack.c.l.b16 %v3718
    %v3791 = vunpack.c.l.b16 %v3719
    %v3792 = vunpack.c.l.b16 %v3720
    %v3793 = vunpack.c.l.b16 %v3721
    %v3794 = vunpack.c.l.b16 %v3722
    %v3795 = vunpack.c.l.b16 %v3723
    %v3796 = vunpack.c.l.b16 %v3724
    %v3797 = vunpack.c.l.b16 %v3725
    %v3798 = vunpack.c.l.b16 %v3726
    %v3799 = vunpack.c.l.b16 %v3727
    %v3800 = vunpack.c.l.b16 %v3728
    %v3801 = vunpack.c.l.b16 %v3729
    %v3802 = vunpack.c.l.b16 %v3730
    %v3803 = vunpack.c.l.b16 %v3731
    %v3804 = vunpack.c.l.b16 %v3732
    %v3805 = vunpack.c.l.b16 %v3733
    %v3806 = vunpack.c.l.b16 %v3734
    %v3807 = vunpack.c.l.b16 %v3735
    %v3808 = vunpack.c.l.b16 %v3736
    %v3809 = vunpack.c.l.b16 %v3737
    %v3810 = vunpack.c.l.b16 %v3738
    %v3811 = vpack.c.b16 %v3780, %v3779
    %v3812 = vpack.c.b16 %v3782, %v3781
    %v3813 = vpack.c.b16 %v3784, %v3783
    %v3814 = vpack.c.b16 %v3786, %v3785
    %v3815 = vpack.c.b16 %v3788, %v3787
    %v3816 = vpack.c.b16 %v3790, %v3789
    %v3817 = vpack.c.b16 %v3792, %v3791
    %v3818 = vpack.c.b16 %v3794, %v3793
    %v3819 = vpack.c.b16 %v3796, %v3795
    %v3820 = vpack.c.b16 %v3798, %v3797
    %v3821 = vpack.c.b16 %v3800, %v3799
    %v3822 = vpack.c.b16 %v3802, %v3801
    %v3823 = vpack.c.b16 %v3804, %v3803
    %v3824 = vpack.c.b16 %v3806, %v3805
    %v3825 = vpack.c.b16 %v3808, %v3807
    %v3826 = vpack.c.b16 %v3810, %v3809
    %3843 = vmatprep.subr.bf16.mxu0 0
    %3844 = vmatpush1.bf16.msra.mxu0 %v3811
    %3845 = vmatprep.subr.bf16.mxu0 0
    %3846 = vmatpush1.bf16.msra.mxu0 %v3812
    %3847 = vmatprep.subr.bf16.mxu0 0
    %3848 = vmatpush1.bf16.msra.mxu0 %v3813
    %3849 = vmatprep.subr.bf16.mxu0 0
    %3850 = vmatpush1.bf16.msra.mxu0 %v3814
    %3851 = vmatprep.subr.bf16.mxu0 0
    %3852 = vmatpush1.bf16.msra.mxu0 %v3815
    %3853 = vmatprep.subr.bf16.mxu0 0
    %3854 = vmatpush1.bf16.msra.mxu0 %v3816
    %3855 = vmatprep.subr.bf16.mxu0 0
    %3856 = vmatpush1.bf16.msra.mxu0 %v3817
    %3857 = vmatprep.subr.bf16.mxu0 0
    %3858 = vmatpush1.bf16.msra.mxu0 %v3818
    %3859 = vmatprep.subr.bf16.mxu0 0
    %3860 = vmatpush1.bf16.msra.mxu0 %v3819
    %3861 = vmatprep.subr.bf16.mxu0 0
    %3862 = vmatpush1.bf16.msra.mxu0 %v3820
    %3863 = vmatprep.subr.bf16.mxu0 0
    %3864 = vmatpush1.bf16.msra.mxu0 %v3821
    %3865 = vmatprep.subr.bf16.mxu0 0
    %3866 = vmatpush1.bf16.msra.mxu0 %v3822
    %3867 = vmatprep.subr.bf16.mxu0 0
    %3868 = vmatpush1.bf16.msra.mxu0 %v3823
    %3869 = vmatprep.subr.bf16.mxu0 0
    %3870 = vmatpush1.bf16.msra.mxu0 %v3824
    %3871 = vmatprep.subr.bf16.mxu0 0
    %3872 = vmatpush1.bf16.msra.mxu0 %v3825
    %3873 = vmatprep.subr.bf16.mxu0 0
    %3874 = vmatpush1.bf16.msra.mxu0 %v3826
    %3875 = vmatprep.mubr.bf16.mxu0 %v3705
    %3876 = vmatmul.mubr.bf16.gmra.mrb[0].mxu0 %v3704
    %v3877 = vpop.f32.mrb[0].mxu0
    %v3878 = vadd.f32 %v3745, %v3877
    %v3879 = vpop.f32.mrb[0].mxu0
    %v3880 = vpop.f32.mrb[0].mxu0
    %v3881 = vadd.f32 %v3745, %v3880
    %v3882 = vpop.f32.mrb[0].mxu0
    %3883 = vdwg.mxu0
    %v3884 = vadd.f32 %v3878, %v3544
    %v3885 = vadd.f32 %v3881, %v3545
    %s3886 = scalar_lea.vmem %s15, 1
    %v3887 = vld [vmem:[%s3886] sm:$0x1]
    %s3888 = scalar_lea.vmem %s16, 1
    %v3889 = vld [vmem:[%s3888] sm:$0x1]
    %3890 = vadd.xlane.f32.xlu0 %v3884
    %v3891 = vpop.xlane.xlu0 %3890
    %3892 = vadd.xlane.f32.xlu0 %v3885
    %v3893 = vpop.xlane.xlu0 %3892
    %v3894 = vmul.f32 %v3891, %v971
    %v3895 = vmul.f32 %v3893, %v971
    %v3896 = vsub.f32 %v3884, %v3894
    %v3897 = vsub.f32 %v3885, %v3895
    %v3898 = vmul.f32 %v3896, %v3896
    %v3899 = vmul.f32 %v3897, %v3897
    %3900 = vadd.xlane.f32.xlu0 %v3898
    %v3901 = vpop.xlane.xlu0 %3900
    %3902 = vadd.xlane.f32.xlu0 %v3899
    %v3903 = vpop.xlane.xlu0 %3902
    %v3904 = vmul.f32 %v3901, 0.007874016
    %v3905 = vmul.f32 %v3903, 0.007874016
    %v3906 = vrsqrt.pop %v3904
    %v3907 = vmul.f32 %v3904, %v3906
    %vm3908 = vcmp.eq.f32.partialorder %v3904, inf
    %v3909 = vsel %vm3908, %v3904, %v3907
    %vm3910 = vcmp.eq.f32.partialorder %v3904, 0.0
    %v3911 = vand.u32 %v3904, 2147483648
    %v3912 = vsel %vm3910, %v3911, %v3909
    %v3913 = vrsqrt.pop %v3905
    %v3914 = vmul.f32 %v3905, %v3913
    %vm3915 = vcmp.eq.f32.partialorder %v3905, inf
    %v3916 = vsel %vm3915, %v3905, %v3914
    %vm3917 = vcmp.eq.f32.partialorder %v3905, 0.0
    %v3918 = vand.u32 %v3905, 2147483648
    %v3919 = vsel %vm3917, %v3918, %v3916
    %v3920 = vadd.f32 %v3912, 0.001
    %v3921 = vadd.f32 %v3919, 0.001
    %v3922 = vrcp.pop %v3920
    %v3923 = vrcp.pop %v3921
    %v3924 = vmul.f32 %v3896, %v3922
    %v3925 = vmul.f32 %v3897, %v3923
    %v3927 = vlaneseq
    %v3928 = vshrl.u32 %v3927, 7
    %v3929 = vsub.s32 0, %v3928
    %v3930 = vrot.slane %v3887, %v3929
    %v3932 = vmul.f32 %v3924, %v3930
    %v3933 = vmul.f32 %v3925, %v3930
    %v3935 = vlaneseq
    %v3936 = vshrl.u32 %v3935, 7
    %v3937 = vsub.s32 0, %v3936
    %v3938 = vrot.slane %v3889, %v3937
    %v3940 = vadd.f32 %v3932, %v3938
    %v3941 = vadd.f32 %v3933, %v3938
    %3942 = vst [vmem:[#allocation10] sm:$0xff] %v3940
    %3943 = vst [vmem:[#allocation10 + $0x8] sm:$0xff] %v3941
    // Predicated region
    $region86: #{tpu_custom_call.1} parent=1 // pred_check
      _
    $region87: #{tpu_custom_call.1} parent=1 // pred_check_branch
      %3945 = sbr.rel (0) target = $region89
    $region88: #{tpu_custom_call.1} parent=1 // pred_region
      %s3947 = ssub.s32 256, 256
      %3948 = vsyncadd [#allocation4], %s3947
      %s3949 = sshll.u32 [#allocation10], 4
      %s3950 = int_to_ptr.vmem [resolvable:$true] %s3949
      %3955 = dma.vmem_to_hbm [thread:$0]  %s3950, 256, %s17, [#allocation4], 128, 128, 8
    $region89: #{tpu_custom_call.1} parent=1 // pred_fallthru
      _
    // Predicated region
    $region90: #{tpu_custom_call.1} parent=1 // pred_check
      _
    $region91: #{tpu_custom_call.1} parent=1 // pred_check_branch
      %3957 = sbr.rel (0) target = $region93
    $region92: #{tpu_custom_call.1} parent=1 // pred_region
      %3958 = dma.done [#allocation4], 256
    $region93: #{tpu_custom_call.1} parent=1 // pred_fallthru
      _
    %3959 = vsyncpa [#allocation3], 1
    %3960 = vsyncpa [#allocation6], 1
    %3961 = vsyncpa [#allocation9], 1
    %3962 = vsyncpa [#allocation4], 1

</llo_original>
